<compile_context>
chip_gen: v5e
topology: v5e:2x2
jax: 0.10.0
libtpu: 0.0.40
codegen_flags: <defaults>
</compile_context>

<pallas_src>
import math
import jax
import jax.numpy as jnp
from jax import lax
from jax.experimental import pallas as pl
from jax.experimental.pallas import tpu as pltpu


# Set True to cast projection-matmul operands to bf16 (accumulation stays f32,
# ~2-4x MXU throughput).  Left False by default so the f32 sequential reference
# check below passes at tight tolerance.
MATMUL_BF16 = False

_VMEM_CACHE = None


def _vmem_limit():
    """Generation-aware scoped-VMEM limit: ~3/4 of physical, capped at 96 MiB
    (v5e/v6e: 96 of 128 MiB; v7x: 48 of 64 MiB; unknown: 48 MiB)."""
    global _VMEM_CACHE
    if _VMEM_CACHE is None:
        try:
            cap = int(pltpu.get_tpu_info().vmem_capacity_bytes)
        except Exception:
            cap = 64 * 1024 * 1024
        _VMEM_CACHE = min((cap * 3) // 4, 96 * 1024 * 1024)
    return _VMEM_CACHE


# =============================================================================
# helpers
# =============================================================================
def _round_up(x, m):
    return (x + m - 1) // m * m


def _pick_tile(dim, pref, align):
    """Tile size + padded dim.  Dims <= pref use a full-array block (exempt from
    the (8,128) rule); larger dims are padded only to a multiple of `align`
    (not of `pref`) and get the largest aligned tile that divides the result."""
    if dim <= pref:
        return dim, dim
    dp = _round_up(dim, align)
    t = (pref // align) * align
    while dp % t != 0:
        t -= align
    return t, dp


def _combine_row_tile(rows, d, vmem_budget):
    """Row tile for the combine kernel derived from the VMEM budget:
    (4 inputs + 1 output) x 2 buffers x tr x d x 4B must stay under budget."""
    per_row = 5 * 2 * d * 4
    cap = max(8, vmem_budget // per_row)
    cand = min(rows, 1024, cap)
    for t in range(cand, 7, -1):
        if rows % t == 0 and t % 8 == 0:
            return t
    return rows


def _conv_ctile(c, pref=512):
    if c <= pref:
        return c
    for t in (pref, 384, 256, 128):
        if t % 128 == 0 and c % t == 0:
            return t
    return c


def _head_expand_matrix(n_heads, head_width):
    """(n_heads, n_heads*head_width) 0/1 matrix: head h -> its head_width lanes."""
    return jnp.repeat(jnp.eye(n_heads, dtype=jnp.float32), head_width, axis=1)


# =============================================================================
# Tiled matmul (in_proj / out_proj)
# =============================================================================
def _matmul_kernel(a_ref, b_ref, o_ref, acc_ref):
    @pl.when(pl.program_id(2) == 0)
    def _():
        acc_ref[...] = jnp.zeros_like(acc_ref)

    acc_ref[...] += jnp.dot(a_ref[...], b_ref[...],
                            preferred_element_type=jnp.float32)

    @pl.when(pl.program_id(2) == pl.num_programs(2) - 1)
    def _():
        o_ref[...] = acc_ref[...].astype(o_ref.dtype)


def pallas_matmul(a, b, *, tm=512, tn=512, tk=1024, cast_bf16=MATMUL_BF16):
    """(M,K)@(K,N) matmul, tiled over (M, N, K) with a VMEM f32 accumulator."""
    M, K = a.shape
    K2, N = b.shape
    assert K == K2
    bm, Mp = _pick_tile(M, tm, 8)
    bn, Np = _pick_tile(N, tn, 128)
    bk, Kp = _pick_tile(K, tk, 128)
    ap = a if (Mp == M and Kp == K) else jnp.pad(a, ((0, Mp - M), (0, Kp - K)))
    bp = b if (Kp == K and Np == N) else jnp.pad(b, ((0, Kp - K), (0, Np - N)))
    if cast_bf16:
        ap = ap.astype(jnp.bfloat16)
        bp = bp.astype(jnp.bfloat16)
    out = pl.pallas_call(
        _matmul_kernel,
        out_shape=jax.ShapeDtypeStruct((Mp, Np), jnp.float32),
        grid=(Mp // bm, Np // bn, Kp // bk),
        in_specs=[pl.BlockSpec((bm, bk), lambda i, j, k: (i, k)),
                  pl.BlockSpec((bk, bn), lambda i, j, k: (k, j))],
        out_specs=pl.BlockSpec((bm, bn), lambda i, j, k: (i, j)),
        scratch_shapes=[pltpu.VMEM((bm, bn), jnp.float32)],
        compiler_params=pltpu.CompilerParams(
            dimension_semantics=("parallel", "parallel", "arbitrary"),
            vmem_limit_bytes=_vmem_limit()),
    )(ap, bp)
    return out if (Mp == M and Np == N) else out[:M, :N]


# =============================================================================
# Depthwise conv1d + SiLU (halo built in-kernel, channel-tiled grid)
# =============================================================================
def _dwconv_silu_kernel(x_ref, w_ref, b_ref, o_ref):
    # x_ref: (L, Ct), w_ref: (K, Ct), b_ref: (1, Ct), o_ref: (L, Ct)
    L, C = x_ref.shape
    K = w_ref.shape[0]
    pad = K // 2
    xv = x_ref[...]
    wv = w_ref[...]
    zpad = jnp.zeros((pad, C), jnp.float32)
    xp = jnp.concatenate([zpad, xv, zpad], axis=0)    # halo lives in VMEM only
    acc = jnp.zeros((L, C), jnp.float32)
    for k in range(K):                                # static unroll over taps
        acc = acc + xp[k:k + L, :] * wv[k:k + 1, :]
    acc = acc + b_ref[...]
    o_ref[...] = acc * jax.nn.sigmoid(acc)            # SiLU in f32 (v5e-friendly)


def pallas_dwconv_silu(x, w, b):
    # x: (B, L, C) channels-last (unpadded), w: (K, C), b: (C,)
    Bn, L, C = x.shape
    K = w.shape[0]
    ct = _conv_ctile(C)
    return pl.pallas_call(
        _dwconv_silu_kernel,
        out_shape=jax.ShapeDtypeStruct((Bn, L, C), jnp.float32),
        grid=(Bn, C // ct),
        in_specs=[pl.BlockSpec((None, L, ct), lambda i, c: (i, 0, c)),
                  pl.BlockSpec((K, ct), lambda i, c: (0, c)),
                  pl.BlockSpec((1, ct), lambda i, c: (0, c))],
        out_specs=pl.BlockSpec((None, L, ct), lambda i, c: (i, 0, c)),
        compiler_params=pltpu.CompilerParams(
            dimension_semantics=("parallel", "parallel"),
            vmem_limit_bytes=_vmem_limit()),
    )(x, w, b.reshape(1, C))


# =============================================================================
# Bidirectional single-chunk SSD scan (quadratic form), both directions fused
# =============================================================================
def _ssd_bidir_kernel(x_ref, dtf_ref, dtb_ref, acf_ref, acb_ref,
                      bf_ref, cf_ref, bb_ref, cb_ref, e_ref,
                      yf_ref, yb_ref):
    # Per (batch, group) block:
    #   x (L, Pg), dt/ac (L, hpg), B/C (L, N), E (hpg, Pg) -> y_fw / y_bw (L, Pg)
    L, Pg = x_ref.shape
    f32 = jnp.float32
    xv = x_ref[...]
    ev = e_ref[...]                               # 0/1 head -> lane expansion

    i_idx = lax.broadcasted_iota(jnp.int32, (L, L), 0)
    j_idx = lax.broadcasted_iota(jnp.int32, (L, L), 1)

    def direction(c_ref, b_ref, ac_ref, dt_ref, causal):
        # group-shared Gram matrix (C · B^T), computed once per direction.
        g = lax.dot_general(c_ref[...], b_ref[...], (((1,), (1,)), ((), ())),
                            preferred_element_type=f32)          # (L, L)
        mask = (i_idx >= j_idx) if causal else (i_idx <= j_idx)
        gm = jnp.where(mask, g, 0.0)
        # rank-1 factorization of the decay: exp(ac[t]-ac[s]) =
        #   exp(ac[t]-m) * exp(m-ac[s]) with per-head stabilizer m = max(ac).
        # The exponent ac[t]-ac[s] is always <= 0 inside the mask, so the
        # column factors are <= 1 and the row factors are >= 1 (clamped below).
        # TODO(synk): for extreme decay ranges (>~80) the clamp changes numerics.
        ac = ac_ref[...]                                         # (L, hpg)
        m = jnp.max(ac, axis=0, keepdims=True)                   # (1, hpg)
        sin = jnp.exp(jnp.minimum(m - ac, 80.0)) * dt_ref[...]   # (L, hpg)
        sout = jnp.exp(ac - m)                                   # (L, hpg)
        sin_l = jnp.dot(sin, ev, preferred_element_type=f32)     # (L, Pg)
        sout_l = jnp.dot(sout, ev, preferred_element_type=f32)   # (L, Pg)
        # one full-group-width MXU matmul instead of hpg narrow per-head ones.
        return sout_l * jnp.dot(gm, xv * sin_l, preferred_element_type=f32)

    y_fw = direction(cf_ref, bf_ref, acf_ref, dtf_ref, True)     # causal
    y_bw = direction(cb_ref, bb_ref, acb_ref, dtb_ref, False)    # anti-causal

    # fused torch.roll(y, 1)/zero-first-row (fwd) and its mirror for the bwd dir.
    zrow = jnp.zeros((1, Pg), f32)
    yf_ref[...] = jnp.concatenate([zrow, y_fw[:L - 1, :]], axis=0)
    yb_ref[...] = jnp.concatenate([y_bw[1:, :], zrow], axis=0)


def pallas_ssd_bidir(x, dtf, dtb, acf, acb, bf, cf, bb, cb, e_g, ngroups):
    # x (B,L,d_inner); dt*/ac* (B,G,L,hpg); b*/c* (B,G,L,N); e_g (hpg, Pg)
    Bn, L, Dinner = x.shape
    G = ngroups
    Pg = Dinner // G
    hpg = dtf.shape[-1]
    N = bf.shape[-1]
    spec_x = pl.BlockSpec((None, L, Pg), lambda b, g: (b, 0, g))
    spec_h = pl.BlockSpec((None, None, L, hpg), lambda b, g: (b, g, 0, 0))
    spec_n = pl.BlockSpec((None, None, L, N), lambda b, g: (b, g, 0, 0))
    spec_e = pl.BlockSpec((hpg, Pg), lambda b, g: (0, 0))
    out_sd = jax.ShapeDtypeStruct((Bn, L, Dinner), jnp.float32)
    return pl.pallas_call(
        _ssd_bidir_kernel,
        out_shape=(out_sd, out_sd),
        grid=(Bn, G),
        in_specs=[spec_x, spec_h, spec_h, spec_h, spec_h,
                  spec_n, spec_n, spec_n, spec_n, spec_e],
        out_specs=(spec_x, spec_x),
        compiler_params=pltpu.CompilerParams(
            dimension_semantics=("parallel", "parallel"),
            vmem_limit_bytes=_vmem_limit()),
    )(x, dtf, dtb, acf, acb, bf, cf, bb, cb, e_g)


# =============================================================================
# fwd+bwd merge + native fc_D skip + gated RMSNorm
# =============================================================================
def _combine_norm_kernel(yf_ref, yb_ref, x_ref, z_ref, wd_ref, e_ref,
                         d_ref, nw_ref, o_ref):
    x = x_ref[...]
    # fc_D in native (d_inner, nheads) form + tiny 0/1 head->lane expansion
    # matmul (K = nheads) — no d_inner x d_inner expanded weight.
    head_skip = jnp.dot(x, wd_ref[...], preferred_element_type=jnp.float32)
    skip = jnp.dot(head_skip, e_ref[...],
                   preferred_element_type=jnp.float32) + d_ref[...]
    y = yf_ref[...] + yb_ref[...] + x * skip
    ms = jnp.mean(y * y, axis=-1, keepdims=True)
    yn = y * lax.rsqrt(ms + 1e-5) * nw_ref[...]
    z = z_ref[...]
    o_ref[...] = yn * (z * jax.nn.sigmoid(z))   # RMSNormGated, norm_before_gate=True


def pallas_combine_norm(y_fw, y_bw, x_og, z, w_fcD_t, e_head, d_rep, norm_w):
    R, D = y_fw.shape
    H = w_fcD_t.shape[1]
    tr = _combine_row_tile(R, D, _vmem_limit() // 2)
    spec_r = pl.BlockSpec((tr, D), lambda i: (i, 0))
    return pl.pallas_call(
        _combine_norm_kernel,
        out_shape=jax.ShapeDtypeStruct((R, D), jnp.float32),
        grid=(R // tr,),
        in_specs=[spec_r, spec_r, spec_r, spec_r,
                  pl.BlockSpec((D, H), lambda i: (0, 0)),
                  pl.BlockSpec((H, D), lambda i: (0, 0)),
                  pl.BlockSpec((1, D), lambda i: (0, 0)),
                  pl.BlockSpec((1, D), lambda i: (0, 0))],
        out_specs=spec_r,
        compiler_params=pltpu.CompilerParams(
            dimension_semantics=("parallel",),
            vmem_limit_bytes=_vmem_limit()),
    )(y_fw, y_bw, x_og, z, w_fcD_t, e_head, d_rep.reshape(1, D),
      norm_w.reshape(1, D))


# =============================================================================
# Hydra forward (Pallas kernels + thin JAX glue)
# =============================================================================
def hydra_forward(u, p, cfg):
    d_model, d_state, d_conv = cfg['d_model'], cfg['d_state'], cfg['d_conv']
    d_inner, headdim, nheads, ngroups = (cfg['d_inner'], cfg['headdim'],
                                         cfg['nheads'], cfg['ngroups'])
    gN = ngroups * d_state
    conv_dim = d_inner + 4 * gN
    hpg = nheads // ngroups
    Pg = d_inner // ngroups

    Bn, Cch, Hh, Ww = u.shape
    L = Hh * Ww
    R = Bn * L
    # TODO(synk): multi-chunk SSD (L > chunk_size) not implemented; single quadratic chunk.
    assert L <= cfg['chunk_size']
    # Direct (B, L, d_inner) SSD layout needs lane-aligned group width for G > 1.
    assert ngroups == 1 or Pg % 128 == 0

    useq = u.reshape(Bn, Cch, L).transpose(0, 2, 1).reshape(R, d_model)

    # ---- in_proj (tiled Pallas matmul) ----
    zxbcdt = pallas_matmul(useq, p['W_in'])                         # (R, d_in_proj)
    z2d = zxbcdt[:, :d_inner]
    xBC = zxbcdt[:, d_inner:d_inner + conv_dim].reshape(Bn, L, conv_dim)
    dt_raw = zxbcdt[:, d_inner + conv_dim:].reshape(Bn, L, 2 * nheads)

    # ---- depthwise conv1d + SiLU (Pallas, halo handled in-kernel) ----
    xBC_act = pallas_dwconv_silu(xBC, p['conv_w'], p['conv_b'])     # (B, L, conv_dim)

    x = xBC_act[..., :d_inner]
    b_fw = xBC_act[..., d_inner:d_inner + gN]
    c_fw = xBC_act[..., d_inner + gN:d_inner + 2 * gN]
    b_bw = xBC_act[..., d_inner + 2 * gN:d_inner + 3 * gN]
    c_bw = xBC_act[..., d_inner + 3 * gN:]

    # ---- per-direction dt and cumulative decay, all in forward coordinates ----
    A = -jnp.exp(p['A_log'])                                        # (H,)
    dt_fw = jax.nn.softplus(dt_raw[..., :nheads] + p['dt_bias'])    # (B, L, H)
    dt_bw = jax.nn.softplus(dt_raw[..., nheads:] + p['dt_bias'])
    acum_fw = jnp.cumsum(dt_fw * A, axis=1)                         # prefix sums
    racum_bw = jnp.flip(jnp.cumsum(jnp.flip(dt_bw * A, axis=1), axis=1), axis=1)  # suffix

    def grp(t):   # (B, L, G*c) -> (B, G, L, c)   (free reshape for ngroups == 1)
        return t.reshape(Bn, L, ngroups, -1).transpose(0, 2, 1, 3)

    # 0/1 head->lane expansion used for in-kernel per-head broadcasts.
    e_ssd = _head_expand_matrix(hpg, headdim)                       # (hpg, Pg)

    # ---- fused bidirectional SSD scan (Pallas), outputs already (B, L, d_inner) ----
    y_fw, y_bw = pallas_ssd_bidir(x, grp(dt_fw), grp(dt_bw),
                                  grp(acum_fw), grp(racum_bw),
                                  grp(b_fw), grp(c_fw), grp(b_bw), grp(c_bw),
                                  e_ssd, ngroups)
    y_fw2 = y_fw.reshape(R, d_inner)                                # no transpose needed
    y_bw2 = y_bw.reshape(R, d_inner)
    x2 = x.reshape(R, d_inner)

    # fc_D kept native: (d_inner, nheads) weight + (nheads, d_inner) expansion.
    w_fcD_t = p['fc_D_w'].T                                         # (d_inner, nheads)
    e_head = _head_expand_matrix(nheads, headdim)                   # (nheads, d_inner)
    d_rep = jnp.repeat(p['D'], headdim)                             # (d_inner,) tiny

    y_out = pallas_combine_norm(y_fw2, y_bw2, x2, z2d,
                                w_fcD_t, e_head, d_rep, p['norm_w'])

    # ---- out_proj (tiled Pallas matmul) ----
    out = pallas_matmul(y_out, p['W_out'])                          # (R, d_model)
    return out.reshape(Bn, L, d_model).transpose(0, 2, 1).reshape(Bn, d_model, Hh, Ww)


# =============================================================================
# Pure-JAX reference (sequential recurrence) for correctness check
# =============================================================================
def ref_forward(u, p, cfg):
    d_model, d_state, d_conv = cfg['d_model'], cfg['d_state'], cfg['d_conv']
    d_inner, headdim, nheads, ngroups = (cfg['d_inner'], cfg['headdim'],
                                         cfg['nheads'], cfg['ngroups'])
    conv_dim = d_inner + 2 * (2 * ngroups * d_state)
    gN = ngroups * d_state

    Bn, Cch, Hh, Ww = u.shape
    L = Hh * Ww
    useq = u.reshape(Bn, Cch, L).transpose(0, 2, 1)
    zxbcdt = useq @ p['W_in']
    z = zxbcdt[..., :d_inner]
    xBC = zxbcdt[..., d_inner:d_inner + conv_dim]
    dt_raw = zxbcdt[..., d_inner + conv_dim:]
    dt2 = jnp.concatenate(
        [dt_raw[..., :nheads], jnp.flip(dt_raw[..., nheads:], axis=1)], axis=0)
    dt = jax.nn.softplus(dt2 + p['dt_bias'])

    conv_out = lax.conv_general_dilated(
        xBC, p['conv_w'].reshape(d_conv, 1, conv_dim),
        window_strides=(1,), padding='SAME',
        dimension_numbers=('NWC', 'WIO', 'NWC'),
        feature_group_count=conv_dim) + p['conv_b']
    xBC_act = conv_out * jax.nn.sigmoid(conv_out)
    x = xBC_act[..., :d_inner]
    BC = xBC_act[..., d_inner:]
    x_og = x
    x2 = jnp.concatenate([x, jnp.flip(x, axis=1)], axis=0)
    BC2 = jnp.concatenate(
        [BC[..., :2 * gN], jnp.flip(BC[..., 2 * gN:], axis=1)], axis=0)
    Bmat = BC2[..., :gN]
    Cmat = BC2[..., gN:]

    S = 2 * Bn
    xh = x2.reshape(S, L, nheads, headdim)
    hpg = nheads // ngroups
    Bh = jnp.repeat(Bmat.reshape(S, L, ngroups, d_state), hpg, axis=2)
    Ch = jnp.repeat(Cmat.reshape(S, L, ngroups, d_state), hpg, axis=2)
    A = -jnp.exp(p['A_log'])

    def step(state, inp):
        x_t, dt_t, B_t, C_t = inp
        decay = jnp.exp(dt_t * A)[:, :, None, None]
        state = state * decay + dt_t[:, :, None, None] * x_t[..., None] * B_t[:, :, None, :]
        y_t = jnp.einsum('shpn,shn->shp', state, C_t)
        return state, y_t

    state0 = jnp.zeros((S, nheads, headdim, d_state), jnp.float32)
    _, ys = lax.scan(step, state0,
                     (xh.transpose(1, 0, 2, 3), dt.transpose(1, 0, 2),
                      Bh.transpose(1, 0, 2, 3), Ch.transpose(1, 0, 2, 3)))
    y = ys.transpose(1, 0, 2, 3).reshape(S, L, d_inner)
    y = jnp.roll(y, 1, axis=1)
    y = y.at[:, 0, :].set(0.0)
    y_fw = y[:Bn]
    y_bw = jnp.flip(y[Bn:], axis=1)

    skip = x_og @ p['fc_D_w'].T + p['D']
    skip = jnp.repeat(skip, headdim, axis=-1)
    yc = y_fw + y_bw + x_og * skip
    ms = jnp.mean(yc * yc, axis=-1, keepdims=True)
    yn = yc * lax.rsqrt(ms + 1e-5) * p['norm_w']
    y_out = yn * (z * jax.nn.sigmoid(z))
    out = y_out @ p['W_out']
    return out.transpose(0, 2, 1).reshape(Bn, d_model, Hh, Ww)


# =============================================================================
# Deterministic parameter init (shapes from Hydra.__init__)
# =============================================================================
def init_params(key, cfg):
    d_model, d_state, d_conv = cfg['d_model'], cfg['d_state'], cfg['d_conv']
    d_inner, nheads, ngroups = cfg['d_inner'], cfg['nheads'], cfg['ngroups']
    d_in_proj = 2 * d_inner + 2 * (2 * ngroups * d_state) + 2 * nheads
    conv_dim = d_inner + 2 * (2 * ngroups * d_state)
    ks = jax.random.split(key, 8)

    dt_min, dt_max, dt_init_floor = 1e-3, 0.1, 1e-4
    dtv = jnp.exp(jax.random.uniform(ks[0], (nheads,)) *
                  (math.log(dt_max) - math.log(dt_min)) + math.log(dt_min))
    dtv = jnp.maximum(dtv, dt_init_floor)
    dt_bias = dtv + jnp.log(-jnp.expm1(-dtv))

    return dict(
        W_in=(jax.random.normal(ks[1], (d_model, d_in_proj), jnp.float32)
              / math.sqrt(d_model)),
        conv_w=jax.random.uniform(ks[2], (d_conv, conv_dim), jnp.float32,
                                  minval=-1.0 / math.sqrt(d_conv),
                                  maxval=1.0 / math.sqrt(d_conv)),
        conv_b=jax.random.uniform(ks[3], (conv_dim,), jnp.float32,
                                  minval=-0.1, maxval=0.1),
        dt_bias=dt_bias.astype(jnp.float32),
        A_log=jnp.zeros((nheads,), jnp.float32),
        D=jnp.ones((nheads,), jnp.float32),
        fc_D_w=(jax.random.normal(ks[4], (nheads, d_inner), jnp.float32)
                / math.sqrt(d_inner)),
        norm_w=jnp.ones((d_inner,), jnp.float32),
        W_out=(jax.random.normal(ks[5], (d_inner, d_model), jnp.float32)
               / math.sqrt(d_inner)),
    )


# =============================================================================
if __name__ == "__main__":
    cfg = dict(d_model=32, d_state=16, d_conv=7, expand=2, headdim=16,
               ngroups=1, chunk_size=256)
    cfg['d_inner'] = cfg['expand'] * cfg['d_model']
    cfg['nheads'] = cfg['d_inner'] // cfg['headdim']

    key = jax.random.PRNGKey(0)
    params = init_params(key, cfg)
    u = jax.random.normal(jax.random.fold_in(key, 123),
                          (2, cfg['d_model'], 8, 8), jnp.float32)

    fwd = jax.jit(lambda uu, pp: hydra_forward(uu, pp, cfg))
    out = jax.block_until_ready(fwd(u, params))

    assert out.shape == u.shape, f"shape mismatch: {out.shape} vs {u.shape}"
    assert bool(jnp.all(jnp.isfinite(out))), "non-finite output"

    with jax.default_matmul_precision('float32'):
        ref = ref_forward(u, params, cfg)
    ref = jax.block_until_ready(ref)
    max_diff = float(jnp.max(jnp.abs(out - ref)))
    assert bool(jnp.allclose(out, ref, rtol=1e-2, atol=2e-3)), \
        f"mismatch vs reference, max |diff| = {max_diff}"

    print("KERNEL_OK")
</pallas_src>

<mosaic_0001>
module attributes {stable_mosaic.version = 11 : i64} {
  func.func @_matmul_kernel(%arg0: i32, %arg1: i32, %arg2: i32, %arg3: memref<128x32xf32, #tpu.memory_space<vmem>>, %arg4: memref<32x200xf32, #tpu.memory_space<vmem>>, %arg5: memref<128x200xf32, #tpu.memory_space<vmem>>, %arg6: memref<128x200xf32, #tpu.memory_space<vmem>>) attributes {dimension_semantics = [#tpu.dimension_semantics<parallel>, #tpu.dimension_semantics<parallel>, #tpu.dimension_semantics<arbitrary>], iteration_bounds = array<i64: 1, 1, 1>, scalar_prefetch = 0 : i64, scratch_operands = 1 : i64, tpu.core_type = #tpu.core_type<tc>, window_params = [{transform_indices = @transform_0, window_bounds = array<i64: 128, 32>}, {transform_indices = @transform_1, window_bounds = array<i64: 32, 200>}, {transform_indices = @transform_2, window_bounds = array<i64: 128, 200>}]} {
    %c0_i32 = arith.constant 0 : i32
    %0 = arith.cmpi eq, %arg2, %c0_i32 : i32
    %1 = arith.extui %0 : i1 to i32
    %c0_i32_0 = arith.constant 0 : i32
    %2 = arith.cmpi ne, %1, %c0_i32_0 : i32
    scf.if %2 {
      %cst_10 = arith.constant 0.000000e+00 : f32
      %12 = vector.broadcast %cst_10 : f32 to vector<128x200xf32>
      %c0_11 = arith.constant 0 : index
      %c0_12 = arith.constant 0 : index
      %13 = vector.load %arg6[%c0_11, %c0_12] : memref<128x200xf32, #tpu.memory_space<vmem>>, vector<128x200xf32>
      tpu.vector_store %arg6[%c0_11, %c0_12], %12 {strides = array<i32>} : memref<128x200xf32, #tpu.memory_space<vmem>>, vector<128x200xf32>,
    } else {
    }
    %c0 = arith.constant 0 : index
    %c0_1 = arith.constant 0 : index
    %3 = vector.load %arg6[%c0, %c0_1] : memref<128x200xf32, #tpu.memory_space<vmem>>, vector<128x200xf32>
    %c0_2 = arith.constant 0 : index
    %c0_3 = arith.constant 0 : index
    %4 = vector.load %arg3[%c0_2, %c0_3] : memref<128x32xf32, #tpu.memory_space<vmem>>, vector<128x32xf32>
    %c0_4 = arith.constant 0 : index
    %c0_5 = arith.constant 0 : index
    %5 = vector.load %arg4[%c0_4, %c0_5] : memref<32x200xf32, #tpu.memory_space<vmem>>, vector<32x200xf32>
    %cst = arith.constant dense<0.000000e+00> : vector<128x200xf32>
    %6 = tpu.matmul %4, %5, %cst {dimension_numbers = #tpu.dot_dimension_numbers<[1], [0], [0], [1], [0, 0, 1, 1], [], []>} : vector<128x32xf32>, vector<32x200xf32>, vector<128x200xf32> -> vector<128x200xf32>
    %7 = arith.addf %3, %6 : vector<128x200xf32>
    %c0_6 = arith.constant 0 : index
    %c0_7 = arith.constant 0 : index
    %8 = vector.load %arg6[%c0_6, %c0_7] : memref<128x200xf32, #tpu.memory_space<vmem>>, vector<128x200xf32>
    tpu.vector_store %arg6[%c0_6, %c0_7], %7 {strides = array<i32>} : memref<128x200xf32, #tpu.memory_space<vmem>>, vector<128x200xf32>,
    %c0_i32_8 = arith.constant 0 : i32
    %9 = arith.cmpi eq, %arg2, %c0_i32_8 : i32
    %10 = arith.extui %9 : i1 to i32
    %c0_i32_9 = arith.constant 0 : i32
    %11 = arith.cmpi ne, %10, %c0_i32_9 : i32
    scf.if %11 {
      %c0_10 = arith.constant 0 : index
      %c0_11 = arith.constant 0 : index
      %12 = vector.load %arg6[%c0_10, %c0_11] : memref<128x200xf32, #tpu.memory_space<vmem>>, vector<128x200xf32>
      %c0_12 = arith.constant 0 : index
      %c0_13 = arith.constant 0 : index
      %13 = vector.load %arg5[%c0_12, %c0_13] : memref<128x200xf32, #tpu.memory_space<vmem>>, vector<128x200xf32>
      tpu.vector_store %arg5[%c0_12, %c0_13], %12 {strides = array<i32>} : memref<128x200xf32, #tpu.memory_space<vmem>>, vector<128x200xf32>,
    } else {
    }
    return
  }
  func.func @transform_0(%arg0: i32, %arg1: i32, %arg2: i32) -> (i32, i32) {
    %c0_i32 = arith.constant 0 : i32
    return %arg0, %arg2 : i32, i32
  }
  func.func @transform_1(%arg0: i32, %arg1: i32, %arg2: i32) -> (i32, i32) {
    %c0_i32 = arith.constant 0 : i32
    return %arg2, %arg1 : i32, i32
  }
  func.func @transform_2(%arg0: i32, %arg1: i32, %arg2: i32) -> (i32, i32) {
    %c0_i32 = arith.constant 0 : i32
    return %arg0, %arg1 : i32, i32
  }
}

module attributes {stable_mosaic.version = 11 : i64} {
  func.func @_dwconv_silu_kernel(%arg0: i32, %arg1: i32, %arg2: memref<1x64x128xf32, #tpu.memory_space<vmem>>, %arg3: memref<7x128xf32, #tpu.memory_space<vmem>>, %arg4: memref<1x128xf32, #tpu.memory_space<vmem>>, %arg5: memref<1x64x128xf32, #tpu.memory_space<vmem>>) attributes {dimension_semantics = [#tpu.dimension_semantics<parallel>, #tpu.dimension_semantics<parallel>], iteration_bounds = array<i64: 2, 1>, scalar_prefetch = 0 : i64, scratch_operands = 0 : i64, tpu.core_type = #tpu.core_type<tc>, window_params = [{transform_indices = @transform_0, window_bounds = array<i64: 1, 64, 128>}, {transform_indices = @transform_1, window_bounds = array<i64: 7, 128>}, {transform_indices = @transform_2, window_bounds = array<i64: 1, 128>}, {transform_indices = @transform_3, window_bounds = array<i64: 1, 64, 128>}]} {
    %c0 = arith.constant 0 : index
    %c0_0 = arith.constant 0 : index
    %c0_1 = arith.constant 0 : index
    %0 = vector.load %arg2[%c0, %c0_0, %c0_1] : memref<1x64x128xf32, #tpu.memory_space<vmem>>, vector<1x64x128xf32>
    %1 = vector.shape_cast %0 : vector<1x64x128xf32> to vector<64x128xf32>
    %c0_2 = arith.constant 0 : index
    %c0_3 = arith.constant 0 : index
    %2 = vector.load %arg3[%c0_2, %c0_3] : memref<7x128xf32, #tpu.memory_space<vmem>>, vector<7x128xf32>
    %cst = arith.constant 0.000000e+00 : f32
    %3 = vector.broadcast %cst : f32 to vector<3x128xf32>
    %4 = tpu.concatenate %3, %1, %3 in 0 : vector<3x128xf32>, vector<64x128xf32>, vector<3x128xf32> -> vector<70x128xf32>
    %cst_4 = arith.constant 0.000000e+00 : f32
    %5 = vector.broadcast %cst_4 : f32 to vector<64x128xf32>
    %6 = vector.extract_strided_slice %4 {offsets = [0, 0], sizes = [64, 128], strides = [1, 1]} : vector<70x128xf32> to vector<64x128xf32>
    %7 = vector.extract_strided_slice %2 {offsets = [0, 0], sizes = [1, 128], strides = [1, 1]} : vector<7x128xf32> to vector<1x128xf32>
    %8 = vector.broadcast %7 : vector<1x128xf32> to vector<64x128xf32>
    %9 = arith.mulf %6, %8 : vector<64x128xf32>
    %10 = arith.addf %5, %9 : vector<64x128xf32>
    %11 = vector.extract_strided_slice %4 {offsets = [1, 0], sizes = [64, 128], strides = [1, 1]} : vector<70x128xf32> to vector<64x128xf32>
    %12 = vector.extract_strided_slice %2 {offsets = [1, 0], sizes = [1, 128], strides = [1, 1]} : vector<7x128xf32> to vector<1x128xf32>
    %13 = vector.broadcast %12 : vector<1x128xf32> to vector<64x128xf32>
    %14 = arith.mulf %11, %13 : vector<64x128xf32>
    %15 = arith.addf %10, %14 : vector<64x128xf32>
    %16 = vector.extract_strided_slice %4 {offsets = [2, 0], sizes = [64, 128], strides = [1, 1]} : vector<70x128xf32> to vector<64x128xf32>
    %17 = vector.extract_strided_slice %2 {offsets = [2, 0], sizes = [1, 128], strides = [1, 1]} : vector<7x128xf32> to vector<1x128xf32>
    %18 = vector.broadcast %17 : vector<1x128xf32> to vector<64x128xf32>
    %19 = arith.mulf %16, %18 : vector<64x128xf32>
    %20 = arith.addf %15, %19 : vector<64x128xf32>
    %21 = vector.extract_strided_slice %4 {offsets = [3, 0], sizes = [64, 128], strides = [1, 1]} : vector<70x128xf32> to vector<64x128xf32>
    %22 = vector.extract_strided_slice %2 {offsets = [3, 0], sizes = [1, 128], strides = [1, 1]} : vector<7x128xf32> to vector<1x128xf32>
    %23 = vector.broadcast %22 : vector<1x128xf32> to vector<64x128xf32>
    %24 = arith.mulf %21, %23 : vector<64x128xf32>
    %25 = arith.addf %20, %24 : vector<64x128xf32>
    %26 = vector.extract_strided_slice %4 {offsets = [4, 0], sizes = [64, 128], strides = [1, 1]} : vector<70x128xf32> to vector<64x128xf32>
    %27 = vector.extract_strided_slice %2 {offsets = [4, 0], sizes = [1, 128], strides = [1, 1]} : vector<7x128xf32> to vector<1x128xf32>
    %28 = vector.broadcast %27 : vector<1x128xf32> to vector<64x128xf32>
    %29 = arith.mulf %26, %28 : vector<64x128xf32>
    %30 = arith.addf %25, %29 : vector<64x128xf32>
    %31 = vector.extract_strided_slice %4 {offsets = [5, 0], sizes = [64, 128], strides = [1, 1]} : vector<70x128xf32> to vector<64x128xf32>
    %32 = vector.extract_strided_slice %2 {offsets = [5, 0], sizes = [1, 128], strides = [1, 1]} : vector<7x128xf32> to vector<1x128xf32>
    %33 = vector.broadcast %32 : vector<1x128xf32> to vector<64x128xf32>
    %34 = arith.mulf %31, %33 : vector<64x128xf32>
    %35 = arith.addf %30, %34 : vector<64x128xf32>
    %36 = vector.extract_strided_slice %4 {offsets = [6, 0], sizes = [64, 128], strides = [1, 1]} : vector<70x128xf32> to vector<64x128xf32>
    %37 = vector.extract_strided_slice %2 {offsets = [6, 0], sizes = [1, 128], strides = [1, 1]} : vector<7x128xf32> to vector<1x128xf32>
    %38 = vector.broadcast %37 : vector<1x128xf32> to vector<64x128xf32>
    %39 = arith.mulf %36, %38 : vector<64x128xf32>
    %40 = arith.addf %35, %39 : vector<64x128xf32>
    %c0_5 = arith.constant 0 : index
    %c0_6 = arith.constant 0 : index
    %41 = vector.load %arg4[%c0_5, %c0_6] : memref<1x128xf32, #tpu.memory_space<vmem>>, vector<1x128xf32>
    %42 = vector.broadcast %41 : vector<1x128xf32> to vector<64x128xf32>
    %43 = arith.addf %40, %42 : vector<64x128xf32>
    %44 = arith.negf %43 : vector<64x128xf32>
    %45 = math.exp %44 : vector<64x128xf32>
    %cst_7 = arith.constant 1.000000e+00 : f32
    %46 = vector.broadcast %cst_7 : f32 to vector<64x128xf32>
    %47 = arith.addf %46, %45 : vector<64x128xf32>
    %48 = arith.divf %46, %47 : vector<64x128xf32>
    %49 = arith.mulf %43, %48 : vector<64x128xf32>
    %c0_8 = arith.constant 0 : index
    %c0_9 = arith.constant 0 : index
    %c0_10 = arith.constant 0 : index
    %50 = vector.load %arg5[%c0_8, %c0_9, %c0_10] : memref<1x64x128xf32, #tpu.memory_space<vmem>>, vector<1x64x128xf32>
    %51 = vector.shape_cast %50 : vector<1x64x128xf32> to vector<64x128xf32>
    %52 = vector.shape_cast %49 : vector<64x128xf32> to vector<1x64x128xf32>
    tpu.vector_store %arg5[%c0_8, %c0_9, %c0_10], %52 {strides = array<i32>} : memref<1x64x128xf32, #tpu.memory_space<vmem>>, vector<1x64x128xf32>,
    return
  }
  func.func @transform_0(%arg0: i32, %arg1: i32) -> (i32, i32, i32) {
    %c0_i32 = arith.constant 0 : i32
    %c0_i32_0 = arith.constant 0 : i32
    return %arg0, %c0_i32, %arg1 : i32, i32, i32
  }
  func.func @transform_1(%arg0: i32, %arg1: i32) -> (i32, i32) {
    %c0_i32 = arith.constant 0 : i32
    %c0_i32_0 = arith.constant 0 : i32
    return %c0_i32, %arg1 : i32, i32
  }
  func.func @transform_2(%arg0: i32, %arg1: i32) -> (i32, i32) {
    %c0_i32 = arith.constant 0 : i32
    %c0_i32_0 = arith.constant 0 : i32
    return %c0_i32, %arg1 : i32, i32
  }
  func.func @transform_3(%arg0: i32, %arg1: i32) -> (i32, i32, i32) {
    %c0_i32 = arith.constant 0 : i32
    %c0_i32_0 = arith.constant 0 : i32
    return %arg0, %c0_i32, %arg1 : i32, i32, i32
  }
}

module attributes {stable_mosaic.version = 11 : i64} {
  func.func @_ssd_bidir_kernel(%arg0: i32, %arg1: i32, %arg2: memref<1x64x64xf32, #tpu.memory_space<vmem>>, %arg3: memref<1x1x64x4xf32, #tpu.memory_space<vmem>>, %arg4: memref<1x1x64x4xf32, #tpu.memory_space<vmem>>, %arg5: memref<1x1x64x4xf32, #tpu.memory_space<vmem>>, %arg6: memref<1x1x64x4xf32, #tpu.memory_space<vmem>>, %arg7: memref<1x1x64x16xf32, #tpu.memory_space<vmem>>, %arg8: memref<1x1x64x16xf32, #tpu.memory_space<vmem>>, %arg9: memref<1x1x64x16xf32, #tpu.memory_space<vmem>>, %arg10: memref<1x1x64x16xf32, #tpu.memory_space<vmem>>, %arg11: memref<4x64xf32, #tpu.memory_space<vmem>>, %arg12: memref<1x64x64xf32, #tpu.memory_space<vmem>>, %arg13: memref<1x64x64xf32, #tpu.memory_space<vmem>>) attributes {dimension_semantics = [#tpu.dimension_semantics<parallel>, #tpu.dimension_semantics<parallel>], iteration_bounds = array<i64: 2, 1>, scalar_prefetch = 0 : i64, scratch_operands = 0 : i64, tpu.core_type = #tpu.core_type<tc>, window_params = [{transform_indices = @transform_0, window_bounds = array<i64: 1, 64, 64>}, {transform_indices = @transform_1, window_bounds = array<i64: 1, 1, 64, 4>}, {transform_indices = @transform_2, window_bounds = array<i64: 1, 1, 64, 4>}, {transform_indices = @transform_3, window_bounds = array<i64: 1, 1, 64, 4>}, {transform_indices = @transform_4, window_bounds = array<i64: 1, 1, 64, 4>}, {transform_indices = @transform_5, window_bounds = array<i64: 1, 1, 64, 16>}, {transform_indices = @transform_6, window_bounds = array<i64: 1, 1, 64, 16>}, {transform_indices = @transform_7, window_bounds = array<i64: 1, 1, 64, 16>}, {transform_indices = @transform_8, window_bounds = array<i64: 1, 1, 64, 16>}, {pipeline_mode = #tpu.pipeline_mode<synchronous>, transform_indices = @transform_9, window_bounds = array<i64: 4, 64>}, {transform_indices = @transform_10, window_bounds = array<i64: 1, 64, 64>}, {transform_indices = @transform_11, window_bounds = array<i64: 1, 64, 64>}]} {
    %c0 = arith.constant 0 : index
    %c0_0 = arith.constant 0 : index
    %c0_1 = arith.constant 0 : index
    %0 = vector.load %arg2[%c0, %c0_0, %c0_1] : memref<1x64x64xf32, #tpu.memory_space<vmem>>, vector<1x64x64xf32>
    %1 = vector.shape_cast %0 : vector<1x64x64xf32> to vector<64x64xf32>
    %c0_2 = arith.constant 0 : index
    %c0_3 = arith.constant 0 : index
    %2 = vector.load %arg11[%c0_2, %c0_3] : memref<4x64xf32, #tpu.memory_space<vmem>>, vector<4x64xf32>
    %3 = tpu.iota {dimensions = array<i32: 0>} : vector<64x64xi32>
    %4 = tpu.iota {dimensions = array<i32: 1>} : vector<64x64xi32>
    %c0_4 = arith.constant 0 : index
    %c0_5 = arith.constant 0 : index
    %c0_6 = arith.constant 0 : index
    %c0_7 = arith.constant 0 : index
    %5 = vector.load %arg8[%c0_4, %c0_5, %c0_6, %c0_7] : memref<1x1x64x16xf32, #tpu.memory_space<vmem>>, vector<1x1x64x16xf32>
    %6 = vector.shape_cast %5 : vector<1x1x64x16xf32> to vector<64x16xf32>
    %c0_8 = arith.constant 0 : index
    %c0_9 = arith.constant 0 : index
    %c0_10 = arith.constant 0 : index
    %c0_11 = arith.constant 0 : index
    %7 = vector.load %arg7[%c0_8, %c0_9, %c0_10, %c0_11] : memref<1x1x64x16xf32, #tpu.memory_space<vmem>>, vector<1x1x64x16xf32>
    %8 = vector.shape_cast %7 : vector<1x1x64x16xf32> to vector<64x16xf32>
    %cst = arith.constant dense<0.000000e+00> : vector<64x64xf32>
    %9 = tpu.matmul %6, %8, %cst {dimension_numbers = #tpu.dot_dimension_numbers<[1], [1], [0], [0], [0, 0, 1, 0], [], []>} : vector<64x16xf32>, vector<64x16xf32>, vector<64x64xf32> -> vector<64x64xf32>
    %10 = arith.cmpi sge, %3, %4 : vector<64x64xi32>
    %cst_12 = arith.constant 0.000000e+00 : f32
    %11 = vector.broadcast %cst_12 : f32 to vector<64x64xf32>
    %12 = arith.select %10, %9, %11 : vector<64x64xi1>, vector<64x64xf32>
    %c0_13 = arith.constant 0 : index
    %c0_14 = arith.constant 0 : index
    %c0_15 = arith.constant 0 : index
    %c0_16 = arith.constant 0 : index
    %13 = vector.load %arg5[%c0_13, %c0_14, %c0_15, %c0_16] : memref<1x1x64x4xf32, #tpu.memory_space<vmem>>, vector<1x1x64x4xf32>
    %14 = vector.shape_cast %13 : vector<1x1x64x4xf32> to vector<64x4xf32>
    %cst_17 = arith.constant dense<0xFF800000> : vector<4xf32>
    %15 = vector.multi_reduction <maximumf>, %14, %cst_17 [0] : vector<64x4xf32> to vector<4xf32>
    %16 = vector.shape_cast %15 : vector<4xf32> to vector<1x4xf32>
    %17 = vector.broadcast %16 : vector<1x4xf32> to vector<64x4xf32>
    %18 = arith.subf %17, %14 : vector<64x4xf32>
    %cst_18 = arith.constant 8.000000e+01 : f32
    %19 = vector.broadcast %cst_18 : f32 to vector<64x4xf32>
    %20 = arith.minimumf %18, %19 : vector<64x4xf32>
    %21 = math.exp %20 : vector<64x4xf32>
    %c0_19 = arith.constant 0 : index
    %c0_20 = arith.constant 0 : index
    %c0_21 = arith.constant 0 : index
    %c0_22 = arith.constant 0 : index
    %22 = vector.load %arg3[%c0_19, %c0_20, %c0_21, %c0_22] : memref<1x1x64x4xf32, #tpu.memory_space<vmem>>, vector<1x1x64x4xf32>
    %23 = vector.shape_cast %22 : vector<1x1x64x4xf32> to vector<64x4xf32>
    %24 = arith.mulf %21, %23 : vector<64x4xf32>
    %25 = vector.broadcast %16 : vector<1x4xf32> to vector<64x4xf32>
    %26 = arith.subf %14, %25 : vector<64x4xf32>
    %27 = math.exp %26 : vector<64x4xf32>
    %cst_23 = arith.constant dense<0.000000e+00> : vector<64x64xf32>
    %28 = tpu.matmul %24, %2, %cst_23 {dimension_numbers = #tpu.dot_dimension_numbers<[1], [0], [0], [1], [0, 0, 1, 1], [], []>} : vector<64x4xf32>, vector<4x64xf32>, vector<64x64xf32> -> vector<64x64xf32>
    %cst_24 = arith.constant dense<0.000000e+00> : vector<64x64xf32>
    %29 = tpu.matmul %27, %2, %cst_24 {dimension_numbers = #tpu.dot_dimension_numbers<[1], [0], [0], [1], [0, 0, 1, 1], [], []>} : vector<64x4xf32>, vector<4x64xf32>, vector<64x64xf32> -> vector<64x64xf32>
    %30 = arith.mulf %1, %28 : vector<64x64xf32>
    %cst_25 = arith.constant dense<0.000000e+00> : vector<64x64xf32>
    %31 = tpu.matmul %12, %30, %cst_25 {dimension_numbers = #tpu.dot_dimension_numbers<[1], [0], [0], [1], [0, 0, 1, 1], [], []>} : vector<64x64xf32>, vector<64x64xf32>, vector<64x64xf32> -> vector<64x64xf32>
    %32 = arith.mulf %29, %31 : vector<64x64xf32>
    %c0_26 = arith.constant 0 : index
    %c0_27 = arith.constant 0 : index
    %c0_28 = arith.constant 0 : index
    %c0_29 = arith.constant 0 : index
    %33 = vector.load %arg10[%c0_26, %c0_27, %c0_28, %c0_29] : memref<1x1x64x16xf32, #tpu.memory_space<vmem>>, vector<1x1x64x16xf32>
    %34 = vector.shape_cast %33 : vector<1x1x64x16xf32> to vector<64x16xf32>
    %c0_30 = arith.constant 0 : index
    %c0_31 = arith.constant 0 : index
    %c0_32 = arith.constant 0 : index
    %c0_33 = arith.constant 0 : index
    %35 = vector.load %arg9[%c0_30, %c0_31, %c0_32, %c0_33] : memref<1x1x64x16xf32, #tpu.memory_space<vmem>>, vector<1x1x64x16xf32>
    %36 = vector.shape_cast %35 : vector<1x1x64x16xf32> to vector<64x16xf32>
    %cst_34 = arith.constant dense<0.000000e+00> : vector<64x64xf32>
    %37 = tpu.matmul %34, %36, %cst_34 {dimension_numbers = #tpu.dot_dimension_numbers<[1], [1], [0], [0], [0, 0, 1, 0], [], []>} : vector<64x16xf32>, vector<64x16xf32>, vector<64x64xf32> -> vector<64x64xf32>
    %38 = arith.cmpi sle, %3, %4 : vector<64x64xi32>
    %cst_35 = arith.constant 0.000000e+00 : f32
    %39 = vector.broadcast %cst_35 : f32 to vector<64x64xf32>
    %40 = arith.select %38, %37, %39 : vector<64x64xi1>, vector<64x64xf32>
    %c0_36 = arith.constant 0 : index
    %c0_37 = arith.constant 0 : index
    %c0_38 = arith.constant 0 : index
    %c0_39 = arith.constant 0 : index
    %41 = vector.load %arg6[%c0_36, %c0_37, %c0_38, %c0_39] : memref<1x1x64x4xf32, #tpu.memory_space<vmem>>, vector<1x1x64x4xf32>
    %42 = vector.shape_cast %41 : vector<1x1x64x4xf32> to vector<64x4xf32>
    %cst_40 = arith.constant dense<0xFF800000> : vector<4xf32>
    %43 = vector.multi_reduction <maximumf>, %42, %cst_40 [0] : vector<64x4xf32> to vector<4xf32>
    %44 = vector.shape_cast %43 : vector<4xf32> to vector<1x4xf32>
    %45 = vector.broadcast %44 : vector<1x4xf32> to vector<64x4xf32>
    %46 = arith.subf %45, %42 : vector<64x4xf32>
    %cst_41 = arith.constant 8.000000e+01 : f32
    %47 = vector.broadcast %cst_41 : f32 to vector<64x4xf32>
    %48 = arith.minimumf %46, %47 : vector<64x4xf32>
    %49 = math.exp %48 : vector<64x4xf32>
    %c0_42 = arith.constant 0 : index
    %c0_43 = arith.constant 0 : index
    %c0_44 = arith.constant 0 : index
    %c0_45 = arith.constant 0 : index
    %50 = vector.load %arg4[%c0_42, %c0_43, %c0_44, %c0_45] : memref<1x1x64x4xf32, #tpu.memory_space<vmem>>, vector<1x1x64x4xf32>
    %51 = vector.shape_cast %50 : vector<1x1x64x4xf32> to vector<64x4xf32>
    %52 = arith.mulf %49, %51 : vector<64x4xf32>
    %53 = vector.broadcast %44 : vector<1x4xf32> to vector<64x4xf32>
    %54 = arith.subf %42, %53 : vector<64x4xf32>
    %55 = math.exp %54 : vector<64x4xf32>
    %cst_46 = arith.constant dense<0.000000e+00> : vector<64x64xf32>
    %56 = tpu.matmul %52, %2, %cst_46 {dimension_numbers = #tpu.dot_dimension_numbers<[1], [0], [0], [1], [0, 0, 1, 1], [], []>} : vector<64x4xf32>, vector<4x64xf32>, vector<64x64xf32> -> vector<64x64xf32>
    %cst_47 = arith.constant dense<0.000000e+00> : vector<64x64xf32>
    %57 = tpu.matmul %55, %2, %cst_47 {dimension_numbers = #tpu.dot_dimension_numbers<[1], [0], [0], [1], [0, 0, 1, 1], [], []>} : vector<64x4xf32>, vector<4x64xf32>, vector<64x64xf32> -> vector<64x64xf32>
    %58 = arith.mulf %1, %56 : vector<64x64xf32>
    %cst_48 = arith.constant dense<0.000000e+00> : vector<64x64xf32>
    %59 = tpu.matmul %40, %58, %cst_48 {dimension_numbers = #tpu.dot_dimension_numbers<[1], [0], [0], [1], [0, 0, 1, 1], [], []>} : vector<64x64xf32>, vector<64x64xf32>, vector<64x64xf32> -> vector<64x64xf32>
    %60 = arith.mulf %57, %59 : vector<64x64xf32>
    %cst_49 = arith.constant 0.000000e+00 : f32
    %61 = vector.broadcast %cst_49 : f32 to vector<1x64xf32>
    %62 = vector.extract_strided_slice %32 {offsets = [0, 0], sizes = [63, 64], strides = [1, 1]} : vector<64x64xf32> to vector<63x64xf32>
    %63 = tpu.concatenate %61, %62 in 0 : vector<1x64xf32>, vector<63x64xf32> -> vector<64x64xf32>
    %c0_50 = arith.constant 0 : index
    %c0_51 = arith.constant 0 : index
    %c0_52 = arith.constant 0 : index
    %64 = vector.load %arg12[%c0_50, %c0_51, %c0_52] : memref<1x64x64xf32, #tpu.memory_space<vmem>>, vector<1x64x64xf32>
    %65 = vector.shape_cast %64 : vector<1x64x64xf32> to vector<64x64xf32>
    %66 = vector.shape_cast %63 : vector<64x64xf32> to vector<1x64x64xf32>
    tpu.vector_store %arg12[%c0_50, %c0_51, %c0_52], %66 {strides = array<i32>} : memref<1x64x64xf32, #tpu.memory_space<vmem>>, vector<1x64x64xf32>,
    %67 = vector.extract_strided_slice %60 {offsets = [1, 0], sizes = [63, 64], strides = [1, 1]} : vector<64x64xf32> to vector<63x64xf32>
    %68 = tpu.concatenate %67, %61 in 0 : vector<63x64xf32>, vector<1x64xf32> -> vector<64x64xf32>
    %c0_53 = arith.constant 0 : index
    %c0_54 = arith.constant 0 : index
    %c0_55 = arith.constant 0 : index
    %69 = vector.load %arg13[%c0_53, %c0_54, %c0_55] : memref<1x64x64xf32, #tpu.memory_space<vmem>>, vector<1x64x64xf32>
    %70 = vector.shape_cast %69 : vector<1x64x64xf32> to vector<64x64xf32>
    %71 = vector.shape_cast %68 : vector<64x64xf32> to vector<1x64x64xf32>
    tpu.vector_store %arg13[%c0_53, %c0_54, %c0_55], %71 {strides = array<i32>} : memref<1x64x64xf32, #tpu.memory_space<vmem>>, vector<1x64x64xf32>,
    return
  }
  func.func @transform_0(%arg0: i32, %arg1: i32) -> (i32, i32, i32) {
    %c0_i32 = arith.constant 0 : i32
    %c0_i32_0 = arith.constant 0 : i32
    return %arg0, %c0_i32, %arg1 : i32, i32, i32
  }
  func.func @transform_1(%arg0: i32, %arg1: i32) -> (i32, i32, i32, i32) {
    %c0_i32 = arith.constant 0 : i32
    %c0_i32_0 = arith.constant 0 : i32
    %c0_i32_1 = arith.constant 0 : i32
    return %arg0, %arg1, %c0_i32, %c0_i32_0 : i32, i32, i32, i32
  }
  func.func @transform_2(%arg0: i32, %arg1: i32) -> (i32, i32, i32, i32) {
    %c0_i32 = arith.constant 0 : i32
    %c0_i32_0 = arith.constant 0 : i32
    %c0_i32_1 = arith.constant 0 : i32
    return %arg0, %arg1, %c0_i32, %c0_i32_0 : i32, i32, i32, i32
  }
  func.func @transform_3(%arg0: i32, %arg1: i32) -> (i32, i32, i32, i32) {
    %c0_i32 = arith.constant 0 : i32
    %c0_i32_0 = arith.constant 0 : i32
    %c0_i32_1 = arith.constant 0 : i32
    return %arg0, %arg1, %c0_i32, %c0_i32_0 : i32, i32, i32, i32
  }
  func.func @transform_4(%arg0: i32, %arg1: i32) -> (i32, i32, i32, i32) {
    %c0_i32 = arith.constant 0 : i32
    %c0_i32_0 = arith.constant 0 : i32
    %c0_i32_1 = arith.constant 0 : i32
    return %arg0, %arg1, %c0_i32, %c0_i32_0 : i32, i32, i32, i32
  }
  func.func @transform_5(%arg0: i32, %arg1: i32) -> (i32, i32, i32, i32) {
    %c0_i32 = arith.constant 0 : i32
    %c0_i32_0 = arith.constant 0 : i32
    %c0_i32_1 = arith.constant 0 : i32
    return %arg0, %arg1, %c0_i32, %c0_i32_0 : i32, i32, i32, i32
  }
  func.func @transform_6(%arg0: i32, %arg1: i32) -> (i32, i32, i32, i32) {
    %c0_i32 = arith.constant 0 : i32
    %c0_i32_0 = arith.constant 0 : i32
    %c0_i32_1 = arith.constant 0 : i32
    return %arg0, %arg1, %c0_i32, %c0_i32_0 : i32, i32, i32, i32
  }
  func.func @transform_7(%arg0: i32, %arg1: i32) -> (i32, i32, i32, i32) {
    %c0_i32 = arith.constant 0 : i32
    %c0_i32_0 = arith.constant 0 : i32
    %c0_i32_1 = arith.constant 0 : i32
    return %arg0, %arg1, %c0_i32, %c0_i32_0 : i32, i32, i32, i32
  }
  func.func @transform_8(%arg0: i32, %arg1: i32) -> (i32, i32, i32, i32) {
    %c0_i32 = arith.constant 0 : i32
    %c0_i32_0 = arith.constant 0 : i32
    %c0_i32_1 = arith.constant 0 : i32
    return %arg0, %arg1, %c0_i32, %c0_i32_0 : i32, i32, i32, i32
  }
  func.func @transform_9(%arg0: i32, %arg1: i32) -> (i32, i32) {
    %c0_i32 = arith.constant 0 : i32
    %c0_i32_0 = arith.constant 0 : i32
    %c0_i32_1 = arith.constant 0 : i32
    return %c0_i32, %c0_i32_0 : i32, i32
  }
  func.func @transform_10(%arg0: i32, %arg1: i32) -> (i32, i32, i32) {
    %c0_i32 = arith.constant 0 : i32
    %c0_i32_0 = arith.constant 0 : i32
    return %arg0, %c0_i32, %arg1 : i32, i32, i32
  }
  func.func @transform_11(%arg0: i32, %arg1: i32) -> (i32, i32, i32) {
    %c0_i32 = arith.constant 0 : i32
    %c0_i32_0 = arith.constant 0 : i32
    return %arg0, %c0_i32, %arg1 : i32, i32, i32
  }
}

module attributes {stable_mosaic.version = 11 : i64} {
  func.func @_combine_norm_kernel(%arg0: i32, %arg1: memref<128x64xf32, #tpu.memory_space<vmem>>, %arg2: memref<128x64xf32, #tpu.memory_space<vmem>>, %arg3: memref<128x64xf32, #tpu.memory_space<vmem>>, %arg4: memref<128x64xf32, #tpu.memory_space<vmem>>, %arg5: memref<64x4xf32, #tpu.memory_space<vmem>>, %arg6: memref<4x64xf32, #tpu.memory_space<vmem>>, %arg7: memref<1x64xf32, #tpu.memory_space<vmem>>, %arg8: memref<1x64xf32, #tpu.memory_space<vmem>>, %arg9: memref<128x64xf32, #tpu.memory_space<vmem>>) attributes {dimension_semantics = [#tpu.dimension_semantics<parallel>], iteration_bounds = array<i64: 1>, scalar_prefetch = 0 : i64, scratch_operands = 0 : i64, tpu.core_type = #tpu.core_type<tc>, window_params = [{transform_indices = @transform_0, window_bounds = array<i64: 128, 64>}, {transform_indices = @transform_1, window_bounds = array<i64: 128, 64>}, {transform_indices = @transform_2, window_bounds = array<i64: 128, 64>}, {transform_indices = @transform_3, window_bounds = array<i64: 128, 64>}, {pipeline_mode = #tpu.pipeline_mode<synchronous>, transform_indices = @transform_4, window_bounds = array<i64: 64, 4>}, {pipeline_mode = #tpu.pipeline_mode<synchronous>, transform_indices = @transform_5, window_bounds = array<i64: 4, 64>}, {pipeline_mode = #tpu.pipeline_mode<synchronous>, transform_indices = @transform_6, window_bounds = array<i64: 1, 64>}, {pipeline_mode = #tpu.pipeline_mode<synchronous>, transform_indices = @transform_7, window_bounds = array<i64: 1, 64>}, {transform_indices = @transform_8, window_bounds = array<i64: 128, 64>}]} {
    %c0 = arith.constant 0 : index
    %c0_0 = arith.constant 0 : index
    %0 = vector.load %arg3[%c0, %c0_0] : memref<128x64xf32, #tpu.memory_space<vmem>>, vector<128x64xf32>
    %c0_1 = arith.constant 0 : index
    %c0_2 = arith.constant 0 : index
    %1 = vector.load %arg5[%c0_1, %c0_2] : memref<64x4xf32, #tpu.memory_space<vmem>>, vector<64x4xf32>
    %cst = arith.constant dense<0.000000e+00> : vector<128x4xf32>
    %2 = tpu.matmul %0, %1, %cst {dimension_numbers = #tpu.dot_dimension_numbers<[1], [0], [0], [1], [0, 0, 1, 1], [], []>} : vector<128x64xf32>, vector<64x4xf32>, vector<128x4xf32> -> vector<128x4xf32>
    %c0_3 = arith.constant 0 : index
    %c0_4 = arith.constant 0 : index
    %3 = vector.load %arg6[%c0_3, %c0_4] : memref<4x64xf32, #tpu.memory_space<vmem>>, vector<4x64xf32>
    %cst_5 = arith.constant dense<0.000000e+00> : vector<128x64xf32>
    %4 = tpu.matmul %2, %3, %cst_5 {dimension_numbers = #tpu.dot_dimension_numbers<[1], [0], [0], [1], [0, 0, 1, 1], [], []>} : vector<128x4xf32>, vector<4x64xf32>, vector<128x64xf32> -> vector<128x64xf32>
    %c0_6 = arith.constant 0 : index
    %c0_7 = arith.constant 0 : index
    %5 = vector.load %arg7[%c0_6, %c0_7] : memref<1x64xf32, #tpu.memory_space<vmem>>, vector<1x64xf32>
    %6 = vector.broadcast %5 : vector<1x64xf32> to vector<128x64xf32>
    %7 = arith.addf %4, %6 : vector<128x64xf32>
    %c0_8 = arith.constant 0 : index
    %c0_9 = arith.constant 0 : index
    %8 = vector.load %arg1[%c0_8, %c0_9] : memref<128x64xf32, #tpu.memory_space<vmem>>, vector<128x64xf32>
    %c0_10 = arith.constant 0 : index
    %c0_11 = arith.constant 0 : index
    %9 = vector.load %arg2[%c0_10, %c0_11] : memref<128x64xf32, #tpu.memory_space<vmem>>, vector<128x64xf32>
    %10 = arith.addf %8, %9 : vector<128x64xf32>
    %11 = arith.mulf %0, %7 : vector<128x64xf32>
    %12 = arith.addf %10, %11 : vector<128x64xf32>
    %13 = arith.mulf %12, %12 : vector<128x64xf32>
    %cst_12 = arith.constant dense<0.000000e+00> : vector<128xf32>
    %14 = vector.multi_reduction <add>, %13, %cst_12 [1] : vector<128x64xf32> to vector<128xf32>
    %15 = vector.shape_cast %14 : vector<128xf32> to vector<128x1xf32>
    %cst_13 = arith.constant 6.400000e+01 : f32
    %16 = vector.broadcast %cst_13 : f32 to vector<128x1xf32>
    %17 = arith.divf %15, %16 : vector<128x1xf32>
    %cst_14 = arith.constant 9.99999974E-6 : f32
    %18 = vector.broadcast %cst_14 : f32 to vector<128x1xf32>
    %19 = arith.addf %17, %18 : vector<128x1xf32>
    %20 = math.rsqrt %19 : vector<128x1xf32>
    %21 = vector.broadcast %20 : vector<128x1xf32> to vector<128x64xf32>
    %22 = arith.mulf %12, %21 : vector<128x64xf32>
    %c0_15 = arith.constant 0 : index
    %c0_16 = arith.constant 0 : index
    %23 = vector.load %arg8[%c0_15, %c0_16] : memref<1x64xf32, #tpu.memory_space<vmem>>, vector<1x64xf32>
    %24 = vector.broadcast %23 : vector<1x64xf32> to vector<128x64xf32>
    %25 = arith.mulf %22, %24 : vector<128x64xf32>
    %c0_17 = arith.constant 0 : index
    %c0_18 = arith.constant 0 : index
    %26 = vector.load %arg4[%c0_17, %c0_18] : memref<128x64xf32, #tpu.memory_space<vmem>>, vector<128x64xf32>
    %27 = arith.negf %26 : vector<128x64xf32>
    %28 = math.exp %27 : vector<128x64xf32>
    %cst_19 = arith.constant 1.000000e+00 : f32
    %29 = vector.broadcast %cst_19 : f32 to vector<128x64xf32>
    %30 = arith.addf %29, %28 : vector<128x64xf32>
    %31 = arith.divf %29, %30 : vector<128x64xf32>
    %32 = arith.mulf %26, %31 : vector<128x64xf32>
    %33 = arith.mulf %25, %32 : vector<128x64xf32>
    %c0_20 = arith.constant 0 : index
    %c0_21 = arith.constant 0 : index
    %34 = vector.load %arg9[%c0_20, %c0_21] : memref<128x64xf32, #tpu.memory_space<vmem>>, vector<128x64xf32>
    tpu.vector_store %arg9[%c0_20, %c0_21], %33 {strides = array<i32>} : memref<128x64xf32, #tpu.memory_space<vmem>>, vector<128x64xf32>,
    return
  }
  func.func @transform_0(%arg0: i32) -> (i32, i32) {
    %c0_i32 = arith.constant 0 : i32
    %c0_i32_0 = arith.constant 0 : i32
    return %arg0, %c0_i32 : i32, i32
  }
  func.func @transform_1(%arg0: i32) -> (i32, i32) {
    %c0_i32 = arith.constant 0 : i32
    %c0_i32_0 = arith.constant 0 : i32
    return %arg0, %c0_i32 : i32, i32
  }
  func.func @transform_2(%arg0: i32) -> (i32, i32) {
    %c0_i32 = arith.constant 0 : i32
    %c0_i32_0 = arith.constant 0 : i32
    return %arg0, %c0_i32 : i32, i32
  }
  func.func @transform_3(%arg0: i32) -> (i32, i32) {
    %c0_i32 = arith.constant 0 : i32
    %c0_i32_0 = arith.constant 0 : i32
    return %arg0, %c0_i32 : i32, i32
  }
  func.func @transform_4(%arg0: i32) -> (i32, i32) {
    %c0_i32 = arith.constant 0 : i32
    %c0_i32_0 = arith.constant 0 : i32
    %c0_i32_1 = arith.constant 0 : i32
    return %c0_i32, %c0_i32_0 : i32, i32
  }
  func.func @transform_5(%arg0: i32) -> (i32, i32) {
    %c0_i32 = arith.constant 0 : i32
    %c0_i32_0 = arith.constant 0 : i32
    %c0_i32_1 = arith.constant 0 : i32
    return %c0_i32, %c0_i32_0 : i32, i32
  }
  func.func @transform_6(%arg0: i32) -> (i32, i32) {
    %c0_i32 = arith.constant 0 : i32
    %c0_i32_0 = arith.constant 0 : i32
    %c0_i32_1 = arith.constant 0 : i32
    return %c0_i32, %c0_i32_0 : i32, i32
  }
  func.func @transform_7(%arg0: i32) -> (i32, i32) {
    %c0_i32 = arith.constant 0 : i32
    %c0_i32_0 = arith.constant 0 : i32
    %c0_i32_1 = arith.constant 0 : i32
    return %c0_i32, %c0_i32_0 : i32, i32
  }
  func.func @transform_8(%arg0: i32) -> (i32, i32) {
    %c0_i32 = arith.constant 0 : i32
    %c0_i32_0 = arith.constant 0 : i32
    return %arg0, %c0_i32 : i32, i32
  }
}

module attributes {stable_mosaic.version = 11 : i64} {
  func.func @_matmul_kernel(%arg0: i32, %arg1: i32, %arg2: i32, %arg3: memref<128x64xf32, #tpu.memory_space<vmem>>, %arg4: memref<64x32xf32, #tpu.memory_space<vmem>>, %arg5: memref<128x32xf32, #tpu.memory_space<vmem>>, %arg6: memref<128x32xf32, #tpu.memory_space<vmem>>) attributes {dimension_semantics = [#tpu.dimension_semantics<parallel>, #tpu.dimension_semantics<parallel>, #tpu.dimension_semantics<arbitrary>], iteration_bounds = array<i64: 1, 1, 1>, scalar_prefetch = 0 : i64, scratch_operands = 1 : i64, tpu.core_type = #tpu.core_type<tc>, window_params = [{transform_indices = @transform_0, window_bounds = array<i64: 128, 64>}, {transform_indices = @transform_1, window_bounds = array<i64: 64, 32>}, {transform_indices = @transform_2, window_bounds = array<i64: 128, 32>}]} {
    %c0_i32 = arith.constant 0 : i32
    %0 = arith.cmpi eq, %arg2, %c0_i32 : i32
    %1 = arith.extui %0 : i1 to i32
    %c0_i32_0 = arith.constant 0 : i32
    %2 = arith.cmpi ne, %1, %c0_i32_0 : i32
    scf.if %2 {
      %cst_10 = arith.constant 0.000000e+00 : f32
      %12 = vector.broadcast %cst_10 : f32 to vector<128x32xf32>
      %c0_11 = arith.constant 0 : index
      %c0_12 = arith.constant 0 : index
      %13 = vector.load %arg6[%c0_11, %c0_12] : memref<128x32xf32, #tpu.memory_space<vmem>>, vector<128x32xf32>
      tpu.vector_store %arg6[%c0_11, %c0_12], %12 {strides = array<i32>} : memref<128x32xf32, #tpu.memory_space<vmem>>, vector<128x32xf32>,
    } else {
    }
    %c0 = arith.constant 0 : index
    %c0_1 = arith.constant 0 : index
    %3 = vector.load %arg6[%c0, %c0_1] : memref<128x32xf32, #tpu.memory_space<vmem>>, vector<128x32xf32>
    %c0_2 = arith.constant 0 : index
    %c0_3 = arith.constant 0 : index
    %4 = vector.load %arg3[%c0_2, %c0_3] : memref<128x64xf32, #tpu.memory_space<vmem>>, vector<128x64xf32>
    %c0_4 = arith.constant 0 : index
    %c0_5 = arith.constant 0 : index
    %5 = vector.load %arg4[%c0_4, %c0_5] : memref<64x32xf32, #tpu.memory_space<vmem>>, vector<64x32xf32>
    %cst = arith.constant dense<0.000000e+00> : vector<128x32xf32>
    %6 = tpu.matmul %4, %5, %cst {dimension_numbers = #tpu.dot_dimension_numbers<[1], [0], [0], [1], [0, 0, 1, 1], [], []>} : vector<128x64xf32>, vector<64x32xf32>, vector<128x32xf32> -> vector<128x32xf32>
    %7 = arith.addf %3, %6 : vector<128x32xf32>
    %c0_6 = arith.constant 0 : index
    %c0_7 = arith.constant 0 : index
    %8 = vector.load %arg6[%c0_6, %c0_7] : memref<128x32xf32, #tpu.memory_space<vmem>>, vector<128x32xf32>
    tpu.vector_store %arg6[%c0_6, %c0_7], %7 {strides = array<i32>} : memref<128x32xf32, #tpu.memory_space<vmem>>, vector<128x32xf32>,
    %c0_i32_8 = arith.constant 0 : i32
    %9 = arith.cmpi eq, %arg2, %c0_i32_8 : i32
    %10 = arith.extui %9 : i1 to i32
    %c0_i32_9 = arith.constant 0 : i32
    %11 = arith.cmpi ne, %10, %c0_i32_9 : i32
    scf.if %11 {
      %c0_10 = arith.constant 0 : index
      %c0_11 = arith.constant 0 : index
      %12 = vector.load %arg6[%c0_10, %c0_11] : memref<128x32xf32, #tpu.memory_space<vmem>>, vector<128x32xf32>
      %c0_12 = arith.constant 0 : index
      %c0_13 = arith.constant 0 : index
      %13 = vector.load %arg5[%c0_12, %c0_13] : memref<128x32xf32, #tpu.memory_space<vmem>>, vector<128x32xf32>
      tpu.vector_store %arg5[%c0_12, %c0_13], %12 {strides = array<i32>} : memref<128x32xf32, #tpu.memory_space<vmem>>, vector<128x32xf32>,
    } else {
    }
    return
  }
  func.func @transform_0(%arg0: i32, %arg1: i32, %arg2: i32) -> (i32, i32) {
    %c0_i32 = arith.constant 0 : i32
    return %arg0, %arg2 : i32, i32
  }
  func.func @transform_1(%arg0: i32, %arg1: i32, %arg2: i32) -> (i32, i32) {
    %c0_i32 = arith.constant 0 : i32
    return %arg2, %arg1 : i32, i32
  }
  func.func @transform_2(%arg0: i32, %arg1: i32, %arg2: i32) -> (i32, i32) {
    %c0_i32 = arith.constant 0 : i32
    return %arg0, %arg1 : i32, i32
  }
}

</mosaic_0001>

<llo_original>
// kernel: _lambda_.6
$region0: #{_lambda_.6}
  #allocation0 [shape = 'u32[]', space=smem, size = 0x4, offset = 0x4, fixed_abs, tag = 'smem constant byte address 0x4 - core index']
  #allocation1 [shape = 'u32[72,128]{1,0:T(1,128)}', space=vmem, size = 0x9000, scoped, tag = 'internal scratch']
  %s0 = inlined_call_operand.vmem [shape: f32[2,64,128], index: 0, kind: input, shape index: {}]
  %s1 = inlined_call_operand.vmem [shape: f32[7,128], index: 1, kind: input, shape index: {}]
  %s2 = inlined_call_operand.vmem [shape: f32[1,128], index: 2, kind: input, shape index: {}]
  %s3 = inlined_call_operand.vmem [shape: f32[2,64,128], index: 3, kind: output, shape index: {}]
  %s4 = sld [smem:[#allocation0]]
  $region45: #{_lambda_.6} parent=0
    _
  %s6 = ssub.s32 1, %s4
  %s7 = scalar_select 0, %s6, %s4
  loop: start=0, step=1, limit=4
  $region2: #{_lambda_.6} parent=0 // loop_pre_header
    _
  $region3: #{_lambda_.6} parent=0 // loop_header
    %s9 = sphi 0, %s13
    %p10 = scmp.ge.s32.totalorder %s9, 4
    %s16 = sphi 0, %s28
    %s17 = sphi 0, %s24
    %s18 = sphi 0, %s16
    %s19 = sphi 0, %s17
    %s20 = sphi 0, %s18
    %s21 = sphi 0, %s19
    %s33 = sphi 0, %s35
    %s36 = sphi 0, %s33
    %s37 = sphi 0, %s36
    %s53 = sphi 0, %s37
    %s59 = sphi 0, %s61
    %s62 = sphi 0, %s59
    %s63 = sphi 0, %s62
    %s79 = sphi 0, %s63
    %s85 = sphi 0, %s87
    %s88 = sphi 0, %s85
    %s89 = sphi 0, %s88
    %s105 = sphi 0, %s89
    %s113 = sphi 0, %s115
    %s116 = sphi 0, %s113
    %s117 = sphi 0, %s116
    %s133 = sphi 0, %s117
  $region4: #{_lambda_.6} parent=0 // loop_header_branch
    %12 = sbr.rel (%p10) target = $region8
  $region5: #{_lambda_.6} parent=0 // loop_body
    %s14 = ssub.s32 %s9, 1
    %s15 = ssub.s32 %s9, 2
    %s22 = sadd.s32 1, %s17
    %p23 = scmp.ge.s32.totalorder %s22, 1
    %s24 = scalar_select %p23, 0, %s22
    %s25 = sadd.s32 1, %s16
    %s26 = scalar_select %p23, %s25, %s16
    %p27 = scmp.ge.s32.totalorder %s26, 2
    %s28 = scalar_select %p27, 0, %s26
    %s29 = ssub.s32 %s16, %s28
    %s30 = ssub.s32 %s17, %s24
    %s31 = sor.u32 %s29, %s30
    %p32 = scmp.eq.s32.totalorder %s31, 0
    %s34 = sadd.s32 %s33, 1
    %s35 = scalar_select %p32, %s33, %s34
    %p38 = pneg %p32
    %p39 = scmp.eq.s32.totalorder %s9, 1
    %p40 = por %p38, %p39
    %p41 = scmp.ne.s32.totalorder %s33, %s36
    %p42 = scmp.eq.s32.totalorder %s9, 0
    %p43 = por %p41, %p42
    %p44 = scmp.ne.s32.totalorder %s33, %s36
    %p45 = scmp.eq.s32.totalorder %s14, 1
    %p46 = por %p44, %p45
    %p47 = scmp.ne.s32.totalorder %s36, %s37
    %p48 = scmp.eq.s32.totalorder %s14, 0
    %p49 = por %p47, %p48
    %p50 = scmp.ne.s32.totalorder %s36, %s37
    %p51 = scmp.eq.s32.totalorder %s15, 1
    %p52 = por %p50, %p51
    %p54 = scmp.ne.s32.totalorder %s37, %s53
    %p55 = scmp.eq.s32.totalorder %s15, 0
    %p56 = por %p54, %p55
    %s57 = ssub.s32 %s17, %s24
    %p58 = scmp.eq.s32.totalorder %s57, 0
    %s60 = sadd.s32 %s59, 1
    %s61 = scalar_select %p58, %s59, %s60
    %p64 = pneg %p58
    %p65 = scmp.eq.s32.totalorder %s9, 1
    %p66 = por %p64, %p65
    %p67 = scmp.ne.s32.totalorder %s59, %s62
    %p68 = scmp.eq.s32.totalorder %s9, 0
    %p69 = por %p67, %p68
    %p70 = scmp.ne.s32.totalorder %s59, %s62
    %p71 = scmp.eq.s32.totalorder %s14, 1
    %p72 = por %p70, %p71
    %p73 = scmp.ne.s32.totalorder %s62, %s63
    %p74 = scmp.eq.s32.totalorder %s14, 0
    %p75 = por %p73, %p74
    %p76 = scmp.ne.s32.totalorder %s62, %s63
    %p77 = scmp.eq.s32.totalorder %s15, 1
    %p78 = por %p76, %p77
    %p80 = scmp.ne.s32.totalorder %s63, %s79
    %p81 = scmp.eq.s32.totalorder %s15, 0
    %p82 = por %p80, %p81
    %s83 = ssub.s32 %s17, %s24
    %p84 = scmp.eq.s32.totalorder %s83, 0
    %s86 = sadd.s32 %s85, 1
    %s87 = scalar_select %p84, %s85, %s86
    %p90 = pneg %p84
    %p91 = scmp.eq.s32.totalorder %s9, 1
    %p92 = por %p90, %p91
    %p93 = scmp.ne.s32.totalorder %s85, %s88
    %p94 = scmp.eq.s32.totalorder %s9, 0
    %p95 = por %p93, %p94
    %p96 = scmp.ne.s32.totalorder %s85, %s88
    %p97 = scmp.eq.s32.totalorder %s14, 1
    %p98 = por %p96, %p97
    %p99 = scmp.ne.s32.totalorder %s88, %s89
    %p100 = scmp.eq.s32.totalorder %s14, 0
    %p101 = por %p99, %p100
    %p102 = scmp.ne.s32.totalorder %s88, %s89
    %p103 = scmp.eq.s32.totalorder %s15, 1
    %p104 = por %p102, %p103
    %p106 = scmp.ne.s32.totalorder %s89, %s105
    %p107 = scmp.eq.s32.totalorder %s15, 0
    %p108 = por %p106, %p107
    %s109 = ssub.s32 %s16, %s28
    %s110 = ssub.s32 %s17, %s24
    %s111 = sor.u32 %s109, %s110
    %p112 = scmp.eq.s32.totalorder %s111, 0
    %s114 = sadd.s32 %s113, 1
    %s115 = scalar_select %p112, %s113, %s114
    %p118 = pneg %p112
    %p119 = scmp.eq.s32.totalorder %s9, 1
    %p120 = por %p118, %p119
    %p121 = scmp.ne.s32.totalorder %s113, %s116
    %p122 = scmp.eq.s32.totalorder %s9, 0
    %p123 = por %p121, %p122
    %p124 = scmp.ne.s32.totalorder %s113, %s116
    %p125 = scmp.eq.s32.totalorder %s14, 1
    %p126 = por %p124, %p125
    %p127 = scmp.ne.s32.totalorder %s116, %s117
    %p128 = scmp.eq.s32.totalorder %s14, 0
    %p129 = por %p127, %p128
    %p130 = scmp.ne.s32.totalorder %s116, %s117
    %p131 = scmp.eq.s32.totalorder %s15, 1
    %p132 = por %p130, %p131
    %p134 = scmp.ne.s32.totalorder %s117, %s133
    %p135 = scmp.eq.s32.totalorder %s15, 0
    %p136 = por %p134, %p135
    %p137 = scmp.le.s32.totalorder 1, %s9
    %p138 = scmp.lt.s32.totalorder %s9, 3
    %p139 = pnand %p137, %p138
    %p140 = pneg %p139
    // Predicated region
    $region9: #{_lambda_.6} parent=5 // pred_check
      _
    $region10: #{_lambda_.6} parent=5 // pred_check_branch
      %142 = sbr.rel (%p139) target = $region12
    $region11: #{_lambda_.6} parent=5 // pred_region
      %s143 = ssub.s32 %s9, 1
      // Predicated region
      $region13: #{_lambda_.6} parent=11 // pred_check
        %p144 = pneg %p75
      $region14: #{_lambda_.6} parent=11 // pred_check_branch
        %146 = sbr.rel (%p144) target = $region16
      $region15: #{_lambda_.6} parent=11 // pred_region
        %p147 = scmp.lt.s32.totalorder %s19, 0
        %s148 = scalar_select %p147, %s19, 0
        %s149 = smul.addr %s148, 8
        %s150 = scalar_lea.vmem %s1, %s149
      $region16: #{_lambda_.6} parent=11 // pred_fallthru
        _
      // Predicated region
      $region17: #{_lambda_.6} parent=11 // pred_check
        %p151 = pneg %p101
      $region18: #{_lambda_.6} parent=11 // pred_check_branch
        %153 = sbr.rel (%p151) target = $region20
      $region19: #{_lambda_.6} parent=11 // pred_region
        %p154 = scmp.lt.s32.totalorder %s19, 0
        %s155 = scalar_select %p154, %s19, 0
        %s156 = scalar_lea.vmem %s2, %s155
      $region20: #{_lambda_.6} parent=11 // pred_fallthru
        _
    $region12: #{_lambda_.6} parent=5 // pred_fallthru
      _
    %p157 = scmp.lt.s32.totalorder %s9, 2
    // Predicated region
    $region21: #{_lambda_.6} parent=5 // pred_check
      %p158 = pneg %p157
    $region22: #{_lambda_.6} parent=5 // pred_check_branch
      %160 = sbr.rel (%p158) target = $region24
    $region23: #{_lambda_.6} parent=5 // pred_region
      // Predicated region
      $region25: #{_lambda_.6} parent=23 // pred_check
        %p161 = pneg %p43
      $region26: #{_lambda_.6} parent=23 // pred_check_branch
        %163 = sbr.rel (%p161) target = $region28
      $region27: #{_lambda_.6} parent=23 // pred_region
        %p164 = scmp.lt.s32.totalorder %s16, 1
        %s165 = scalar_select %p164, %s16, 1
        %p166 = scmp.lt.s32.totalorder %s17, 0
        %s167 = scalar_select %p166, %s17, 0
        %s168 = smul.addr %s165, 8
        %s169 = sadd.s32 %s167, %s168
        %s170 = smul.addr %s169, 8
        %s171 = scalar_lea.vmem %s0, %s170
      $region28: #{_lambda_.6} parent=23 // pred_fallthru
        _
    $region24: #{_lambda_.6} parent=5 // pred_fallthru
      _
    %p172 = scmp.le.s32.totalorder 1, %s9
    %p173 = scmp.lt.s32.totalorder %s9, 3
    %p174 = pnand %p172, %p173
    %p175 = pneg %p174
    // Predicated region
    $region29: #{_lambda_.6} parent=5 // pred_check
      _
    $region30: #{_lambda_.6} parent=5 // pred_check_branch
      %177 = sbr.rel (%p174) target = $region32
    $region31: #{_lambda_.6} parent=5 // pred_region
      %s178 = ssub.s32 %s9, 1
      %p179 = scmp.lt.s32.totalorder %s18, 1
      %s180 = scalar_select %p179, %s18, 1
      %p181 = scmp.lt.s32.totalorder %s19, 0
      %s182 = scalar_select %p181, %s19, 0
      %s183 = smul.addr %s180, 8
      %s184 = sadd.s32 %s182, %s183
      %s185 = smul.addr %s184, 8
      %s186 = scalar_lea.vmem %s0, %s185
      %p187 = pneg %p49
      %p188 = pneg %p46
      %p189 = scmp.lt.s32.totalorder %s19, 0
      %s190 = scalar_select %p189, %s19, 0
      %s191 = smul.addr %s190, 8
      %s192 = scalar_lea.vmem %s1, %s191
      %p193 = pneg %p75
      %p194 = pneg %p72
      %p195 = scmp.lt.s32.totalorder %s19, 0
      %s196 = scalar_select %p195, %s19, 0
      %s197 = scalar_lea.vmem %s2, %s196
      %p198 = pneg %p101
      %p199 = pneg %p98
      %p200 = pneg %p129
      %p201 = pneg %p126
      %p202 = scmp.lt.s32.totalorder %s18, 1
      %s203 = scalar_select %p202, %s18, 1
      %p204 = scmp.lt.s32.totalorder %s19, 0
      %s205 = scalar_select %p204, %s19, 0
      %s206 = smul.addr %s203, 8
      %s207 = sadd.s32 %s205, %s206
      %s208 = smul.addr %s207, 8
      %s209 = scalar_lea.vmem %s3, %s208
      %p210 = scmp.lt.s32.totalorder %s18, 1
      %s211 = scalar_select %p210, %s18, 1
      %p212 = scmp.lt.s32.totalorder %s19, 0
      %s213 = scalar_select %p212, %s19, 0
      %s214 = smul.addr %s211, 8
      %s215 = sadd.s32 %s213, %s214
      %s216 = smul.addr %s215, 8
      %s217 = scalar_lea.vmem %s0, %s216
      %p218 = scmp.lt.s32.totalorder %s19, 0
      %s219 = scalar_select %p218, %s19, 0
      %s220 = smul.addr %s219, 8
      %s221 = scalar_lea.vmem %s1, %s220
      %p222 = scmp.lt.s32.totalorder %s19, 0
      %s223 = scalar_select %p222, %s19, 0
      %s224 = scalar_lea.vmem %s2, %s223
      %p225 = scmp.lt.s32.totalorder %s18, 1
      %s226 = scalar_select %p225, %s18, 1
      %p227 = scmp.lt.s32.totalorder %s19, 0
      %s228 = scalar_select %p227, %s19, 0
      %s229 = smul.addr %s226, 8
      %s230 = sadd.s32 %s228, %s229
      %s231 = smul.addr %s230, 8
      %s232 = scalar_lea.vmem %s3, %s231
      %v233 = vld [vmem:[%s217] sm:$0xff]
      %v234 = vld [vmem:[%s217 + $0x8] sm:$0xff]
      %v235 = vld [vmem:[%s217 + $0x10] sm:$0xff]
      %v236 = vld [vmem:[%s217 + $0x18] sm:$0xff]
      %v237 = vld [vmem:[%s217 + $0x20] sm:$0xff]
      %v238 = vld [vmem:[%s217 + $0x28] sm:$0xff]
      %v239 = vld [vmem:[%s217 + $0x30] sm:$0xff]
      %v240 = vld [vmem:[%s217 + $0x38] sm:$0xff]
      %v241 = vld [vmem:[%s221] sm:$0x7f]
      %vm250 = vcmask 1042432
      %v251 = vrot.slane %v233, 5
      %v252 = vrot.slane %v234, 5
      %v253 = vsel %vm250, %v251, %v252
      %v254 = vrot.slane %v235, 5
      %v255 = vsel %vm250, %v252, %v254
      %v256 = vrot.slane %v236, 5
      %v257 = vsel %vm250, %v254, %v256
      %v258 = vrot.slane %v237, 5
      %v259 = vsel %vm250, %v256, %v258
      %v260 = vrot.slane %v238, 5
      %v261 = vsel %vm250, %v258, %v260
      %v262 = vrot.slane %v239, 5
      %v263 = vsel %vm250, %v260, %v262
      %v264 = vrot.slane %v240, 5
      %v265 = vsel %vm250, %v262, %v264
      %v275 = vsel %vm250, 0.0, %v251
      %v276 = vsel %vm250, %v264, 0.0
      %v277 = vperm.slane %v241, 0
      %v278 = vmul.f32 %v275, %v277
      %v279 = vmul.f32 %v253, %v277
      %v280 = vmul.f32 %v255, %v277
      %v281 = vmul.f32 %v257, %v277
      %v282 = vmul.f32 %v259, %v277
      %v283 = vmul.f32 %v261, %v277
      %v284 = vmul.f32 %v263, %v277
      %v285 = vmul.f32 %v265, %v277
      %v286 = vadd.f32 %v278, 0.0
      %v287 = vadd.f32 %v279, 0.0
      %v288 = vadd.f32 %v280, 0.0
      %v289 = vadd.f32 %v281, 0.0
      %v290 = vadd.f32 %v282, 0.0
      %v291 = vadd.f32 %v283, 0.0
      %v292 = vadd.f32 %v284, 0.0
      %v293 = vadd.f32 %v285, 0.0
      %v294 = vperm.slane %v241, 1
      %v295 = vmul.f32 %v275, %v294
      %v296 = vmul.f32 %v253, %v294
      %v297 = vmul.f32 %v255, %v294
      %v298 = vmul.f32 %v257, %v294
      %v299 = vmul.f32 %v259, %v294
      %v300 = vmul.f32 %v261, %v294
      %v301 = vmul.f32 %v263, %v294
      %v302 = vmul.f32 %v265, %v294
      %v303 = vmul.f32 %v276, %v294
      %vm313 = vcmask 1046528
      %v314 = vrot.slane %v295, 1
      %v315 = vrot.slane %v296, 1
      %v316 = vsel %vm313, %v314, %v315
      %v317 = vrot.slane %v297, 1
      %v318 = vsel %vm313, %v315, %v317
      %v319 = vrot.slane %v298, 1
      %v320 = vsel %vm313, %v317, %v319
      %v321 = vrot.slane %v299, 1
      %v322 = vsel %vm313, %v319, %v321
      %v323 = vrot.slane %v300, 1
      %v324 = vsel %vm313, %v321, %v323
      %v325 = vrot.slane %v301, 1
      %v326 = vsel %vm313, %v323, %v325
      %v327 = vrot.slane %v302, 1
      %v328 = vsel %vm313, %v325, %v327
      %v329 = vrot.slane %v303, 1
      %v330 = vsel %vm313, %v327, %v329
      %v339 = vadd.f32 %v286, %v316
      %v340 = vadd.f32 %v287, %v318
      %v341 = vadd.f32 %v288, %v320
      %v342 = vadd.f32 %v289, %v322
      %v343 = vadd.f32 %v290, %v324
      %v344 = vadd.f32 %v291, %v326
      %v345 = vadd.f32 %v292, %v328
      %v346 = vadd.f32 %v293, %v330
      %v347 = vperm.slane %v241, 2
      %v348 = vmul.f32 %v275, %v347
      %v349 = vmul.f32 %v253, %v347
      %v350 = vmul.f32 %v255, %v347
      %v351 = vmul.f32 %v257, %v347
      %v352 = vmul.f32 %v259, %v347
      %v353 = vmul.f32 %v261, %v347
      %v354 = vmul.f32 %v263, %v347
      %v355 = vmul.f32 %v265, %v347
      %v356 = vmul.f32 %v276, %v347
      %vm366 = vcmask 1045504
      %v367 = vrot.slane %v348, 2
      %v368 = vrot.slane %v349, 2
      %v369 = vsel %vm366, %v367, %v368
      %v370 = vrot.slane %v350, 2
      %v371 = vsel %vm366, %v368, %v370
      %v372 = vrot.slane %v351, 2
      %v373 = vsel %vm366, %v370, %v372
      %v374 = vrot.slane %v352, 2
      %v375 = vsel %vm366, %v372, %v374
      %v376 = vrot.slane %v353, 2
      %v377 = vsel %vm366, %v374, %v376
      %v378 = vrot.slane %v354, 2
      %v379 = vsel %vm366, %v376, %v378
      %v380 = vrot.slane %v355, 2
      %v381 = vsel %vm366, %v378, %v380
      %v382 = vrot.slane %v356, 2
      %v383 = vsel %vm366, %v380, %v382
      %v392 = vadd.f32 %v339, %v369
      %v393 = vadd.f32 %v340, %v371
      %v394 = vadd.f32 %v341, %v373
      %v395 = vadd.f32 %v342, %v375
      %v396 = vadd.f32 %v343, %v377
      %v397 = vadd.f32 %v344, %v379
      %v398 = vadd.f32 %v345, %v381
      %v399 = vadd.f32 %v346, %v383
      %v400 = vperm.slane %v241, 3
      %v401 = vmul.f32 %v275, %v400
      %v402 = vmul.f32 %v253, %v400
      %v403 = vmul.f32 %v255, %v400
      %v404 = vmul.f32 %v257, %v400
      %v405 = vmul.f32 %v259, %v400
      %v406 = vmul.f32 %v261, %v400
      %v407 = vmul.f32 %v263, %v400
      %v408 = vmul.f32 %v265, %v400
      %v409 = vmul.f32 %v276, %v400
      %vm419 = vcmask 1044480
      %v420 = vrot.slane %v401, 3
      %v421 = vrot.slane %v402, 3
      %v422 = vsel %vm419, %v420, %v421
      %v423 = vrot.slane %v403, 3
      %v424 = vsel %vm419, %v421, %v423
      %v425 = vrot.slane %v404, 3
      %v426 = vsel %vm419, %v423, %v425
      %v427 = vrot.slane %v405, 3
      %v428 = vsel %vm419, %v425, %v427
      %v429 = vrot.slane %v406, 3
      %v430 = vsel %vm419, %v427, %v429
      %v431 = vrot.slane %v407, 3
      %v432 = vsel %vm419, %v429, %v431
      %v433 = vrot.slane %v408, 3
      %v434 = vsel %vm419, %v431, %v433
      %v435 = vrot.slane %v409, 3
      %v436 = vsel %vm419, %v433, %v435
      %v445 = vadd.f32 %v392, %v422
      %v446 = vadd.f32 %v393, %v424
      %v447 = vadd.f32 %v394, %v426
      %v448 = vadd.f32 %v395, %v428
      %v449 = vadd.f32 %v396, %v430
      %v450 = vadd.f32 %v397, %v432
      %v451 = vadd.f32 %v398, %v434
      %v452 = vadd.f32 %v399, %v436
      %v453 = vperm.slane %v241, 4
      %v454 = vmul.f32 %v275, %v453
      %v455 = vmul.f32 %v253, %v453
      %v456 = vmul.f32 %v255, %v453
      %v457 = vmul.f32 %v257, %v453
      %v458 = vmul.f32 %v259, %v453
      %v459 = vmul.f32 %v261, %v453
      %v460 = vmul.f32 %v263, %v453
      %v461 = vmul.f32 %v265, %v453
      %v462 = vmul.f32 %v276, %v453
      %vm472 = vcmask 1043456
      %v473 = vrot.slane %v454, 4
      %v474 = vrot.slane %v455, 4
      %v475 = vsel %vm472, %v473, %v474
      %v476 = vrot.slane %v456, 4
      %v477 = vsel %vm472, %v474, %v476
      %v478 = vrot.slane %v457, 4
      %v479 = vsel %vm472, %v476, %v478
      %v480 = vrot.slane %v458, 4
      %v481 = vsel %vm472, %v478, %v480
      %v482 = vrot.slane %v459, 4
      %v483 = vsel %vm472, %v480, %v482
      %v484 = vrot.slane %v460, 4
      %v485 = vsel %vm472, %v482, %v484
      %v486 = vrot.slane %v461, 4
      %v487 = vsel %vm472, %v484, %v486
      %v488 = vrot.slane %v462, 4
      %v489 = vsel %vm472, %v486, %v488
      %v498 = vadd.f32 %v445, %v475
      %v499 = vadd.f32 %v446, %v477
      %v500 = vadd.f32 %v447, %v479
      %v501 = vadd.f32 %v448, %v481
      %v502 = vadd.f32 %v449, %v483
      %v503 = vadd.f32 %v450, %v485
      %v504 = vadd.f32 %v451, %v487
      %v505 = vadd.f32 %v452, %v489
      %v506 = vperm.slane %v241, 5
      %v507 = vmul.f32 %v275, %v506
      %v508 = vmul.f32 %v253, %v506
      %v509 = vmul.f32 %v255, %v506
      %v510 = vmul.f32 %v257, %v506
      %v511 = vmul.f32 %v259, %v506
      %v512 = vmul.f32 %v261, %v506
      %v513 = vmul.f32 %v263, %v506
      %v514 = vmul.f32 %v265, %v506
      %v515 = vmul.f32 %v276, %v506
      %v525 = vrot.slane %v507, 5
      %v526 = vrot.slane %v508, 5
      %v527 = vsel %vm250, %v525, %v526
      %v528 = vrot.slane %v509, 5
      %v529 = vsel %vm250, %v526, %v528
      %v530 = vrot.slane %v510, 5
      %v531 = vsel %vm250, %v528, %v530
      %v532 = vrot.slane %v511, 5
      %v533 = vsel %vm250, %v530, %v532
      %v534 = vrot.slane %v512, 5
      %v535 = vsel %vm250, %v532, %v534
      %v536 = vrot.slane %v513, 5
      %v537 = vsel %vm250, %v534, %v536
      %v538 = vrot.slane %v514, 5
      %v539 = vsel %vm250, %v536, %v538
      %v540 = vrot.slane %v515, 5
      %v541 = vsel %vm250, %v538, %v540
      %v550 = vadd.f32 %v498, %v527
      %v551 = vadd.f32 %v499, %v529
      %v552 = vadd.f32 %v500, %v531
      %v553 = vadd.f32 %v501, %v533
      %v554 = vadd.f32 %v502, %v535
      %v555 = vadd.f32 %v503, %v537
      %v556 = vadd.f32 %v504, %v539
      %v557 = vadd.f32 %v505, %v541
      %v558 = vperm.slane %v241, 6
      %v559 = vmul.f32 %v275, %v558
      %v560 = vmul.f32 %v253, %v558
      %v561 = vmul.f32 %v255, %v558
      %v562 = vmul.f32 %v257, %v558
      %v563 = vmul.f32 %v259, %v558
      %v564 = vmul.f32 %v261, %v558
      %v565 = vmul.f32 %v263, %v558
      %v566 = vmul.f32 %v265, %v558
      %v567 = vmul.f32 %v276, %v558
      %vm577 = vcmask 1041408
      %v578 = vrot.slane %v559, 6
      %v579 = vrot.slane %v560, 6
      %v580 = vsel %vm577, %v578, %v579
      %v581 = vrot.slane %v561, 6
      %v582 = vsel %vm577, %v579, %v581
      %v583 = vrot.slane %v562, 6
      %v584 = vsel %vm577, %v581, %v583
      %v585 = vrot.slane %v563, 6
      %v586 = vsel %vm577, %v583, %v585
      %v587 = vrot.slane %v564, 6
      %v588 = vsel %vm577, %v585, %v587
      %v589 = vrot.slane %v565, 6
      %v590 = vsel %vm577, %v587, %v589
      %v591 = vrot.slane %v566, 6
      %v592 = vsel %vm577, %v589, %v591
      %v593 = vrot.slane %v567, 6
      %v594 = vsel %vm577, %v591, %v593
      %v603 = vadd.f32 %v550, %v580
      %v604 = vadd.f32 %v551, %v582
      %v605 = vadd.f32 %v552, %v584
      %v606 = vadd.f32 %v553, %v586
      %v607 = vadd.f32 %v554, %v588
      %v608 = vadd.f32 %v555, %v590
      %v609 = vadd.f32 %v556, %v592
      %v610 = vadd.f32 %v557, %v594
      %v611 = vld [vmem:[%s224] sm:$0x1]
      %v613 = vperm.slane %v611, 0
      %v615 = vadd.f32 %v603, %v613
      %v616 = vadd.f32 %v604, %v613
      %v617 = vadd.f32 %v605, %v613
      %v618 = vadd.f32 %v606, %v613
      %v619 = vadd.f32 %v607, %v613
      %v620 = vadd.f32 %v608, %v613
      %v621 = vadd.f32 %v609, %v613
      %v622 = vadd.f32 %v610, %v613
      %v623 = vxor.u32 %v615, 2147483648
      %v624 = vxor.u32 %v616, 2147483648
      %v625 = vxor.u32 %v617, 2147483648
      %v626 = vxor.u32 %v618, 2147483648
      %v627 = vxor.u32 %v619, 2147483648
      %v628 = vxor.u32 %v620, 2147483648
      %v629 = vxor.u32 %v621, 2147483648
      %v630 = vxor.u32 %v622, 2147483648
      %v631 = vmul.f32 %v623, 1.442695
      %v632 = vpow.pop %v631
      %v633 = vmul.f32 %v624, 1.442695
      %v634 = vpow.pop %v633
      %v635 = vmul.f32 %v625, 1.442695
      %v636 = vpow.pop %v635
      %v637 = vmul.f32 %v626, 1.442695
      %v638 = vpow.pop %v637
      %v639 = vmul.f32 %v627, 1.442695
      %v640 = vpow.pop %v639
      %v641 = vmul.f32 %v628, 1.442695
      %v642 = vpow.pop %v641
      %v643 = vmul.f32 %v629, 1.442695
      %v644 = vpow.pop %v643
      %v645 = vmul.f32 %v630, 1.442695
      %v646 = vpow.pop %v645
      %v647 = vadd.f32 %v632, 1.0
      %v648 = vadd.f32 %v634, 1.0
      %v649 = vadd.f32 %v636, 1.0
      %v650 = vadd.f32 %v638, 1.0
      %v651 = vadd.f32 %v640, 1.0
      %v652 = vadd.f32 %v642, 1.0
      %v653 = vadd.f32 %v644, 1.0
      %v654 = vadd.f32 %v646, 1.0
      %v655 = vrcp.pop %v647
      %v656 = vmul.f32 %v647, %v655
      %v657 = vsub.f32 1.0, %v656
      %v658 = vmul.f32 %v655, %v657
      %v659 = vadd.f32 %v655, %v658
      %vm660 = vweird.f32 %v647
      %vm661 = vweird.f32 %v655
      %vm662 = vmor %vm660, %vm661
      %v663 = vsel %vm662, %v655, %v659
      %v664 = vand.u32 2147483647, %v647
      %vm665 = vcmp.eq.f32.partialorder %v664, 8.507059e+37
      %v666 = vand.u32 %v647, 2147483648
      %v667 = vor.u32 1.1754944e-38, %v666
      %v668 = vsel %vm665, %v667, %v663
      %v669 = vmul.f32 1.0, %v668
      %v670 = vrcp.pop %v648
      %v671 = vmul.f32 %v648, %v670
      %v672 = vsub.f32 1.0, %v671
      %v673 = vmul.f32 %v670, %v672
      %v674 = vadd.f32 %v670, %v673
      %vm675 = vweird.f32 %v648
      %vm676 = vweird.f32 %v670
      %vm677 = vmor %vm675, %vm676
      %v678 = vsel %vm677, %v670, %v674
      %v679 = vand.u32 2147483647, %v648
      %vm680 = vcmp.eq.f32.partialorder %v679, 8.507059e+37
      %v681 = vand.u32 %v648, 2147483648
      %v682 = vor.u32 1.1754944e-38, %v681
      %v683 = vsel %vm680, %v682, %v678
      %v684 = vmul.f32 1.0, %v683
      %v685 = vrcp.pop %v649
      %v686 = vmul.f32 %v649, %v685
      %v687 = vsub.f32 1.0, %v686
      %v688 = vmul.f32 %v685, %v687
      %v689 = vadd.f32 %v685, %v688
      %vm690 = vweird.f32 %v649
      %vm691 = vweird.f32 %v685
      %vm692 = vmor %vm690, %vm691
      %v693 = vsel %vm692, %v685, %v689
      %v694 = vand.u32 2147483647, %v649
      %vm695 = vcmp.eq.f32.partialorder %v694, 8.507059e+37
      %v696 = vand.u32 %v649, 2147483648
      %v697 = vor.u32 1.1754944e-38, %v696
      %v698 = vsel %vm695, %v697, %v693
      %v699 = vmul.f32 1.0, %v698
      %v700 = vrcp.pop %v650
      %v701 = vmul.f32 %v650, %v700
      %v702 = vsub.f32 1.0, %v701
      %v703 = vmul.f32 %v700, %v702
      %v704 = vadd.f32 %v700, %v703
      %vm705 = vweird.f32 %v650
      %vm706 = vweird.f32 %v700
      %vm707 = vmor %vm705, %vm706
      %v708 = vsel %vm707, %v700, %v704
      %v709 = vand.u32 2147483647, %v650
      %vm710 = vcmp.eq.f32.partialorder %v709, 8.507059e+37
      %v711 = vand.u32 %v650, 2147483648
      %v712 = vor.u32 1.1754944e-38, %v711
      %v713 = vsel %vm710, %v712, %v708
      %v714 = vmul.f32 1.0, %v713
      %v715 = vrcp.pop %v651
      %v716 = vmul.f32 %v651, %v715
      %v717 = vsub.f32 1.0, %v716
      %v718 = vmul.f32 %v715, %v717
      %v719 = vadd.f32 %v715, %v718
      %vm720 = vweird.f32 %v651
      %vm721 = vweird.f32 %v715
      %vm722 = vmor %vm720, %vm721
      %v723 = vsel %vm722, %v715, %v719
      %v724 = vand.u32 2147483647, %v651
      %vm725 = vcmp.eq.f32.partialorder %v724, 8.507059e+37
      %v726 = vand.u32 %v651, 2147483648
      %v727 = vor.u32 1.1754944e-38, %v726
      %v728 = vsel %vm725, %v727, %v723
      %v729 = vmul.f32 1.0, %v728
      %v730 = vrcp.pop %v652
      %v731 = vmul.f32 %v652, %v730
      %v732 = vsub.f32 1.0, %v731
      %v733 = vmul.f32 %v730, %v732
      %v734 = vadd.f32 %v730, %v733
      %vm735 = vweird.f32 %v652
      %vm736 = vweird.f32 %v730
      %vm737 = vmor %vm735, %vm736
      %v738 = vsel %vm737, %v730, %v734
      %v739 = vand.u32 2147483647, %v652
      %vm740 = vcmp.eq.f32.partialorder %v739, 8.507059e+37
      %v741 = vand.u32 %v652, 2147483648
      %v742 = vor.u32 1.1754944e-38, %v741
      %v743 = vsel %vm740, %v742, %v738
      %v744 = vmul.f32 1.0, %v743
      %v745 = vrcp.pop %v653
      %v746 = vmul.f32 %v653, %v745
      %v747 = vsub.f32 1.0, %v746
      %v748 = vmul.f32 %v745, %v747
      %v749 = vadd.f32 %v745, %v748
      %vm750 = vweird.f32 %v653
      %vm751 = vweird.f32 %v745
      %vm752 = vmor %vm750, %vm751
      %v753 = vsel %vm752, %v745, %v749
      %v754 = vand.u32 2147483647, %v653
      %vm755 = vcmp.eq.f32.partialorder %v754, 8.507059e+37
      %v756 = vand.u32 %v653, 2147483648
      %v757 = vor.u32 1.1754944e-38, %v756
      %v758 = vsel %vm755, %v757, %v753
      %v759 = vmul.f32 1.0, %v758
      %v760 = vrcp.pop %v654
      %v761 = vmul.f32 %v654, %v760
      %v762 = vsub.f32 1.0, %v761
      %v763 = vmul.f32 %v760, %v762
      %v764 = vadd.f32 %v760, %v763
      %vm765 = vweird.f32 %v654
      %vm766 = vweird.f32 %v760
      %vm767 = vmor %vm765, %vm766
      %v768 = vsel %vm767, %v760, %v764
      %v769 = vand.u32 2147483647, %v654
      %vm770 = vcmp.eq.f32.partialorder %v769, 8.507059e+37
      %v771 = vand.u32 %v654, 2147483648
      %v772 = vor.u32 1.1754944e-38, %v771
      %v773 = vsel %vm770, %v772, %v768
      %v774 = vmul.f32 1.0, %v773
      %v775 = vmul.f32 %v615, %v669
      %v776 = vmul.f32 %v616, %v684
      %v777 = vmul.f32 %v617, %v699
      %v778 = vmul.f32 %v618, %v714
      %v779 = vmul.f32 %v619, %v729
      %v780 = vmul.f32 %v620, %v744
      %v781 = vmul.f32 %v621, %v759
      %v782 = vmul.f32 %v622, %v774
      %783 = vst [vmem:[%s232] sm:$0xff] %v775
      %784 = vst [vmem:[%s232 + $0x8] sm:$0xff] %v776
      %785 = vst [vmem:[%s232 + $0x10] sm:$0xff] %v777
      %786 = vst [vmem:[%s232 + $0x18] sm:$0xff] %v778
      %787 = vst [vmem:[%s232 + $0x20] sm:$0xff] %v779
      %788 = vst [vmem:[%s232 + $0x28] sm:$0xff] %v780
      %789 = vst [vmem:[%s232 + $0x30] sm:$0xff] %v781
      %790 = vst [vmem:[%s232 + $0x38] sm:$0xff] %v782
      %p791 = scmp.lt.s32.totalorder %s18, 1
      %s792 = scalar_select %p791, %s18, 1
      %p793 = scmp.lt.s32.totalorder %s19, 0
      %s794 = scalar_select %p793, %s19, 0
      %s795 = smul.addr %s792, 8
      %s796 = sadd.s32 %s794, %s795
      %s797 = smul.addr %s796, 8
      %s798 = scalar_lea.vmem %s3, %s797
      // Predicated region
      $region33: #{_lambda_.6} parent=31 // pred_check
        %p799 = pneg %p126
      $region34: #{_lambda_.6} parent=31 // pred_check_branch
        %801 = sbr.rel (%p799) target = $region36
      $region35: #{_lambda_.6} parent=31 // pred_region
        _
      $region36: #{_lambda_.6} parent=31 // pred_fallthru
        _
    $region32: #{_lambda_.6} parent=5 // pred_fallthru
      _
    %p802 = scmp.le.s32.totalorder 2, %s9
    // Predicated region
    $region37: #{_lambda_.6} parent=5 // pred_check
      %p803 = pneg %p802
    $region38: #{_lambda_.6} parent=5 // pred_check_branch
      %805 = sbr.rel (%p803) target = $region40
    $region39: #{_lambda_.6} parent=5 // pred_region
      %s806 = ssub.s32 %s9, 2
      // Predicated region
      $region41: #{_lambda_.6} parent=39 // pred_check
        %p807 = pneg %p132
      $region42: #{_lambda_.6} parent=39 // pred_check_branch
        %809 = sbr.rel (%p807) target = $region44
      $region43: #{_lambda_.6} parent=39 // pred_region
        %p810 = scmp.lt.s32.totalorder %s20, 1
        %s811 = scalar_select %p810, %s20, 1
        %p812 = scmp.lt.s32.totalorder %s21, 0
        %s813 = scalar_select %p812, %s21, 0
        %s814 = smul.addr %s811, 8
        %s815 = sadd.s32 %s813, %s814
        %s816 = smul.addr %s815, 8
        %s817 = scalar_lea.vmem %s3, %s816
      $region44: #{_lambda_.6} parent=39 // pred_fallthru
        _
    $region40: #{_lambda_.6} parent=5 // pred_fallthru
      _
  $region6: #{_lambda_.6} parent=0 // loop_footer
    %s13 = sadd.s32 1, %s9
  $region7: #{_lambda_.6} parent=0 // loop_footer_branch
    %8 = sbr.rel target = $region3
  $region8: #{_lambda_.6} parent=0 // loop_exit
    _

// kernel: _lambda_.5
$region0: #{_lambda_.5}
  #allocation0 [shape = 'u32[]', space=smem, size = 0x4, offset = 0x4, fixed_abs, tag = 'smem constant byte address 0x4 - core index']
  #allocation1 [shape = 'u32[72,128]{1,0:T(1,128)}', space=vmem, size = 0x9000, scoped, tag = 'internal scratch']
  #allocation2 [shape = 'f32[128,200]{1,0:T(8,128)}', space=vmem, size = 0x20000, scoped, tag = 'scratch operand']
  %s0 = inlined_call_operand.hbm [shape: f32[128,32], index: 0, kind: input, shape index: {}]
  %s1 = inlined_call_operand.hbm [shape: f32[32,200], index: 1, kind: input, shape index: {}]
  %s2 = inlined_call_operand.vmem [shape: f32[128,200], index: 2, kind: output, shape index: {}]
  %s3 = sld [smem:[#allocation0]]
  $region34: #{_lambda_.5} parent=0
    _
  %s5 = ssub.s32 1, %s3
  %s6 = scalar_select 0, %s5, %s3
  $region1: #{_lambda_.5} parent=0
    #allocation3 [shape = 'u8[65536]{0}', space=vmem, size = 0x10000, scoped, tag = 'input window, operand 0, single buffered']
    #allocation4 [shape = 's32[1]{0}', space=sflag, size = 0x4, scoped, tag = 'scoped memory for _lambda_.5']
    #allocation5 [shape = 'u8[32768]{0}', space=vmem, size = 0x8000, scoped, tag = 'input window, operand 1, single buffered']
    #allocation6 [shape = 's32[1]{0}', space=sflag, size = 0x4, scoped, tag = 'scoped memory for _lambda_.5']
    %7 = vsyncpa [#allocation4], 0
    %8 = vsyncpa [#allocation6], 0
    // Predicated region
    $region2: #{_lambda_.5} parent=1 // pred_check
      _
    $region3: #{_lambda_.5} parent=1 // pred_check_branch
      %10 = sbr.rel (0) target = $region5
    $region4: #{_lambda_.5} parent=1 // pred_region
      %12 = vsyncadd [#allocation4], 0
      %s13 = sshll.u32 %s0, 4
      %s14 = int_to_ptr.hbm [resolvable:$true] %s13
      %s15 = sshll.u32 [#allocation3], 4
      %s16 = int_to_ptr.vmem [resolvable:$true] %s15
      %21 = dma.hbm_to_vmem [thread:$0]  %s14, 2048, %s16, [#allocation4], 128, 128, 8
    $region5: #{_lambda_.5} parent=1 // pred_fallthru
      _
    // Predicated region
    $region6: #{_lambda_.5} parent=1 // pred_check
      _
    $region7: #{_lambda_.5} parent=1 // pred_check_branch
      %23 = sbr.rel (0) target = $region9
    $region8: #{_lambda_.5} parent=1 // pred_region
      %25 = vsyncadd [#allocation6], 0
      %s26 = sshll.u32 %s1, 4
      %s27 = int_to_ptr.hbm [resolvable:$true] %s26
      %s28 = sshll.u32 [#allocation5], 4
      %s29 = int_to_ptr.vmem [resolvable:$true] %s28
      %34 = dma.hbm_to_vmem [thread:$0]  %s27, 1024, %s29, [#allocation6], 256, 256, 16
    $region9: #{_lambda_.5} parent=1 // pred_fallthru
      _
    // Predicated region
    $region10: #{_lambda_.5} parent=1 // pred_check
      _
    $region11: #{_lambda_.5} parent=1 // pred_check_branch
      %36 = sbr.rel (0) target = $region13
    $region12: #{_lambda_.5} parent=1 // pred_region
      %38 = dma.done [#allocation4], 2048
    $region13: #{_lambda_.5} parent=1 // pred_fallthru
      _
    // Predicated region
    $region14: #{_lambda_.5} parent=1 // pred_check
      _
    $region15: #{_lambda_.5} parent=1 // pred_check_branch
      %40 = sbr.rel (0) target = $region17
    $region16: #{_lambda_.5} parent=1 // pred_region
      %42 = dma.done [#allocation6], 1024
    $region17: #{_lambda_.5} parent=1 // pred_fallthru
      _
    %p43 = scmp.eq.s32.totalorder 0, 0
    // Predicated region
    $region18: #{_lambda_.5} parent=1 // pred_check
      %p44 = pneg %p43
    $region19: #{_lambda_.5} parent=1 // pred_check_branch
      %46 = sbr.rel (%p44) target = $region21
    $region20: #{_lambda_.5} parent=1 // pred_region
      %47 = vst [vmem:[#allocation2] sm:$0xff] 0.0
      %vm48 = vcmask 588800
      %49 = vst.msk [vmem:[#allocation2 + $0x8] sm:$0xff] %vm48, 0.0
      %50 = vst [vmem:[#allocation2 + $0x10] sm:$0xff] 0.0
      %51 = vst.msk [vmem:[#allocation2 + $0x18] sm:$0xff] %vm48, 0.0
      %52 = vst [vmem:[#allocation2 + $0x20] sm:$0xff] 0.0
      %53 = vst.msk [vmem:[#allocation2 + $0x28] sm:$0xff] %vm48, 0.0
      %54 = vst [vmem:[#allocation2 + $0x30] sm:$0xff] 0.0
      %55 = vst.msk [vmem:[#allocation2 + $0x38] sm:$0xff] %vm48, 0.0
      %56 = vst [vmem:[#allocation2 + $0x40] sm:$0xff] 0.0
      %57 = vst.msk [vmem:[#allocation2 + $0x48] sm:$0xff] %vm48, 0.0
      %58 = vst [vmem:[#allocation2 + $0x50] sm:$0xff] 0.0
      %59 = vst.msk [vmem:[#allocation2 + $0x58] sm:$0xff] %vm48, 0.0
      %60 = vst [vmem:[#allocation2 + $0x60] sm:$0xff] 0.0
      %61 = vst.msk [vmem:[#allocation2 + $0x68] sm:$0xff] %vm48, 0.0
      %62 = vst [vmem:[#allocation2 + $0x70] sm:$0xff] 0.0
      %63 = vst.msk [vmem:[#allocation2 + $0x78] sm:$0xff] %vm48, 0.0
      %64 = vst [vmem:[#allocation2 + $0x80] sm:$0xff] 0.0
      %65 = vst.msk [vmem:[#allocation2 + $0x88] sm:$0xff] %vm48, 0.0
      %66 = vst [vmem:[#allocation2 + $0x90] sm:$0xff] 0.0
      %67 = vst.msk [vmem:[#allocation2 + $0x98] sm:$0xff] %vm48, 0.0
      %68 = vst [vmem:[#allocation2 + $0xa0] sm:$0xff] 0.0
      %69 = vst.msk [vmem:[#allocation2 + $0xa8] sm:$0xff] %vm48, 0.0
      %70 = vst [vmem:[#allocation2 + $0xb0] sm:$0xff] 0.0
      %71 = vst.msk [vmem:[#allocation2 + $0xb8] sm:$0xff] %vm48, 0.0
      %72 = vst [vmem:[#allocation2 + $0xc0] sm:$0xff] 0.0
      %73 = vst.msk [vmem:[#allocation2 + $0xc8] sm:$0xff] %vm48, 0.0
      %74 = vst [vmem:[#allocation2 + $0xd0] sm:$0xff] 0.0
      %75 = vst.msk [vmem:[#allocation2 + $0xd8] sm:$0xff] %vm48, 0.0
      %76 = vst [vmem:[#allocation2 + $0xe0] sm:$0xff] 0.0
      %77 = vst.msk [vmem:[#allocation2 + $0xe8] sm:$0xff] %vm48, 0.0
      %78 = vst [vmem:[#allocation2 + $0xf0] sm:$0xff] 0.0
      %79 = vst.msk [vmem:[#allocation2 + $0xf8] sm:$0xff] %vm48, 0.0
    $region21: #{_lambda_.5} parent=1 // pred_fallthru
      _
    %v80 = vld [vmem:[#allocation2] sm:$0xff]
    %v81 = vld [vmem:[#allocation2 + $0x8] sm:$0xff]
    %v82 = vld [vmem:[#allocation2 + $0x10] sm:$0xff]
    %v83 = vld [vmem:[#allocation2 + $0x18] sm:$0xff]
    %v84 = vld [vmem:[#allocation2 + $0x20] sm:$0xff]
    %v85 = vld [vmem:[#allocation2 + $0x28] sm:$0xff]
    %v86 = vld [vmem:[#allocation2 + $0x30] sm:$0xff]
    %v87 = vld [vmem:[#allocation2 + $0x38] sm:$0xff]
    %v88 = vld [vmem:[#allocation2 + $0x40] sm:$0xff]
    %v89 = vld [vmem:[#allocation2 + $0x48] sm:$0xff]
    %v90 = vld [vmem:[#allocation2 + $0x50] sm:$0xff]
    %v91 = vld [vmem:[#allocation2 + $0x58] sm:$0xff]
    %v92 = vld [vmem:[#allocation2 + $0x60] sm:$0xff]
    %v93 = vld [vmem:[#allocation2 + $0x68] sm:$0xff]
    %v94 = vld [vmem:[#allocation2 + $0x70] sm:$0xff]
    %v95 = vld [vmem:[#allocation2 + $0x78] sm:$0xff]
    %v96 = vld [vmem:[#allocation2 + $0x80] sm:$0xff]
    %v97 = vld [vmem:[#allocation2 + $0x88] sm:$0xff]
    %v98 = vld [vmem:[#allocation2 + $0x90] sm:$0xff]
    %v99 = vld [vmem:[#allocation2 + $0x98] sm:$0xff]
    %v100 = vld [vmem:[#allocation2 + $0xa0] sm:$0xff]
    %v101 = vld [vmem:[#allocation2 + $0xa8] sm:$0xff]
    %v102 = vld [vmem:[#allocation2 + $0xb0] sm:$0xff]
    %v103 = vld [vmem:[#allocation2 + $0xb8] sm:$0xff]
    %v104 = vld [vmem:[#allocation2 + $0xc0] sm:$0xff]
    %v105 = vld [vmem:[#allocation2 + $0xc8] sm:$0xff]
    %v106 = vld [vmem:[#allocation2 + $0xd0] sm:$0xff]
    %v107 = vld [vmem:[#allocation2 + $0xd8] sm:$0xff]
    %v108 = vld [vmem:[#allocation2 + $0xe0] sm:$0xff]
    %v109 = vld [vmem:[#allocation2 + $0xe8] sm:$0xff]
    %v110 = vld [vmem:[#allocation2 + $0xf0] sm:$0xff]
    %v111 = vld [vmem:[#allocation2 + $0xf8] sm:$0xff]
    %v112 = vld [vmem:[#allocation3] sm:$0xff]
    %v113 = vld [vmem:[#allocation3 + $0x8] sm:$0xff]
    %v114 = vld [vmem:[#allocation3 + $0x10] sm:$0xff]
    %v115 = vld [vmem:[#allocation3 + $0x18] sm:$0xff]
    %v116 = vld [vmem:[#allocation3 + $0x20] sm:$0xff]
    %v117 = vld [vmem:[#allocation3 + $0x28] sm:$0xff]
    %v118 = vld [vmem:[#allocation3 + $0x30] sm:$0xff]
    %v119 = vld [vmem:[#allocation3 + $0x38] sm:$0xff]
    %v120 = vld [vmem:[#allocation3 + $0x40] sm:$0xff]
    %v121 = vld [vmem:[#allocation3 + $0x48] sm:$0xff]
    %v122 = vld [vmem:[#allocation3 + $0x50] sm:$0xff]
    %v123 = vld [vmem:[#allocation3 + $0x58] sm:$0xff]
    %v124 = vld [vmem:[#allocation3 + $0x60] sm:$0xff]
    %v125 = vld [vmem:[#allocation3 + $0x68] sm:$0xff]
    %v126 = vld [vmem:[#allocation3 + $0x70] sm:$0xff]
    %v127 = vld [vmem:[#allocation3 + $0x78] sm:$0xff]
    %v128 = vld [vmem:[#allocation5] sm:$0xff]
    %v129 = vld [vmem:[#allocation5 + $0x8] sm:$0xff]
    %v130 = vld [vmem:[#allocation5 + $0x10] sm:$0xff]
    %v131 = vld [vmem:[#allocation5 + $0x18] sm:$0xff]
    %v132 = vld [vmem:[#allocation5 + $0x20] sm:$0xff]
    %v133 = vld [vmem:[#allocation5 + $0x28] sm:$0xff]
    %v134 = vld [vmem:[#allocation5 + $0x30] sm:$0xff]
    %v135 = vld [vmem:[#allocation5 + $0x38] sm:$0xff]
    %vm136 = vcmask 261120
    %v138 = vsel %vm136, %v112, 0
    %v141 = vsel %vm136, %v113, 0
    %v144 = vsel %vm136, %v114, 0
    %v147 = vsel %vm136, %v115, 0
    %v150 = vsel %vm136, %v116, 0
    %v153 = vsel %vm136, %v117, 0
    %v156 = vsel %vm136, %v118, 0
    %v159 = vsel %vm136, %v119, 0
    %v162 = vsel %vm136, %v120, 0
    %v165 = vsel %vm136, %v121, 0
    %v168 = vsel %vm136, %v122, 0
    %v171 = vsel %vm136, %v123, 0
    %v174 = vsel %vm136, %v124, 0
    %v177 = vsel %vm136, %v125, 0
    %v180 = vsel %vm136, %v126, 0
    %v183 = vsel %vm136, %v127, 0
    %185 = vmatpush.msra.mxu0 0.0
    %186 = vmatpush.msra.mxu0 0.0
    %187 = vmatpush.msra.mxu0 0.0
    %188 = vmatpush.msra.mxu0 0.0
    %189 = vmatpush.msra.mxu0 0.0
    %190 = vmatpush.msra.mxu0 0.0
    %191 = vmatpush.msra.mxu0 0.0
    %192 = vmatpush.msra.mxu0 0.0
    %193 = vmatpush.msra.mxu0 0.0
    %194 = vmatpush.msra.mxu0 0.0
    %195 = vmatpush.msra.mxu0 0.0
    %196 = vmatpush.msra.mxu0 0.0
    %197 = vmatpush.msra.mxu0 %v134
    %198 = vmatpush.msra.mxu0 %v132
    %199 = vmatpush.msra.mxu0 %v130
    %200 = vmatpush.msra.mxu0 %v128
    %201 = vmatmul.f32.gmra.mxu0 %v138
    %v202 = vpop.f32.mrf.mxu0
    %v203 = vadd.f32 0.0, %v202
    %204 = vmatmul.f32.gmra.mxu0 %v141
    %v205 = vpop.f32.mrf.mxu0
    %v206 = vadd.f32 0.0, %v205
    %207 = vmatmul.f32.gmra.mxu0 %v144
    %v208 = vpop.f32.mrf.mxu0
    %v209 = vadd.f32 0.0, %v208
    %210 = vmatmul.f32.gmra.mxu0 %v147
    %v211 = vpop.f32.mrf.mxu0
    %v212 = vadd.f32 0.0, %v211
    %213 = vmatmul.f32.gmra.mxu0 %v150
    %v214 = vpop.f32.mrf.mxu0
    %v215 = vadd.f32 0.0, %v214
    %216 = vmatmul.f32.gmra.mxu0 %v153
    %v217 = vpop.f32.mrf.mxu0
    %v218 = vadd.f32 0.0, %v217
    %219 = vmatmul.f32.gmra.mxu0 %v156
    %v220 = vpop.f32.mrf.mxu0
    %v221 = vadd.f32 0.0, %v220
    %222 = vmatmul.f32.gmra.mxu0 %v159
    %v223 = vpop.f32.mrf.mxu0
    %v224 = vadd.f32 0.0, %v223
    %225 = vmatmul.f32.gmra.mxu0 %v162
    %v226 = vpop.f32.mrf.mxu0
    %v227 = vadd.f32 0.0, %v226
    %228 = vmatmul.f32.gmra.mxu0 %v165
    %v229 = vpop.f32.mrf.mxu0
    %v230 = vadd.f32 0.0, %v229
    %231 = vmatmul.f32.gmra.mxu0 %v168
    %v232 = vpop.f32.mrf.mxu0
    %v233 = vadd.f32 0.0, %v232
    %234 = vmatmul.f32.gmra.mxu0 %v171
    %v235 = vpop.f32.mrf.mxu0
    %v236 = vadd.f32 0.0, %v235
    %237 = vmatmul.f32.gmra.mxu0 %v174
    %v238 = vpop.f32.mrf.mxu0
    %v239 = vadd.f32 0.0, %v238
    %240 = vmatmul.f32.gmra.mxu0 %v177
    %v241 = vpop.f32.mrf.mxu0
    %v242 = vadd.f32 0.0, %v241
    %243 = vmatmul.f32.gmra.mxu0 %v180
    %v244 = vpop.f32.mrf.mxu0
    %v245 = vadd.f32 0.0, %v244
    %246 = vmatmul.f32.gmra.mxu0 %v183
    %v247 = vpop.f32.mrf.mxu0
    %v248 = vadd.f32 0.0, %v247
    %249 = vdwg.mxu0
    %250 = vmatpush.msra.mxu0 0.0
    %251 = vmatpush.msra.mxu0 0.0
    %252 = vmatpush.msra.mxu0 0.0
    %253 = vmatpush.msra.mxu0 0.0
    %254 = vmatpush.msra.mxu0 0.0
    %255 = vmatpush.msra.mxu0 0.0
    %256 = vmatpush.msra.mxu0 0.0
    %257 = vmatpush.msra.mxu0 0.0
    %258 = vmatpush.msra.mxu0 0.0
    %259 = vmatpush.msra.mxu0 0.0
    %260 = vmatpush.msra.mxu0 0.0
    %261 = vmatpush.msra.mxu0 0.0
    %262 = vmatpush.msra.mxu0 %v135
    %263 = vmatpush.msra.mxu0 %v133
    %264 = vmatpush.msra.mxu0 %v131
    %265 = vmatpush.msra.mxu0 %v129
    %266 = vmatmul.f32.gmra.mxu0 %v138
    %v267 = vpop.f32.mrf.mxu0
    %v268 = vadd.f32 0.0, %v267
    %269 = vmatmul.f32.gmra.mxu0 %v141
    %v270 = vpop.f32.mrf.mxu0
    %v271 = vadd.f32 0.0, %v270
    %272 = vmatmul.f32.gmra.mxu0 %v144
    %v273 = vpop.f32.mrf.mxu0
    %v274 = vadd.f32 0.0, %v273
    %275 = vmatmul.f32.gmra.mxu0 %v147
    %v276 = vpop.f32.mrf.mxu0
    %v277 = vadd.f32 0.0, %v276
    %278 = vmatmul.f32.gmra.mxu0 %v150
    %v279 = vpop.f32.mrf.mxu0
    %v280 = vadd.f32 0.0, %v279
    %281 = vmatmul.f32.gmra.mxu0 %v153
    %v282 = vpop.f32.mrf.mxu0
    %v283 = vadd.f32 0.0, %v282
    %284 = vmatmul.f32.gmra.mxu0 %v156
    %v285 = vpop.f32.mrf.mxu0
    %v286 = vadd.f32 0.0, %v285
    %287 = vmatmul.f32.gmra.mxu0 %v159
    %v288 = vpop.f32.mrf.mxu0
    %v289 = vadd.f32 0.0, %v288
    %290 = vmatmul.f32.gmra.mxu0 %v162
    %v291 = vpop.f32.mrf.mxu0
    %v292 = vadd.f32 0.0, %v291
    %293 = vmatmul.f32.gmra.mxu0 %v165
    %v294 = vpop.f32.mrf.mxu0
    %v295 = vadd.f32 0.0, %v294
    %296 = vmatmul.f32.gmra.mxu0 %v168
    %v297 = vpop.f32.mrf.mxu0
    %v298 = vadd.f32 0.0, %v297
    %299 = vmatmul.f32.gmra.mxu0 %v171
    %v300 = vpop.f32.mrf.mxu0
    %v301 = vadd.f32 0.0, %v300
    %302 = vmatmul.f32.gmra.mxu0 %v174
    %v303 = vpop.f32.mrf.mxu0
    %v304 = vadd.f32 0.0, %v303
    %305 = vmatmul.f32.gmra.mxu0 %v177
    %v306 = vpop.f32.mrf.mxu0
    %v307 = vadd.f32 0.0, %v306
    %308 = vmatmul.f32.gmra.mxu0 %v180
    %v309 = vpop.f32.mrf.mxu0
    %v310 = vadd.f32 0.0, %v309
    %311 = vmatmul.f32.gmra.mxu0 %v183
    %v312 = vpop.f32.mrf.mxu0
    %v313 = vadd.f32 0.0, %v312
    %314 = vdwg.mxu0
    %v315 = vadd.f32 %v80, %v203
    %v316 = vadd.f32 %v81, %v268
    %v317 = vadd.f32 %v82, %v206
    %v318 = vadd.f32 %v83, %v271
    %v319 = vadd.f32 %v84, %v209
    %v320 = vadd.f32 %v85, %v274
    %v321 = vadd.f32 %v86, %v212
    %v322 = vadd.f32 %v87, %v277
    %v323 = vadd.f32 %v88, %v215
    %v324 = vadd.f32 %v89, %v280
    %v325 = vadd.f32 %v90, %v218
    %v326 = vadd.f32 %v91, %v283
    %v327 = vadd.f32 %v92, %v221
    %v328 = vadd.f32 %v93, %v286
    %v329 = vadd.f32 %v94, %v224
    %v330 = vadd.f32 %v95, %v289
    %v331 = vadd.f32 %v96, %v227
    %v332 = vadd.f32 %v97, %v292
    %v333 = vadd.f32 %v98, %v230
    %v334 = vadd.f32 %v99, %v295
    %v335 = vadd.f32 %v100, %v233
    %v336 = vadd.f32 %v101, %v298
    %v337 = vadd.f32 %v102, %v236
    %v338 = vadd.f32 %v103, %v301
    %v339 = vadd.f32 %v104, %v239
    %v340 = vadd.f32 %v105, %v304
    %v341 = vadd.f32 %v106, %v242
    %v342 = vadd.f32 %v107, %v307
    %v343 = vadd.f32 %v108, %v245
    %v344 = vadd.f32 %v109, %v310
    %v345 = vadd.f32 %v110, %v248
    %v346 = vadd.f32 %v111, %v313
    %347 = vst [vmem:[#allocation2] sm:$0xff] %v315
    %vm348 = vcmask 588800
    %349 = vst.msk [vmem:[#allocation2 + $0x8] sm:$0xff] %vm348, %v316
    %350 = vst [vmem:[#allocation2 + $0x10] sm:$0xff] %v317
    %351 = vst.msk [vmem:[#allocation2 + $0x18] sm:$0xff] %vm348, %v318
    %352 = vst [vmem:[#allocation2 + $0x20] sm:$0xff] %v319
    %353 = vst.msk [vmem:[#allocation2 + $0x28] sm:$0xff] %vm348, %v320
    %354 = vst [vmem:[#allocation2 + $0x30] sm:$0xff] %v321
    %355 = vst.msk [vmem:[#allocation2 + $0x38] sm:$0xff] %vm348, %v322
    %356 = vst [vmem:[#allocation2 + $0x40] sm:$0xff] %v323
    %357 = vst.msk [vmem:[#allocation2 + $0x48] sm:$0xff] %vm348, %v324
    %358 = vst [vmem:[#allocation2 + $0x50] sm:$0xff] %v325
    %359 = vst.msk [vmem:[#allocation2 + $0x58] sm:$0xff] %vm348, %v326
    %360 = vst [vmem:[#allocation2 + $0x60] sm:$0xff] %v327
    %361 = vst.msk [vmem:[#allocation2 + $0x68] sm:$0xff] %vm348, %v328
    %362 = vst [vmem:[#allocation2 + $0x70] sm:$0xff] %v329
    %363 = vst.msk [vmem:[#allocation2 + $0x78] sm:$0xff] %vm348, %v330
    %364 = vst [vmem:[#allocation2 + $0x80] sm:$0xff] %v331
    %365 = vst.msk [vmem:[#allocation2 + $0x88] sm:$0xff] %vm348, %v332
    %366 = vst [vmem:[#allocation2 + $0x90] sm:$0xff] %v333
    %367 = vst.msk [vmem:[#allocation2 + $0x98] sm:$0xff] %vm348, %v334
    %368 = vst [vmem:[#allocation2 + $0xa0] sm:$0xff] %v335
    %369 = vst.msk [vmem:[#allocation2 + $0xa8] sm:$0xff] %vm348, %v336
    %370 = vst [vmem:[#allocation2 + $0xb0] sm:$0xff] %v337
    %371 = vst.msk [vmem:[#allocation2 + $0xb8] sm:$0xff] %vm348, %v338
    %372 = vst [vmem:[#allocation2 + $0xc0] sm:$0xff] %v339
    %373 = vst.msk [vmem:[#allocation2 + $0xc8] sm:$0xff] %vm348, %v340
    %374 = vst [vmem:[#allocation2 + $0xd0] sm:$0xff] %v341
    %375 = vst.msk [vmem:[#allocation2 + $0xd8] sm:$0xff] %vm348, %v342
    %376 = vst [vmem:[#allocation2 + $0xe0] sm:$0xff] %v343
    %377 = vst.msk [vmem:[#allocation2 + $0xe8] sm:$0xff] %vm348, %v344
    %378 = vst [vmem:[#allocation2 + $0xf0] sm:$0xff] %v345
    %379 = vst.msk [vmem:[#allocation2 + $0xf8] sm:$0xff] %vm348, %v346
    // Predicated region
    $region22: #{_lambda_.5} parent=1 // pred_check
      %p380 = pneg %p43
    $region23: #{_lambda_.5} parent=1 // pred_check_branch
      %382 = sbr.rel (%p380) target = $region25
    $region24: #{_lambda_.5} parent=1 // pred_region
      %v383 = vld [vmem:[#allocation2] sm:$0xff]
      %v384 = vld [vmem:[#allocation2 + $0x8] sm:$0xff]
      %v385 = vld [vmem:[#allocation2 + $0x10] sm:$0xff]
      %v386 = vld [vmem:[#allocation2 + $0x18] sm:$0xff]
      %v387 = vld [vmem:[#allocation2 + $0x20] sm:$0xff]
      %v388 = vld [vmem:[#allocation2 + $0x28] sm:$0xff]
      %v389 = vld [vmem:[#allocation2 + $0x30] sm:$0xff]
      %v390 = vld [vmem:[#allocation2 + $0x38] sm:$0xff]
      %v391 = vld [vmem:[#allocation2 + $0x40] sm:$0xff]
      %v392 = vld [vmem:[#allocation2 + $0x48] sm:$0xff]
      %v393 = vld [vmem:[#allocation2 + $0x50] sm:$0xff]
      %v394 = vld [vmem:[#allocation2 + $0x58] sm:$0xff]
      %v395 = vld [vmem:[#allocation2 + $0x60] sm:$0xff]
      %v396 = vld [vmem:[#allocation2 + $0x68] sm:$0xff]
      %v397 = vld [vmem:[#allocation2 + $0x70] sm:$0xff]
      %v398 = vld [vmem:[#allocation2 + $0x78] sm:$0xff]
      %v399 = vld [vmem:[#allocation2 + $0x80] sm:$0xff]
      %v400 = vld [vmem:[#allocation2 + $0x88] sm:$0xff]
      %v401 = vld [vmem:[#allocation2 + $0x90] sm:$0xff]
      %v402 = vld [vmem:[#allocation2 + $0x98] sm:$0xff]
      %v403 = vld [vmem:[#allocation2 + $0xa0] sm:$0xff]
      %v404 = vld [vmem:[#allocation2 + $0xa8] sm:$0xff]
      %v405 = vld [vmem:[#allocation2 + $0xb0] sm:$0xff]
      %v406 = vld [vmem:[#allocation2 + $0xb8] sm:$0xff]
      %v407 = vld [vmem:[#allocation2 + $0xc0] sm:$0xff]
      %v408 = vld [vmem:[#allocation2 + $0xc8] sm:$0xff]
      %v409 = vld [vmem:[#allocation2 + $0xd0] sm:$0xff]
      %v410 = vld [vmem:[#allocation2 + $0xd8] sm:$0xff]
      %v411 = vld [vmem:[#allocation2 + $0xe0] sm:$0xff]
      %v412 = vld [vmem:[#allocation2 + $0xe8] sm:$0xff]
      %v413 = vld [vmem:[#allocation2 + $0xf0] sm:$0xff]
      %v414 = vld [vmem:[#allocation2 + $0xf8] sm:$0xff]
      %415 = vst [vmem:[%s2] sm:$0xff] %v383
      %416 = vst.msk [vmem:[%s2 + $0x8] sm:$0xff] %vm348, %v384
      %417 = vst [vmem:[%s2 + $0x10] sm:$0xff] %v385
      %418 = vst.msk [vmem:[%s2 + $0x18] sm:$0xff] %vm348, %v386
      %419 = vst [vmem:[%s2 + $0x20] sm:$0xff] %v387
      %420 = vst.msk [vmem:[%s2 + $0x28] sm:$0xff] %vm348, %v388
      %421 = vst [vmem:[%s2 + $0x30] sm:$0xff] %v389
      %422 = vst.msk [vmem:[%s2 + $0x38] sm:$0xff] %vm348, %v390
      %423 = vst [vmem:[%s2 + $0x40] sm:$0xff] %v391
      %424 = vst.msk [vmem:[%s2 + $0x48] sm:$0xff] %vm348, %v392
      %425 = vst [vmem:[%s2 + $0x50] sm:$0xff] %v393
      %426 = vst.msk [vmem:[%s2 + $0x58] sm:$0xff] %vm348, %v394
      %427 = vst [vmem:[%s2 + $0x60] sm:$0xff] %v395
      %428 = vst.msk [vmem:[%s2 + $0x68] sm:$0xff] %vm348, %v396
      %429 = vst [vmem:[%s2 + $0x70] sm:$0xff] %v397
      %430 = vst.msk [vmem:[%s2 + $0x78] sm:$0xff] %vm348, %v398
      %431 = vst [vmem:[%s2 + $0x80] sm:$0xff] %v399
      %432 = vst.msk [vmem:[%s2 + $0x88] sm:$0xff] %vm348, %v400
      %433 = vst [vmem:[%s2 + $0x90] sm:$0xff] %v401
      %434 = vst.msk [vmem:[%s2 + $0x98] sm:$0xff] %vm348, %v402
      %435 = vst [vmem:[%s2 + $0xa0] sm:$0xff] %v403
      %436 = vst.msk [vmem:[%s2 + $0xa8] sm:$0xff] %vm348, %v404
      %437 = vst [vmem:[%s2 + $0xb0] sm:$0xff] %v405
      %438 = vst.msk [vmem:[%s2 + $0xb8] sm:$0xff] %vm348, %v406
      %439 = vst [vmem:[%s2 + $0xc0] sm:$0xff] %v407
      %440 = vst.msk [vmem:[%s2 + $0xc8] sm:$0xff] %vm348, %v408
      %441 = vst [vmem:[%s2 + $0xd0] sm:$0xff] %v409
      %442 = vst.msk [vmem:[%s2 + $0xd8] sm:$0xff] %vm348, %v410
      %443 = vst [vmem:[%s2 + $0xe0] sm:$0xff] %v411
      %444 = vst.msk [vmem:[%s2 + $0xe8] sm:$0xff] %vm348, %v412
      %445 = vst [vmem:[%s2 + $0xf0] sm:$0xff] %v413
      %446 = vst.msk [vmem:[%s2 + $0xf8] sm:$0xff] %vm348, %v414
    $region25: #{_lambda_.5} parent=1 // pred_fallthru
      _
    // Predicated region
    $region26: #{_lambda_.5} parent=1 // pred_check
      _
    $region27: #{_lambda_.5} parent=1 // pred_check_branch
      %448 = sbr.rel (0) target = $region29
    $region28: #{_lambda_.5} parent=1 // pred_region
      _
    $region29: #{_lambda_.5} parent=1 // pred_fallthru
      _
    // Predicated region
    $region30: #{_lambda_.5} parent=1 // pred_check
      _
    $region31: #{_lambda_.5} parent=1 // pred_check_branch
      %450 = sbr.rel (0) target = $region33
    $region32: #{_lambda_.5} parent=1 // pred_region
      _
    $region33: #{_lambda_.5} parent=1 // pred_fallthru
      _
    %451 = vsyncpa [#allocation4], 1
    %452 = vsyncpa [#allocation6], 1

// kernel: _lambda_.7
$region0: #{_lambda_.7}
  #allocation0 [shape = 'u32[]', space=smem, size = 0x4, offset = 0x4, fixed_abs, tag = 'smem constant byte address 0x4 - core index']
  #allocation1 [shape = 'u32[72,128]{1,0:T(1,128)}', space=vmem, size = 0x9000, scoped, tag = 'internal scratch']
  %s0 = inlined_call_operand.vmem [shape: f32[2,64,64], index: 0, kind: input, shape index: {}]
  %s1 = inlined_call_operand.vmem [shape: f32[2,1,64,4], index: 1, kind: input, shape index: {}]
  %s2 = inlined_call_operand.vmem [shape: f32[2,1,64,4], index: 2, kind: input, shape index: {}]
  %s3 = inlined_call_operand.vmem [shape: f32[2,1,64,4], index: 3, kind: input, shape index: {}]
  %s4 = inlined_call_operand.vmem [shape: f32[2,1,64,4], index: 4, kind: input, shape index: {}]
  %s5 = inlined_call_operand.vmem [shape: f32[2,1,64,16], index: 5, kind: input, shape index: {}]
  %s6 = inlined_call_operand.vmem [shape: f32[2,1,64,16], index: 6, kind: input, shape index: {}]
  %s7 = inlined_call_operand.vmem [shape: f32[2,1,64,16], index: 7, kind: input, shape index: {}]
  %s8 = inlined_call_operand.vmem [shape: f32[2,1,64,16], index: 8, kind: input, shape index: {}]
  %s9 = inlined_call_operand.vmem [shape: f32[4,64], index: 9, kind: input, shape index: {}]
  %s10 = inlined_call_operand.vmem [shape: f32[2,64,64], index: 10, kind: output, shape index: {0}]
  %s11 = inlined_call_operand.vmem [shape: f32[2,64,64], index: 11, kind: output, shape index: {1}]
  %12 = xla_tuple %s10, %s11
  %s13 = sld [smem:[#allocation0]]
  $region81: #{_lambda_.7} parent=0
    _
  %s15 = ssub.s32 1, %s13
  %s16 = scalar_select 0, %s15, %s13
  loop: start=0, step=1, limit=4
  $region2: #{_lambda_.7} parent=0 // loop_pre_header
    _
  $region3: #{_lambda_.7} parent=0 // loop_header
    %s18 = sphi 0, %s22
    %p19 = scmp.ge.s32.totalorder %s18, 4
    %s25 = sphi 0, %s37
    %s26 = sphi 0, %s33
    %s27 = sphi 0, %s25
    %s28 = sphi 0, %s26
    %s29 = sphi 0, %s27
    %s30 = sphi 0, %s28
    %s42 = sphi 0, %s44
    %s45 = sphi 0, %s42
    %s46 = sphi 0, %s45
    %s62 = sphi 0, %s46
    %s70 = sphi 0, %s72
    %s73 = sphi 0, %s70
    %s74 = sphi 0, %s73
    %s90 = sphi 0, %s74
    %s98 = sphi 0, %s100
    %s101 = sphi 0, %s98
    %s102 = sphi 0, %s101
    %s118 = sphi 0, %s102
    %s126 = sphi 0, %s128
    %s129 = sphi 0, %s126
    %s130 = sphi 0, %s129
    %s146 = sphi 0, %s130
    %s154 = sphi 0, %s156
    %s157 = sphi 0, %s154
    %s158 = sphi 0, %s157
    %s174 = sphi 0, %s158
    %s182 = sphi 0, %s184
    %s185 = sphi 0, %s182
    %s186 = sphi 0, %s185
    %s202 = sphi 0, %s186
    %s210 = sphi 0, %s212
    %s213 = sphi 0, %s210
    %s214 = sphi 0, %s213
    %s230 = sphi 0, %s214
    %s238 = sphi 0, %s240
    %s241 = sphi 0, %s238
    %s242 = sphi 0, %s241
    %s258 = sphi 0, %s242
    %s266 = sphi 0, %s268
    %s269 = sphi 0, %s266
    %s270 = sphi 0, %s269
    %s286 = sphi 0, %s270
    %s290 = sphi 0, %s290
    %s292 = sphi 0, %s290
    %s293 = sphi 0, %s292
    %s307 = sphi 0, %s293
    %s315 = sphi 0, %s317
    %s318 = sphi 0, %s315
    %s319 = sphi 0, %s318
    %s335 = sphi 0, %s319
    %s343 = sphi 0, %s345
    %s346 = sphi 0, %s343
    %s347 = sphi 0, %s346
    %s363 = sphi 0, %s347
  $region4: #{_lambda_.7} parent=0 // loop_header_branch
    %21 = sbr.rel (%p19) target = $region8
  $region5: #{_lambda_.7} parent=0 // loop_body
    %s23 = ssub.s32 %s18, 1
    %s24 = ssub.s32 %s18, 2
    %s31 = sadd.s32 1, %s26
    %p32 = scmp.ge.s32.totalorder %s31, 1
    %s33 = scalar_select %p32, 0, %s31
    %s34 = sadd.s32 1, %s25
    %s35 = scalar_select %p32, %s34, %s25
    %p36 = scmp.ge.s32.totalorder %s35, 2
    %s37 = scalar_select %p36, 0, %s35
    %s38 = ssub.s32 %s25, %s37
    %s39 = ssub.s32 %s26, %s33
    %s40 = sor.u32 %s38, %s39
    %p41 = scmp.eq.s32.totalorder %s40, 0
    %s43 = sadd.s32 %s42, 1
    %s44 = scalar_select %p41, %s42, %s43
    %p47 = pneg %p41
    %p48 = scmp.eq.s32.totalorder %s18, 1
    %p49 = por %p47, %p48
    %p50 = scmp.ne.s32.totalorder %s42, %s45
    %p51 = scmp.eq.s32.totalorder %s18, 0
    %p52 = por %p50, %p51
    %p53 = scmp.ne.s32.totalorder %s42, %s45
    %p54 = scmp.eq.s32.totalorder %s23, 1
    %p55 = por %p53, %p54
    %p56 = scmp.ne.s32.totalorder %s45, %s46
    %p57 = scmp.eq.s32.totalorder %s23, 0
    %p58 = por %p56, %p57
    %p59 = scmp.ne.s32.totalorder %s45, %s46
    %p60 = scmp.eq.s32.totalorder %s24, 1
    %p61 = por %p59, %p60
    %p63 = scmp.ne.s32.totalorder %s46, %s62
    %p64 = scmp.eq.s32.totalorder %s24, 0
    %p65 = por %p63, %p64
    %s66 = ssub.s32 %s25, %s37
    %s67 = ssub.s32 %s26, %s33
    %s68 = sor.u32 %s66, %s67
    %p69 = scmp.eq.s32.totalorder %s68, 0
    %s71 = sadd.s32 %s70, 1
    %s72 = scalar_select %p69, %s70, %s71
    %p75 = pneg %p69
    %p76 = scmp.eq.s32.totalorder %s18, 1
    %p77 = por %p75, %p76
    %p78 = scmp.ne.s32.totalorder %s70, %s73
    %p79 = scmp.eq.s32.totalorder %s18, 0
    %p80 = por %p78, %p79
    %p81 = scmp.ne.s32.totalorder %s70, %s73
    %p82 = scmp.eq.s32.totalorder %s23, 1
    %p83 = por %p81, %p82
    %p84 = scmp.ne.s32.totalorder %s73, %s74
    %p85 = scmp.eq.s32.totalorder %s23, 0
    %p86 = por %p84, %p85
    %p87 = scmp.ne.s32.totalorder %s73, %s74
    %p88 = scmp.eq.s32.totalorder %s24, 1
    %p89 = por %p87, %p88
    %p91 = scmp.ne.s32.totalorder %s74, %s90
    %p92 = scmp.eq.s32.totalorder %s24, 0
    %p93 = por %p91, %p92
    %s94 = ssub.s32 %s25, %s37
    %s95 = ssub.s32 %s26, %s33
    %s96 = sor.u32 %s94, %s95
    %p97 = scmp.eq.s32.totalorder %s96, 0
    %s99 = sadd.s32 %s98, 1
    %s100 = scalar_select %p97, %s98, %s99
    %p103 = pneg %p97
    %p104 = scmp.eq.s32.totalorder %s18, 1
    %p105 = por %p103, %p104
    %p106 = scmp.ne.s32.totalorder %s98, %s101
    %p107 = scmp.eq.s32.totalorder %s18, 0
    %p108 = por %p106, %p107
    %p109 = scmp.ne.s32.totalorder %s98, %s101
    %p110 = scmp.eq.s32.totalorder %s23, 1
    %p111 = por %p109, %p110
    %p112 = scmp.ne.s32.totalorder %s101, %s102
    %p113 = scmp.eq.s32.totalorder %s23, 0
    %p114 = por %p112, %p113
    %p115 = scmp.ne.s32.totalorder %s101, %s102
    %p116 = scmp.eq.s32.totalorder %s24, 1
    %p117 = por %p115, %p116
    %p119 = scmp.ne.s32.totalorder %s102, %s118
    %p120 = scmp.eq.s32.totalorder %s24, 0
    %p121 = por %p119, %p120
    %s122 = ssub.s32 %s25, %s37
    %s123 = ssub.s32 %s26, %s33
    %s124 = sor.u32 %s122, %s123
    %p125 = scmp.eq.s32.totalorder %s124, 0
    %s127 = sadd.s32 %s126, 1
    %s128 = scalar_select %p125, %s126, %s127
    %p131 = pneg %p125
    %p132 = scmp.eq.s32.totalorder %s18, 1
    %p133 = por %p131, %p132
    %p134 = scmp.ne.s32.totalorder %s126, %s129
    %p135 = scmp.eq.s32.totalorder %s18, 0
    %p136 = por %p134, %p135
    %p137 = scmp.ne.s32.totalorder %s126, %s129
    %p138 = scmp.eq.s32.totalorder %s23, 1
    %p139 = por %p137, %p138
    %p140 = scmp.ne.s32.totalorder %s129, %s130
    %p141 = scmp.eq.s32.totalorder %s23, 0
    %p142 = por %p140, %p141
    %p143 = scmp.ne.s32.totalorder %s129, %s130
    %p144 = scmp.eq.s32.totalorder %s24, 1
    %p145 = por %p143, %p144
    %p147 = scmp.ne.s32.totalorder %s130, %s146
    %p148 = scmp.eq.s32.totalorder %s24, 0
    %p149 = por %p147, %p148
    %s150 = ssub.s32 %s25, %s37
    %s151 = ssub.s32 %s26, %s33
    %s152 = sor.u32 %s150, %s151
    %p153 = scmp.eq.s32.totalorder %s152, 0
    %s155 = sadd.s32 %s154, 1
    %s156 = scalar_select %p153, %s154, %s155
    %p159 = pneg %p153
    %p160 = scmp.eq.s32.totalorder %s18, 1
    %p161 = por %p159, %p160
    %p162 = scmp.ne.s32.totalorder %s154, %s157
    %p163 = scmp.eq.s32.totalorder %s18, 0
    %p164 = por %p162, %p163
    %p165 = scmp.ne.s32.totalorder %s154, %s157
    %p166 = scmp.eq.s32.totalorder %s23, 1
    %p167 = por %p165, %p166
    %p168 = scmp.ne.s32.totalorder %s157, %s158
    %p169 = scmp.eq.s32.totalorder %s23, 0
    %p170 = por %p168, %p169
    %p171 = scmp.ne.s32.totalorder %s157, %s158
    %p172 = scmp.eq.s32.totalorder %s24, 1
    %p173 = por %p171, %p172
    %p175 = scmp.ne.s32.totalorder %s158, %s174
    %p176 = scmp.eq.s32.totalorder %s24, 0
    %p177 = por %p175, %p176
    %s178 = ssub.s32 %s25, %s37
    %s179 = ssub.s32 %s26, %s33
    %s180 = sor.u32 %s178, %s179
    %p181 = scmp.eq.s32.totalorder %s180, 0
    %s183 = sadd.s32 %s182, 1
    %s184 = scalar_select %p181, %s182, %s183
    %p187 = pneg %p181
    %p188 = scmp.eq.s32.totalorder %s18, 1
    %p189 = por %p187, %p188
    %p190 = scmp.ne.s32.totalorder %s182, %s185
    %p191 = scmp.eq.s32.totalorder %s18, 0
    %p192 = por %p190, %p191
    %p193 = scmp.ne.s32.totalorder %s182, %s185
    %p194 = scmp.eq.s32.totalorder %s23, 1
    %p195 = por %p193, %p194
    %p196 = scmp.ne.s32.totalorder %s185, %s186
    %p197 = scmp.eq.s32.totalorder %s23, 0
    %p198 = por %p196, %p197
    %p199 = scmp.ne.s32.totalorder %s185, %s186
    %p200 = scmp.eq.s32.totalorder %s24, 1
    %p201 = por %p199, %p200
    %p203 = scmp.ne.s32.totalorder %s186, %s202
    %p204 = scmp.eq.s32.totalorder %s24, 0
    %p205 = por %p203, %p204
    %s206 = ssub.s32 %s25, %s37
    %s207 = ssub.s32 %s26, %s33
    %s208 = sor.u32 %s206, %s207
    %p209 = scmp.eq.s32.totalorder %s208, 0
    %s211 = sadd.s32 %s210, 1
    %s212 = scalar_select %p209, %s210, %s211
    %p215 = pneg %p209
    %p216 = scmp.eq.s32.totalorder %s18, 1
    %p217 = por %p215, %p216
    %p218 = scmp.ne.s32.totalorder %s210, %s213
    %p219 = scmp.eq.s32.totalorder %s18, 0
    %p220 = por %p218, %p219
    %p221 = scmp.ne.s32.totalorder %s210, %s213
    %p222 = scmp.eq.s32.totalorder %s23, 1
    %p223 = por %p221, %p222
    %p224 = scmp.ne.s32.totalorder %s213, %s214
    %p225 = scmp.eq.s32.totalorder %s23, 0
    %p226 = por %p224, %p225
    %p227 = scmp.ne.s32.totalorder %s213, %s214
    %p228 = scmp.eq.s32.totalorder %s24, 1
    %p229 = por %p227, %p228
    %p231 = scmp.ne.s32.totalorder %s214, %s230
    %p232 = scmp.eq.s32.totalorder %s24, 0
    %p233 = por %p231, %p232
    %s234 = ssub.s32 %s25, %s37
    %s235 = ssub.s32 %s26, %s33
    %s236 = sor.u32 %s234, %s235
    %p237 = scmp.eq.s32.totalorder %s236, 0
    %s239 = sadd.s32 %s238, 1
    %s240 = scalar_select %p237, %s238, %s239
    %p243 = pneg %p237
    %p244 = scmp.eq.s32.totalorder %s18, 1
    %p245 = por %p243, %p244
    %p246 = scmp.ne.s32.totalorder %s238, %s241
    %p247 = scmp.eq.s32.totalorder %s18, 0
    %p248 = por %p246, %p247
    %p249 = scmp.ne.s32.totalorder %s238, %s241
    %p250 = scmp.eq.s32.totalorder %s23, 1
    %p251 = por %p249, %p250
    %p252 = scmp.ne.s32.totalorder %s241, %s242
    %p253 = scmp.eq.s32.totalorder %s23, 0
    %p254 = por %p252, %p253
    %p255 = scmp.ne.s32.totalorder %s241, %s242
    %p256 = scmp.eq.s32.totalorder %s24, 1
    %p257 = por %p255, %p256
    %p259 = scmp.ne.s32.totalorder %s242, %s258
    %p260 = scmp.eq.s32.totalorder %s24, 0
    %p261 = por %p259, %p260
    %s262 = ssub.s32 %s25, %s37
    %s263 = ssub.s32 %s26, %s33
    %s264 = sor.u32 %s262, %s263
    %p265 = scmp.eq.s32.totalorder %s264, 0
    %s267 = sadd.s32 %s266, 1
    %s268 = scalar_select %p265, %s266, %s267
    %p271 = pneg %p265
    %p272 = scmp.eq.s32.totalorder %s18, 1
    %p273 = por %p271, %p272
    %p274 = scmp.ne.s32.totalorder %s266, %s269
    %p275 = scmp.eq.s32.totalorder %s18, 0
    %p276 = por %p274, %p275
    %p277 = scmp.ne.s32.totalorder %s266, %s269
    %p278 = scmp.eq.s32.totalorder %s23, 1
    %p279 = por %p277, %p278
    %p280 = scmp.ne.s32.totalorder %s269, %s270
    %p281 = scmp.eq.s32.totalorder %s23, 0
    %p282 = por %p280, %p281
    %p283 = scmp.ne.s32.totalorder %s269, %s270
    %p284 = scmp.eq.s32.totalorder %s24, 1
    %p285 = por %p283, %p284
    %p287 = scmp.ne.s32.totalorder %s270, %s286
    %p288 = scmp.eq.s32.totalorder %s24, 0
    %p289 = por %p287, %p288
    %s291 = sadd.s32 %s290, 1
    %p294 = scmp.eq.s32.totalorder %s18, 1
    %p295 = scmp.ne.s32.totalorder %s290, %s292
    %p296 = scmp.eq.s32.totalorder %s18, 0
    %p297 = por %p295, %p296
    %p298 = scmp.ne.s32.totalorder %s290, %s292
    %p299 = scmp.eq.s32.totalorder %s23, 1
    %p300 = por %p298, %p299
    %p301 = scmp.ne.s32.totalorder %s292, %s293
    %p302 = scmp.eq.s32.totalorder %s23, 0
    %p303 = por %p301, %p302
    %p304 = scmp.ne.s32.totalorder %s292, %s293
    %p305 = scmp.eq.s32.totalorder %s24, 1
    %p306 = por %p304, %p305
    %p308 = scmp.ne.s32.totalorder %s293, %s307
    %p309 = scmp.eq.s32.totalorder %s24, 0
    %p310 = por %p308, %p309
    %s311 = ssub.s32 %s25, %s37
    %s312 = ssub.s32 %s26, %s33
    %s313 = sor.u32 %s311, %s312
    %p314 = scmp.eq.s32.totalorder %s313, 0
    %s316 = sadd.s32 %s315, 1
    %s317 = scalar_select %p314, %s315, %s316
    %p320 = pneg %p314
    %p321 = scmp.eq.s32.totalorder %s18, 1
    %p322 = por %p320, %p321
    %p323 = scmp.ne.s32.totalorder %s315, %s318
    %p324 = scmp.eq.s32.totalorder %s18, 0
    %p325 = por %p323, %p324
    %p326 = scmp.ne.s32.totalorder %s315, %s318
    %p327 = scmp.eq.s32.totalorder %s23, 1
    %p328 = por %p326, %p327
    %p329 = scmp.ne.s32.totalorder %s318, %s319
    %p330 = scmp.eq.s32.totalorder %s23, 0
    %p331 = por %p329, %p330
    %p332 = scmp.ne.s32.totalorder %s318, %s319
    %p333 = scmp.eq.s32.totalorder %s24, 1
    %p334 = por %p332, %p333
    %p336 = scmp.ne.s32.totalorder %s319, %s335
    %p337 = scmp.eq.s32.totalorder %s24, 0
    %p338 = por %p336, %p337
    %s339 = ssub.s32 %s25, %s37
    %s340 = ssub.s32 %s26, %s33
    %s341 = sor.u32 %s339, %s340
    %p342 = scmp.eq.s32.totalorder %s341, 0
    %s344 = sadd.s32 %s343, 1
    %s345 = scalar_select %p342, %s343, %s344
    %p348 = pneg %p342
    %p349 = scmp.eq.s32.totalorder %s18, 1
    %p350 = por %p348, %p349
    %p351 = scmp.ne.s32.totalorder %s343, %s346
    %p352 = scmp.eq.s32.totalorder %s18, 0
    %p353 = por %p351, %p352
    %p354 = scmp.ne.s32.totalorder %s343, %s346
    %p355 = scmp.eq.s32.totalorder %s23, 1
    %p356 = por %p354, %p355
    %p357 = scmp.ne.s32.totalorder %s346, %s347
    %p358 = scmp.eq.s32.totalorder %s23, 0
    %p359 = por %p357, %p358
    %p360 = scmp.ne.s32.totalorder %s346, %s347
    %p361 = scmp.eq.s32.totalorder %s24, 1
    %p362 = por %p360, %p361
    %p364 = scmp.ne.s32.totalorder %s347, %s363
    %p365 = scmp.eq.s32.totalorder %s24, 0
    %p366 = por %p364, %p365
    %p367 = scmp.le.s32.totalorder 1, %s18
    %p368 = scmp.lt.s32.totalorder %s18, 3
    %p369 = pnand %p367, %p368
    %p370 = pneg %p369
    // Predicated region
    $region9: #{_lambda_.7} parent=5 // pred_check
      _
    $region10: #{_lambda_.7} parent=5 // pred_check_branch
      %372 = sbr.rel (%p369) target = $region12
    $region11: #{_lambda_.7} parent=5 // pred_region
      %s373 = ssub.s32 %s18, 1
      // Predicated region
      $region13: #{_lambda_.7} parent=11 // pred_check
        %p374 = pneg %p303
      $region14: #{_lambda_.7} parent=11 // pred_check_branch
        %376 = sbr.rel (%p374) target = $region16
      $region15: #{_lambda_.7} parent=11 // pred_region
        _
      $region16: #{_lambda_.7} parent=11 // pred_fallthru
        _
    $region12: #{_lambda_.7} parent=5 // pred_fallthru
      _
    %p377 = scmp.lt.s32.totalorder %s18, 2
    // Predicated region
    $region17: #{_lambda_.7} parent=5 // pred_check
      %p378 = pneg %p377
    $region18: #{_lambda_.7} parent=5 // pred_check_branch
      %380 = sbr.rel (%p378) target = $region20
    $region19: #{_lambda_.7} parent=5 // pred_region
      // Predicated region
      $region21: #{_lambda_.7} parent=19 // pred_check
        %p381 = pneg %p52
      $region22: #{_lambda_.7} parent=19 // pred_check_branch
        %383 = sbr.rel (%p381) target = $region24
      $region23: #{_lambda_.7} parent=19 // pred_region
        %p384 = scmp.lt.s32.totalorder %s25, 1
        %s385 = scalar_select %p384, %s25, 1
        %p386 = scmp.lt.s32.totalorder %s26, 0
        %s387 = scalar_select %p386, %s26, 0
        %s388 = smul.addr %s385, 8
        %s389 = sadd.s32 %s387, %s388
        %s390 = smul.addr %s389, 8
        %s391 = scalar_lea.vmem %s0, %s390
      $region24: #{_lambda_.7} parent=19 // pred_fallthru
        _
      // Predicated region
      $region25: #{_lambda_.7} parent=19 // pred_check
        %p392 = pneg %p80
      $region26: #{_lambda_.7} parent=19 // pred_check_branch
        %394 = sbr.rel (%p392) target = $region28
      $region27: #{_lambda_.7} parent=19 // pred_region
        %p395 = scmp.lt.s32.totalorder %s25, 1
        %s396 = scalar_select %p395, %s25, 1
        %p397 = scmp.lt.s32.totalorder %s26, 0
        %s398 = scalar_select %p397, %s26, 0
        %s399 = smul.addr %s398, 8
        %s400 = smul.addr %s396, 8
        %s401 = sadd.s32 %s399, %s400
        %s402 = smul.addr %s401, 8
        %s403 = scalar_lea.vmem %s1, %s402
      $region28: #{_lambda_.7} parent=19 // pred_fallthru
        _
      // Predicated region
      $region29: #{_lambda_.7} parent=19 // pred_check
        %p404 = pneg %p108
      $region30: #{_lambda_.7} parent=19 // pred_check_branch
        %406 = sbr.rel (%p404) target = $region32
      $region31: #{_lambda_.7} parent=19 // pred_region
        %p407 = scmp.lt.s32.totalorder %s25, 1
        %s408 = scalar_select %p407, %s25, 1
        %p409 = scmp.lt.s32.totalorder %s26, 0
        %s410 = scalar_select %p409, %s26, 0
        %s411 = smul.addr %s410, 8
        %s412 = smul.addr %s408, 8
        %s413 = sadd.s32 %s411, %s412
        %s414 = smul.addr %s413, 8
        %s415 = scalar_lea.vmem %s2, %s414
      $region32: #{_lambda_.7} parent=19 // pred_fallthru
        _
      // Predicated region
      $region33: #{_lambda_.7} parent=19 // pred_check
        %p416 = pneg %p136
      $region34: #{_lambda_.7} parent=19 // pred_check_branch
        %418 = sbr.rel (%p416) target = $region36
      $region35: #{_lambda_.7} parent=19 // pred_region
        %p419 = scmp.lt.s32.totalorder %s25, 1
        %s420 = scalar_select %p419, %s25, 1
        %p421 = scmp.lt.s32.totalorder %s26, 0
        %s422 = scalar_select %p421, %s26, 0
        %s423 = smul.addr %s422, 8
        %s424 = smul.addr %s420, 8
        %s425 = sadd.s32 %s423, %s424
        %s426 = smul.addr %s425, 8
        %s427 = scalar_lea.vmem %s3, %s426
      $region36: #{_lambda_.7} parent=19 // pred_fallthru
        _
      // Predicated region
      $region37: #{_lambda_.7} parent=19 // pred_check
        %p428 = pneg %p164
      $region38: #{_lambda_.7} parent=19 // pred_check_branch
        %430 = sbr.rel (%p428) target = $region40
      $region39: #{_lambda_.7} parent=19 // pred_region
        %p431 = scmp.lt.s32.totalorder %s25, 1
        %s432 = scalar_select %p431, %s25, 1
        %p433 = scmp.lt.s32.totalorder %s26, 0
        %s434 = scalar_select %p433, %s26, 0
        %s435 = smul.addr %s434, 8
        %s436 = smul.addr %s432, 8
        %s437 = sadd.s32 %s435, %s436
        %s438 = smul.addr %s437, 8
        %s439 = scalar_lea.vmem %s4, %s438
      $region40: #{_lambda_.7} parent=19 // pred_fallthru
        _
      // Predicated region
      $region41: #{_lambda_.7} parent=19 // pred_check
        %p440 = pneg %p192
      $region42: #{_lambda_.7} parent=19 // pred_check_branch
        %442 = sbr.rel (%p440) target = $region44
      $region43: #{_lambda_.7} parent=19 // pred_region
        %p443 = scmp.lt.s32.totalorder %s25, 1
        %s444 = scalar_select %p443, %s25, 1
        %p445 = scmp.lt.s32.totalorder %s26, 0
        %s446 = scalar_select %p445, %s26, 0
        %s447 = smul.addr %s446, 8
        %s448 = smul.addr %s444, 8
        %s449 = sadd.s32 %s447, %s448
        %s450 = smul.addr %s449, 8
        %s451 = scalar_lea.vmem %s5, %s450
      $region44: #{_lambda_.7} parent=19 // pred_fallthru
        _
      // Predicated region
      $region45: #{_lambda_.7} parent=19 // pred_check
        %p452 = pneg %p220
      $region46: #{_lambda_.7} parent=19 // pred_check_branch
        %454 = sbr.rel (%p452) target = $region48
      $region47: #{_lambda_.7} parent=19 // pred_region
        %p455 = scmp.lt.s32.totalorder %s25, 1
        %s456 = scalar_select %p455, %s25, 1
        %p457 = scmp.lt.s32.totalorder %s26, 0
        %s458 = scalar_select %p457, %s26, 0
        %s459 = smul.addr %s458, 8
        %s460 = smul.addr %s456, 8
        %s461 = sadd.s32 %s459, %s460
        %s462 = smul.addr %s461, 8
        %s463 = scalar_lea.vmem %s6, %s462
      $region48: #{_lambda_.7} parent=19 // pred_fallthru
        _
      // Predicated region
      $region49: #{_lambda_.7} parent=19 // pred_check
        %p464 = pneg %p248
      $region50: #{_lambda_.7} parent=19 // pred_check_branch
        %466 = sbr.rel (%p464) target = $region52
      $region51: #{_lambda_.7} parent=19 // pred_region
        %p467 = scmp.lt.s32.totalorder %s25, 1
        %s468 = scalar_select %p467, %s25, 1
        %p469 = scmp.lt.s32.totalorder %s26, 0
        %s470 = scalar_select %p469, %s26, 0
        %s471 = smul.addr %s470, 8
        %s472 = smul.addr %s468, 8
        %s473 = sadd.s32 %s471, %s472
        %s474 = smul.addr %s473, 8
        %s475 = scalar_lea.vmem %s7, %s474
      $region52: #{_lambda_.7} parent=19 // pred_fallthru
        _
      // Predicated region
      $region53: #{_lambda_.7} parent=19 // pred_check
        %p476 = pneg %p276
      $region54: #{_lambda_.7} parent=19 // pred_check_branch
        %478 = sbr.rel (%p476) target = $region56
      $region55: #{_lambda_.7} parent=19 // pred_region
        %p479 = scmp.lt.s32.totalorder %s25, 1
        %s480 = scalar_select %p479, %s25, 1
        %p481 = scmp.lt.s32.totalorder %s26, 0
        %s482 = scalar_select %p481, %s26, 0
        %s483 = smul.addr %s482, 8
        %s484 = smul.addr %s480, 8
        %s485 = sadd.s32 %s483, %s484
        %s486 = smul.addr %s485, 8
        %s487 = scalar_lea.vmem %s8, %s486
      $region56: #{_lambda_.7} parent=19 // pred_fallthru
        _
    $region20: #{_lambda_.7} parent=5 // pred_fallthru
      _
    %p488 = scmp.le.s32.totalorder 1, %s18
    %p489 = scmp.lt.s32.totalorder %s18, 3
    %p490 = pnand %p488, %p489
    %p491 = pneg %p490
    // Predicated region
    $region57: #{_lambda_.7} parent=5 // pred_check
      _
    $region58: #{_lambda_.7} parent=5 // pred_check_branch
      %493 = sbr.rel (%p490) target = $region60
    $region59: #{_lambda_.7} parent=5 // pred_region
      %s494 = ssub.s32 %s18, 1
      %p495 = scmp.lt.s32.totalorder %s27, 1
      %s496 = scalar_select %p495, %s27, 1
      %p497 = scmp.lt.s32.totalorder %s28, 0
      %s498 = scalar_select %p497, %s28, 0
      %s499 = smul.addr %s496, 8
      %s500 = sadd.s32 %s498, %s499
      %s501 = smul.addr %s500, 8
      %s502 = scalar_lea.vmem %s0, %s501
      %p503 = pneg %p58
      %p504 = pneg %p55
      %p505 = scmp.lt.s32.totalorder %s27, 1
      %s506 = scalar_select %p505, %s27, 1
      %p507 = scmp.lt.s32.totalorder %s28, 0
      %s508 = scalar_select %p507, %s28, 0
      %s509 = smul.addr %s508, 8
      %s510 = smul.addr %s506, 8
      %s511 = sadd.s32 %s509, %s510
      %s512 = smul.addr %s511, 8
      %s513 = scalar_lea.vmem %s1, %s512
      %p514 = pneg %p86
      %p515 = pneg %p83
      %p516 = scmp.lt.s32.totalorder %s27, 1
      %s517 = scalar_select %p516, %s27, 1
      %p518 = scmp.lt.s32.totalorder %s28, 0
      %s519 = scalar_select %p518, %s28, 0
      %s520 = smul.addr %s519, 8
      %s521 = smul.addr %s517, 8
      %s522 = sadd.s32 %s520, %s521
      %s523 = smul.addr %s522, 8
      %s524 = scalar_lea.vmem %s2, %s523
      %p525 = pneg %p114
      %p526 = pneg %p111
      %p527 = scmp.lt.s32.totalorder %s27, 1
      %s528 = scalar_select %p527, %s27, 1
      %p529 = scmp.lt.s32.totalorder %s28, 0
      %s530 = scalar_select %p529, %s28, 0
      %s531 = smul.addr %s530, 8
      %s532 = smul.addr %s528, 8
      %s533 = sadd.s32 %s531, %s532
      %s534 = smul.addr %s533, 8
      %s535 = scalar_lea.vmem %s3, %s534
      %p536 = pneg %p142
      %p537 = pneg %p139
      %p538 = scmp.lt.s32.totalorder %s27, 1
      %s539 = scalar_select %p538, %s27, 1
      %p540 = scmp.lt.s32.totalorder %s28, 0
      %s541 = scalar_select %p540, %s28, 0
      %s542 = smul.addr %s541, 8
      %s543 = smul.addr %s539, 8
      %s544 = sadd.s32 %s542, %s543
      %s545 = smul.addr %s544, 8
      %s546 = scalar_lea.vmem %s4, %s545
      %p547 = pneg %p170
      %p548 = pneg %p167
      %p549 = scmp.lt.s32.totalorder %s27, 1
      %s550 = scalar_select %p549, %s27, 1
      %p551 = scmp.lt.s32.totalorder %s28, 0
      %s552 = scalar_select %p551, %s28, 0
      %s553 = smul.addr %s552, 8
      %s554 = smul.addr %s550, 8
      %s555 = sadd.s32 %s553, %s554
      %s556 = smul.addr %s555, 8
      %s557 = scalar_lea.vmem %s5, %s556
      %p558 = pneg %p198
      %p559 = pneg %p195
      %p560 = scmp.lt.s32.totalorder %s27, 1
      %s561 = scalar_select %p560, %s27, 1
      %p562 = scmp.lt.s32.totalorder %s28, 0
      %s563 = scalar_select %p562, %s28, 0
      %s564 = smul.addr %s563, 8
      %s565 = smul.addr %s561, 8
      %s566 = sadd.s32 %s564, %s565
      %s567 = smul.addr %s566, 8
      %s568 = scalar_lea.vmem %s6, %s567
      %p569 = pneg %p226
      %p570 = pneg %p223
      %p571 = scmp.lt.s32.totalorder %s27, 1
      %s572 = scalar_select %p571, %s27, 1
      %p573 = scmp.lt.s32.totalorder %s28, 0
      %s574 = scalar_select %p573, %s28, 0
      %s575 = smul.addr %s574, 8
      %s576 = smul.addr %s572, 8
      %s577 = sadd.s32 %s575, %s576
      %s578 = smul.addr %s577, 8
      %s579 = scalar_lea.vmem %s7, %s578
      %p580 = pneg %p254
      %p581 = pneg %p251
      %p582 = scmp.lt.s32.totalorder %s27, 1
      %s583 = scalar_select %p582, %s27, 1
      %p584 = scmp.lt.s32.totalorder %s28, 0
      %s585 = scalar_select %p584, %s28, 0
      %s586 = smul.addr %s585, 8
      %s587 = smul.addr %s583, 8
      %s588 = sadd.s32 %s586, %s587
      %s589 = smul.addr %s588, 8
      %s590 = scalar_lea.vmem %s8, %s589
      %p591 = pneg %p282
      %p592 = pneg %p279
      %p593 = pneg %p303
      %p594 = pneg %p300
      %p595 = pneg %p331
      %p596 = pneg %p328
      %p597 = scmp.lt.s32.totalorder %s27, 1
      %s598 = scalar_select %p597, %s27, 1
      %p599 = scmp.lt.s32.totalorder %s28, 0
      %s600 = scalar_select %p599, %s28, 0
      %s601 = smul.addr %s598, 8
      %s602 = sadd.s32 %s600, %s601
      %s603 = smul.addr %s602, 8
      %s604 = scalar_lea.vmem %s10, %s603
      %p605 = pneg %p359
      %p606 = pneg %p356
      %p607 = scmp.lt.s32.totalorder %s27, 1
      %s608 = scalar_select %p607, %s27, 1
      %p609 = scmp.lt.s32.totalorder %s28, 0
      %s610 = scalar_select %p609, %s28, 0
      %s611 = smul.addr %s608, 8
      %s612 = sadd.s32 %s610, %s611
      %s613 = smul.addr %s612, 8
      %s614 = scalar_lea.vmem %s11, %s613
      %p615 = scmp.lt.s32.totalorder %s27, 1
      %s616 = scalar_select %p615, %s27, 1
      %p617 = scmp.lt.s32.totalorder %s28, 0
      %s618 = scalar_select %p617, %s28, 0
      %s619 = smul.addr %s616, 8
      %s620 = sadd.s32 %s618, %s619
      %s621 = smul.addr %s620, 8
      %s622 = scalar_lea.vmem %s0, %s621
      %p623 = scmp.lt.s32.totalorder %s27, 1
      %s624 = scalar_select %p623, %s27, 1
      %p625 = scmp.lt.s32.totalorder %s28, 0
      %s626 = scalar_select %p625, %s28, 0
      %s627 = smul.addr %s626, 8
      %s628 = smul.addr %s624, 8
      %s629 = sadd.s32 %s627, %s628
      %s630 = smul.addr %s629, 8
      %s631 = scalar_lea.vmem %s1, %s630
      %p632 = scmp.lt.s32.totalorder %s27, 1
      %s633 = scalar_select %p632, %s27, 1
      %p634 = scmp.lt.s32.totalorder %s28, 0
      %s635 = scalar_select %p634, %s28, 0
      %s636 = smul.addr %s635, 8
      %s637 = smul.addr %s633, 8
      %s638 = sadd.s32 %s636, %s637
      %s639 = smul.addr %s638, 8
      %s640 = scalar_lea.vmem %s2, %s639
      %p641 = scmp.lt.s32.totalorder %s27, 1
      %s642 = scalar_select %p641, %s27, 1
      %p643 = scmp.lt.s32.totalorder %s28, 0
      %s644 = scalar_select %p643, %s28, 0
      %s645 = smul.addr %s644, 8
      %s646 = smul.addr %s642, 8
      %s647 = sadd.s32 %s645, %s646
      %s648 = smul.addr %s647, 8
      %s649 = scalar_lea.vmem %s3, %s648
      %p650 = scmp.lt.s32.totalorder %s27, 1
      %s651 = scalar_select %p650, %s27, 1
      %p652 = scmp.lt.s32.totalorder %s28, 0
      %s653 = scalar_select %p652, %s28, 0
      %s654 = smul.addr %s653, 8
      %s655 = smul.addr %s651, 8
      %s656 = sadd.s32 %s654, %s655
      %s657 = smul.addr %s656, 8
      %s658 = scalar_lea.vmem %s4, %s657
      %p659 = scmp.lt.s32.totalorder %s27, 1
      %s660 = scalar_select %p659, %s27, 1
      %p661 = scmp.lt.s32.totalorder %s28, 0
      %s662 = scalar_select %p661, %s28, 0
      %s663 = smul.addr %s662, 8
      %s664 = smul.addr %s660, 8
      %s665 = sadd.s32 %s663, %s664
      %s666 = smul.addr %s665, 8
      %s667 = scalar_lea.vmem %s5, %s666
      %p668 = scmp.lt.s32.totalorder %s27, 1
      %s669 = scalar_select %p668, %s27, 1
      %p670 = scmp.lt.s32.totalorder %s28, 0
      %s671 = scalar_select %p670, %s28, 0
      %s672 = smul.addr %s671, 8
      %s673 = smul.addr %s669, 8
      %s674 = sadd.s32 %s672, %s673
      %s675 = smul.addr %s674, 8
      %s676 = scalar_lea.vmem %s6, %s675
      %p677 = scmp.lt.s32.totalorder %s27, 1
      %s678 = scalar_select %p677, %s27, 1
      %p679 = scmp.lt.s32.totalorder %s28, 0
      %s680 = scalar_select %p679, %s28, 0
      %s681 = smul.addr %s680, 8
      %s682 = smul.addr %s678, 8
      %s683 = sadd.s32 %s681, %s682
      %s684 = smul.addr %s683, 8
      %s685 = scalar_lea.vmem %s7, %s684
      %p686 = scmp.lt.s32.totalorder %s27, 1
      %s687 = scalar_select %p686, %s27, 1
      %p688 = scmp.lt.s32.totalorder %s28, 0
      %s689 = scalar_select %p688, %s28, 0
      %s690 = smul.addr %s689, 8
      %s691 = smul.addr %s687, 8
      %s692 = sadd.s32 %s690, %s691
      %s693 = smul.addr %s692, 8
      %s694 = scalar_lea.vmem %s8, %s693
      %p695 = scmp.lt.s32.totalorder %s27, 1
      %s696 = scalar_select %p695, %s27, 1
      %p697 = scmp.lt.s32.totalorder %s28, 0
      %s698 = scalar_select %p697, %s28, 0
      %s699 = smul.addr %s696, 8
      %s700 = sadd.s32 %s698, %s699
      %s701 = smul.addr %s700, 8
      %s702 = scalar_lea.vmem %s10, %s701
      %p703 = scmp.lt.s32.totalorder %s27, 1
      %s704 = scalar_select %p703, %s27, 1
      %p705 = scmp.lt.s32.totalorder %s28, 0
      %s706 = scalar_select %p705, %s28, 0
      %s707 = smul.addr %s704, 8
      %s708 = sadd.s32 %s706, %s707
      %s709 = smul.addr %s708, 8
      %s710 = scalar_lea.vmem %s11, %s709
      %v711 = vld [vmem:[%s622] sm:$0xff]
      %v712 = vld [vmem:[%s622 + $0x8] sm:$0xff]
      %v713 = vld [vmem:[%s622 + $0x10] sm:$0xff]
      %v714 = vld [vmem:[%s622 + $0x18] sm:$0xff]
      %v715 = vld [vmem:[%s622 + $0x20] sm:$0xff]
      %v716 = vld [vmem:[%s622 + $0x28] sm:$0xff]
      %v717 = vld [vmem:[%s622 + $0x30] sm:$0xff]
      %v718 = vld [vmem:[%s622 + $0x38] sm:$0xff]
      %v719 = vld [vmem:[%s9] sm:$0xf]
      %v720 = vlaneseq
      %v721 = vshrl.u32 %v720, 7
      %v722 = vadd.s32 %v721, 8
      %v723 = vadd.s32 %v721, 16
      %v724 = vadd.s32 %v721, 24
      %v725 = vadd.s32 %v721, 32
      %v726 = vadd.s32 %v721, 40
      %v727 = vadd.s32 %v721, 48
      %v728 = vadd.s32 %v721, 56
      %v729 = vlaneseq
      %v730 = vand.u32 %v729, 127
      %v731 = vld [vmem:[%s676] sm:$0xff]
      %v732 = vld [vmem:[%s676 + $0x8] sm:$0xff]
      %v733 = vld [vmem:[%s676 + $0x10] sm:$0xff]
      %v734 = vld [vmem:[%s676 + $0x18] sm:$0xff]
      %v735 = vld [vmem:[%s676 + $0x20] sm:$0xff]
      %v736 = vld [vmem:[%s676 + $0x28] sm:$0xff]
      %v737 = vld [vmem:[%s676 + $0x30] sm:$0xff]
      %v738 = vld [vmem:[%s676 + $0x38] sm:$0xff]
      %v739 = vld [vmem:[%s667] sm:$0xff]
      %v740 = vld [vmem:[%s667 + $0x8] sm:$0xff]
      %v741 = vld [vmem:[%s667 + $0x10] sm:$0xff]
      %v742 = vld [vmem:[%s667 + $0x18] sm:$0xff]
      %v743 = vld [vmem:[%s667 + $0x20] sm:$0xff]
      %v744 = vld [vmem:[%s667 + $0x28] sm:$0xff]
      %v745 = vld [vmem:[%s667 + $0x30] sm:$0xff]
      %v746 = vld [vmem:[%s667 + $0x38] sm:$0xff]
      %vm747 = vcmask 130048
      %v749 = vsel %vm747, %v731, 0
      %v752 = vsel %vm747, %v732, 0
      %v755 = vsel %vm747, %v733, 0
      %v758 = vsel %vm747, %v734, 0
      %v761 = vsel %vm747, %v735, 0
      %v764 = vsel %vm747, %v736, 0
      %v767 = vsel %vm747, %v737, 0
      %v770 = vsel %vm747, %v738, 0
      %v773 = vsel %vm747, %v739, 0
      %v776 = vsel %vm747, %v740, 0
      %v779 = vsel %vm747, %v741, 0
      %v782 = vsel %vm747, %v742, 0
      %v785 = vsel %vm747, %v743, 0
      %v788 = vsel %vm747, %v744, 0
      %v791 = vsel %vm747, %v745, 0
      %v794 = vsel %vm747, %v746, 0
      %796 = vmatpush.xpose.msra.mxu0 0.0
      %797 = vmatpush.xpose.msra.mxu0 0.0
      %798 = vmatpush.xpose.msra.mxu0 0.0
      %799 = vmatpush.xpose.msra.mxu0 0.0
      %800 = vmatpush.xpose.msra.mxu0 0.0
      %801 = vmatpush.xpose.msra.mxu0 0.0
      %802 = vmatpush.xpose.msra.mxu0 0.0
      %803 = vmatpush.xpose.msra.mxu0 0.0
      %804 = vmatpush.xpose.msra.mxu0 %v794
      %805 = vmatpush.xpose.msra.mxu0 %v791
      %806 = vmatpush.xpose.msra.mxu0 %v788
      %807 = vmatpush.xpose.msra.mxu0 %v785
      %808 = vmatpush.xpose.msra.mxu0 %v782
      %809 = vmatpush.xpose.msra.mxu0 %v779
      %810 = vmatpush.xpose.msra.mxu0 %v776
      %811 = vmatpush.xpose.msra.mxu0 %v773
      %812 = vmatmul.f32.gmra.mxu0 %v749
      %v813 = vpop.f32.mrf.mxu0
      %v814 = vadd.f32 0.0, %v813
      %815 = vmatmul.f32.gmra.mxu0 %v752
      %v816 = vpop.f32.mrf.mxu0
      %v817 = vadd.f32 0.0, %v816
      %818 = vmatmul.f32.gmra.mxu0 %v755
      %v819 = vpop.f32.mrf.mxu0
      %v820 = vadd.f32 0.0, %v819
      %821 = vmatmul.f32.gmra.mxu0 %v758
      %v822 = vpop.f32.mrf.mxu0
      %v823 = vadd.f32 0.0, %v822
      %824 = vmatmul.f32.gmra.mxu0 %v761
      %v825 = vpop.f32.mrf.mxu0
      %v826 = vadd.f32 0.0, %v825
      %827 = vmatmul.f32.gmra.mxu0 %v764
      %v828 = vpop.f32.mrf.mxu0
      %v829 = vadd.f32 0.0, %v828
      %830 = vmatmul.f32.gmra.mxu0 %v767
      %v831 = vpop.f32.mrf.mxu0
      %v832 = vadd.f32 0.0, %v831
      %833 = vmatmul.f32.gmra.mxu0 %v770
      %v834 = vpop.f32.mrf.mxu0
      %v835 = vadd.f32 0.0, %v834
      %836 = vdwg.mxu0
      %vm837 = vcmp.ge.s32.totalorder %v721, %v730
      %vm838 = vcmp.ge.s32.totalorder %v722, %v730
      %vm839 = vcmp.ge.s32.totalorder %v723, %v730
      %vm840 = vcmp.ge.s32.totalorder %v724, %v730
      %vm841 = vcmp.ge.s32.totalorder %v725, %v730
      %vm842 = vcmp.ge.s32.totalorder %v726, %v730
      %vm843 = vcmp.ge.s32.totalorder %v727, %v730
      %vm844 = vcmp.ge.s32.totalorder %v728, %v730
      %v845 = vsel %vm837, %v814, 0.0
      %v846 = vsel %vm838, %v817, 0.0
      %v847 = vsel %vm839, %v820, 0.0
      %v848 = vsel %vm840, %v823, 0.0
      %v849 = vsel %vm841, %v826, 0.0
      %v850 = vsel %vm842, %v829, 0.0
      %v851 = vsel %vm843, %v832, 0.0
      %v852 = vsel %vm844, %v835, 0.0
      %v853 = vld [vmem:[%s649] sm:$0xff]
      %v854 = vld [vmem:[%s649 + $0x8] sm:$0xff]
      %v855 = vld [vmem:[%s649 + $0x10] sm:$0xff]
      %v856 = vld [vmem:[%s649 + $0x18] sm:$0xff]
      %v857 = vld [vmem:[%s649 + $0x20] sm:$0xff]
      %v858 = vld [vmem:[%s649 + $0x28] sm:$0xff]
      %v859 = vld [vmem:[%s649 + $0x30] sm:$0xff]
      %v860 = vld [vmem:[%s649 + $0x38] sm:$0xff]
      %vm861 = vcmask 31744
      %v862 = vsel %vm861, %v853, -inf
      %v863 = vsel %vm861, %v854, -inf
      %v864 = vsel %vm861, %v855, -inf
      %v865 = vsel %vm861, %v856, -inf
      %v866 = vsel %vm861, %v857, -inf
      %v867 = vmax.f32 %v862, %v866
      %v868 = vsel %vm861, %v858, -inf
      %v869 = vmax.f32 %v863, %v868
      %v870 = vsel %vm861, %v859, -inf
      %v871 = vmax.f32 %v864, %v870
      %v872 = vsel %vm861, %v860, -inf
      %v873 = vmax.f32 %v865, %v872
      %v874 = vmax.f32 %v867, %v869
      %v875 = vmax.f32 %v871, %v873
      %v876 = vmax.f32 %v874, %v875
      %v877 = vrot.slane %v876, 4
      %v878 = vmax.f32 %v876, %v877
      %v879 = vrot.slane %v878, 2
      %v880 = vmax.f32 %v878, %v879
      %v881 = vrot.slane %v880, 1
      %v882 = vmax.f32 %v880, %v881
      %v883 = vsub.f32 %v882, %v853
      %v884 = vsub.f32 %v882, %v854
      %v885 = vsub.f32 %v882, %v855
      %v886 = vsub.f32 %v882, %v856
      %v887 = vsub.f32 %v882, %v857
      %v888 = vsub.f32 %v882, %v858
      %v889 = vsub.f32 %v882, %v859
      %v890 = vsub.f32 %v882, %v860
      %v891 = vmin.f32 %v883, 80.0
      %v892 = vmin.f32 %v884, 80.0
      %v893 = vmin.f32 %v885, 80.0
      %v894 = vmin.f32 %v886, 80.0
      %v895 = vmin.f32 %v887, 80.0
      %v896 = vmin.f32 %v888, 80.0
      %v897 = vmin.f32 %v889, 80.0
      %v898 = vmin.f32 %v890, 80.0
      %v899 = vmul.f32 %v891, 1.442695
      %v900 = vpow.pop %v899
      %v901 = vmul.f32 %v892, 1.442695
      %v902 = vpow.pop %v901
      %v903 = vmul.f32 %v893, 1.442695
      %v904 = vpow.pop %v903
      %v905 = vmul.f32 %v894, 1.442695
      %v906 = vpow.pop %v905
      %v907 = vmul.f32 %v895, 1.442695
      %v908 = vpow.pop %v907
      %v909 = vmul.f32 %v896, 1.442695
      %v910 = vpow.pop %v909
      %v911 = vmul.f32 %v897, 1.442695
      %v912 = vpow.pop %v911
      %v913 = vmul.f32 %v898, 1.442695
      %v914 = vpow.pop %v913
      %v915 = vld [vmem:[%s631] sm:$0xff]
      %v916 = vld [vmem:[%s631 + $0x8] sm:$0xff]
      %v917 = vld [vmem:[%s631 + $0x10] sm:$0xff]
      %v918 = vld [vmem:[%s631 + $0x18] sm:$0xff]
      %v919 = vld [vmem:[%s631 + $0x20] sm:$0xff]
      %v920 = vld [vmem:[%s631 + $0x28] sm:$0xff]
      %v921 = vld [vmem:[%s631 + $0x30] sm:$0xff]
      %v922 = vld [vmem:[%s631 + $0x38] sm:$0xff]
      %v923 = vmul.f32 %v900, %v915
      %v924 = vmul.f32 %v902, %v916
      %v925 = vmul.f32 %v904, %v917
      %v926 = vmul.f32 %v906, %v918
      %v927 = vmul.f32 %v908, %v919
      %v928 = vmul.f32 %v910, %v920
      %v929 = vmul.f32 %v912, %v921
      %v930 = vmul.f32 %v914, %v922
      %v931 = vsub.f32 %v853, %v882
      %v932 = vsub.f32 %v854, %v882
      %v933 = vsub.f32 %v855, %v882
      %v934 = vsub.f32 %v856, %v882
      %v935 = vsub.f32 %v857, %v882
      %v936 = vsub.f32 %v858, %v882
      %v937 = vsub.f32 %v859, %v882
      %v938 = vsub.f32 %v860, %v882
      %v939 = vmul.f32 %v931, 1.442695
      %v940 = vpow.pop %v939
      %v941 = vmul.f32 %v932, 1.442695
      %v942 = vpow.pop %v941
      %v943 = vmul.f32 %v933, 1.442695
      %v944 = vpow.pop %v943
      %v945 = vmul.f32 %v934, 1.442695
      %v946 = vpow.pop %v945
      %v947 = vmul.f32 %v935, 1.442695
      %v948 = vpow.pop %v947
      %v949 = vmul.f32 %v936, 1.442695
      %v950 = vpow.pop %v949
      %v951 = vmul.f32 %v937, 1.442695
      %v952 = vpow.pop %v951
      %v953 = vmul.f32 %v938, 1.442695
      %v954 = vpow.pop %v953
      %v956 = vsel %vm861, %v923, 0
      %v959 = vsel %vm861, %v924, 0
      %v962 = vsel %vm861, %v925, 0
      %v965 = vsel %vm861, %v926, 0
      %v968 = vsel %vm861, %v927, 0
      %v971 = vsel %vm861, %v928, 0
      %v974 = vsel %vm861, %v929, 0
      %v977 = vsel %vm861, %v930, 0
      %vm979 = vcmask 1043456
      %v981 = vsel %vm979, %v719, 0
      %983 = vmatpush.msra.mxu0 0.0
      %984 = vmatpush.msra.mxu0 0.0
      %985 = vmatpush.msra.mxu0 0.0
      %986 = vmatpush.msra.mxu0 0.0
      %987 = vmatpush.msra.mxu0 0.0
      %988 = vmatpush.msra.mxu0 0.0
      %989 = vmatpush.msra.mxu0 0.0
      %990 = vmatpush.msra.mxu0 0.0
      %991 = vmatpush.msra.mxu0 0.0
      %992 = vmatpush.msra.mxu0 0.0
      %993 = vmatpush.msra.mxu0 0.0
      %994 = vmatpush.msra.mxu0 0.0
      %995 = vmatpush.msra.mxu0 0.0
      %996 = vmatpush.msra.mxu0 0.0
      %997 = vmatpush.msra.mxu0 0.0
      %998 = vmatpush.msra.mxu0 %v981
      %999 = vmatmul.f32.gmra.mxu0 %v956
      %v1000 = vpop.f32.mrf.mxu0
      %v1001 = vadd.f32 0.0, %v1000
      %1002 = vmatmul.f32.gmra.mxu0 %v959
      %v1003 = vpop.f32.mrf.mxu0
      %v1004 = vadd.f32 0.0, %v1003
      %1005 = vmatmul.f32.gmra.mxu0 %v962
      %v1006 = vpop.f32.mrf.mxu0
      %v1007 = vadd.f32 0.0, %v1006
      %1008 = vmatmul.f32.gmra.mxu0 %v965
      %v1009 = vpop.f32.mrf.mxu0
      %v1010 = vadd.f32 0.0, %v1009
      %1011 = vmatmul.f32.gmra.mxu0 %v968
      %v1012 = vpop.f32.mrf.mxu0
      %v1013 = vadd.f32 0.0, %v1012
      %1014 = vmatmul.f32.gmra.mxu0 %v971
      %v1015 = vpop.f32.mrf.mxu0
      %v1016 = vadd.f32 0.0, %v1015
      %1017 = vmatmul.f32.gmra.mxu0 %v974
      %v1018 = vpop.f32.mrf.mxu0
      %v1019 = vadd.f32 0.0, %v1018
      %1020 = vmatmul.f32.gmra.mxu0 %v977
      %v1021 = vpop.f32.mrf.mxu0
      %v1022 = vadd.f32 0.0, %v1021
      %1023 = vdwg.mxu0
      %v1025 = vsel %vm861, %v940, 0
      %v1028 = vsel %vm861, %v942, 0
      %v1031 = vsel %vm861, %v944, 0
      %v1034 = vsel %vm861, %v946, 0
      %v1037 = vsel %vm861, %v948, 0
      %v1040 = vsel %vm861, %v950, 0
      %v1043 = vsel %vm861, %v952, 0
      %v1046 = vsel %vm861, %v954, 0
      %1048 = vmatpush.msra.mxu0 0.0
      %1049 = vmatpush.msra.mxu0 0.0
      %1050 = vmatpush.msra.mxu0 0.0
      %1051 = vmatpush.msra.mxu0 0.0
      %1052 = vmatpush.msra.mxu0 0.0
      %1053 = vmatpush.msra.mxu0 0.0
      %1054 = vmatpush.msra.mxu0 0.0
      %1055 = vmatpush.msra.mxu0 0.0
      %1056 = vmatpush.msra.mxu0 0.0
      %1057 = vmatpush.msra.mxu0 0.0
      %1058 = vmatpush.msra.mxu0 0.0
      %1059 = vmatpush.msra.mxu0 0.0
      %1060 = vmatpush.msra.mxu0 0.0
      %1061 = vmatpush.msra.mxu0 0.0
      %1062 = vmatpush.msra.mxu0 0.0
      %1063 = vmatpush.msra.mxu0 %v981
      %1064 = vmatmul.f32.gmra.mxu0 %v1025
      %v1065 = vpop.f32.mrf.mxu0
      %v1066 = vadd.f32 0.0, %v1065
      %1067 = vmatmul.f32.gmra.mxu0 %v1028
      %v1068 = vpop.f32.mrf.mxu0
      %v1069 = vadd.f32 0.0, %v1068
      %1070 = vmatmul.f32.gmra.mxu0 %v1031
      %v1071 = vpop.f32.mrf.mxu0
      %v1072 = vadd.f32 0.0, %v1071
      %1073 = vmatmul.f32.gmra.mxu0 %v1034
      %v1074 = vpop.f32.mrf.mxu0
      %v1075 = vadd.f32 0.0, %v1074
      %1076 = vmatmul.f32.gmra.mxu0 %v1037
      %v1077 = vpop.f32.mrf.mxu0
      %v1078 = vadd.f32 0.0, %v1077
      %1079 = vmatmul.f32.gmra.mxu0 %v1040
      %v1080 = vpop.f32.mrf.mxu0
      %v1081 = vadd.f32 0.0, %v1080
      %1082 = vmatmul.f32.gmra.mxu0 %v1043
      %v1083 = vpop.f32.mrf.mxu0
      %v1084 = vadd.f32 0.0, %v1083
      %1085 = vmatmul.f32.gmra.mxu0 %v1046
      %v1086 = vpop.f32.mrf.mxu0
      %v1087 = vadd.f32 0.0, %v1086
      %1088 = vdwg.mxu0
      %v1089 = vmul.f32 %v711, %v1001
      %v1090 = vmul.f32 %v712, %v1004
      %v1091 = vmul.f32 %v713, %v1007
      %v1092 = vmul.f32 %v714, %v1010
      %v1093 = vmul.f32 %v715, %v1013
      %v1094 = vmul.f32 %v716, %v1016
      %v1095 = vmul.f32 %v717, %v1019
      %v1096 = vmul.f32 %v718, %v1022
      %vm1097 = vcmask 523264
      %v1099 = vsel %vm1097, %v845, 0
      %v1102 = vsel %vm1097, %v846, 0
      %v1105 = vsel %vm1097, %v847, 0
      %v1108 = vsel %vm1097, %v848, 0
      %v1111 = vsel %vm1097, %v849, 0
      %v1114 = vsel %vm1097, %v850, 0
      %v1117 = vsel %vm1097, %v851, 0
      %v1120 = vsel %vm1097, %v852, 0
      %1122 = vmatpush.msra.mxu0 0.0
      %1123 = vmatpush.msra.mxu0 0.0
      %1124 = vmatpush.msra.mxu0 0.0
      %1125 = vmatpush.msra.mxu0 0.0
      %1126 = vmatpush.msra.mxu0 0.0
      %1127 = vmatpush.msra.mxu0 0.0
      %1128 = vmatpush.msra.mxu0 0.0
      %1129 = vmatpush.msra.mxu0 0.0
      %1130 = vmatpush.msra.mxu0 %v1096
      %1131 = vmatpush.msra.mxu0 %v1095
      %1132 = vmatpush.msra.mxu0 %v1094
      %1133 = vmatpush.msra.mxu0 %v1093
      %1134 = vmatpush.msra.mxu0 %v1092
      %1135 = vmatpush.msra.mxu0 %v1091
      %1136 = vmatpush.msra.mxu0 %v1090
      %1137 = vmatpush.msra.mxu0 %v1089
      %1138 = vmatmul.f32.gmra.mxu0 %v1099
      %v1139 = vpop.f32.mrf.mxu0
      %v1140 = vadd.f32 0.0, %v1139
      %1141 = vmatmul.f32.gmra.mxu0 %v1102
      %v1142 = vpop.f32.mrf.mxu0
      %v1143 = vadd.f32 0.0, %v1142
      %1144 = vmatmul.f32.gmra.mxu0 %v1105
      %v1145 = vpop.f32.mrf.mxu0
      %v1146 = vadd.f32 0.0, %v1145
      %1147 = vmatmul.f32.gmra.mxu0 %v1108
      %v1148 = vpop.f32.mrf.mxu0
      %v1149 = vadd.f32 0.0, %v1148
      %1150 = vmatmul.f32.gmra.mxu0 %v1111
      %v1151 = vpop.f32.mrf.mxu0
      %v1152 = vadd.f32 0.0, %v1151
      %1153 = vmatmul.f32.gmra.mxu0 %v1114
      %v1154 = vpop.f32.mrf.mxu0
      %v1155 = vadd.f32 0.0, %v1154
      %1156 = vmatmul.f32.gmra.mxu0 %v1117
      %v1157 = vpop.f32.mrf.mxu0
      %v1158 = vadd.f32 0.0, %v1157
      %1159 = vmatmul.f32.gmra.mxu0 %v1120
      %v1160 = vpop.f32.mrf.mxu0
      %v1161 = vadd.f32 0.0, %v1160
      %1162 = vdwg.mxu0
      %v1163 = vmul.f32 %v1066, %v1140
      %v1164 = vmul.f32 %v1069, %v1143
      %v1165 = vmul.f32 %v1072, %v1146
      %v1166 = vmul.f32 %v1075, %v1149
      %v1167 = vmul.f32 %v1078, %v1152
      %v1168 = vmul.f32 %v1081, %v1155
      %v1169 = vmul.f32 %v1084, %v1158
      %v1170 = vmul.f32 %v1087, %v1161
      %v1171 = vld [vmem:[%s694] sm:$0xff]
      %v1172 = vld [vmem:[%s694 + $0x8] sm:$0xff]
      %v1173 = vld [vmem:[%s694 + $0x10] sm:$0xff]
      %v1174 = vld [vmem:[%s694 + $0x18] sm:$0xff]
      %v1175 = vld [vmem:[%s694 + $0x20] sm:$0xff]
      %v1176 = vld [vmem:[%s694 + $0x28] sm:$0xff]
      %v1177 = vld [vmem:[%s694 + $0x30] sm:$0xff]
      %v1178 = vld [vmem:[%s694 + $0x38] sm:$0xff]
      %v1179 = vld [vmem:[%s685] sm:$0xff]
      %v1180 = vld [vmem:[%s685 + $0x8] sm:$0xff]
      %v1181 = vld [vmem:[%s685 + $0x10] sm:$0xff]
      %v1182 = vld [vmem:[%s685 + $0x18] sm:$0xff]
      %v1183 = vld [vmem:[%s685 + $0x20] sm:$0xff]
      %v1184 = vld [vmem:[%s685 + $0x28] sm:$0xff]
      %v1185 = vld [vmem:[%s685 + $0x30] sm:$0xff]
      %v1186 = vld [vmem:[%s685 + $0x38] sm:$0xff]
      %v1188 = vsel %vm747, %v1171, 0
      %v1191 = vsel %vm747, %v1172, 0
      %v1194 = vsel %vm747, %v1173, 0
      %v1197 = vsel %vm747, %v1174, 0
      %v1200 = vsel %vm747, %v1175, 0
      %v1203 = vsel %vm747, %v1176, 0
      %v1206 = vsel %vm747, %v1177, 0
      %v1209 = vsel %vm747, %v1178, 0
      %v1212 = vsel %vm747, %v1179, 0
      %v1215 = vsel %vm747, %v1180, 0
      %v1218 = vsel %vm747, %v1181, 0
      %v1221 = vsel %vm747, %v1182, 0
      %v1224 = vsel %vm747, %v1183, 0
      %v1227 = vsel %vm747, %v1184, 0
      %v1230 = vsel %vm747, %v1185, 0
      %v1233 = vsel %vm747, %v1186, 0
      %1235 = vmatpush.xpose.msra.mxu0 0.0
      %1236 = vmatpush.xpose.msra.mxu0 0.0
      %1237 = vmatpush.xpose.msra.mxu0 0.0
      %1238 = vmatpush.xpose.msra.mxu0 0.0
      %1239 = vmatpush.xpose.msra.mxu0 0.0
      %1240 = vmatpush.xpose.msra.mxu0 0.0
      %1241 = vmatpush.xpose.msra.mxu0 0.0
      %1242 = vmatpush.xpose.msra.mxu0 0.0
      %1243 = vmatpush.xpose.msra.mxu0 %v1233
      %1244 = vmatpush.xpose.msra.mxu0 %v1230
      %1245 = vmatpush.xpose.msra.mxu0 %v1227
      %1246 = vmatpush.xpose.msra.mxu0 %v1224
      %1247 = vmatpush.xpose.msra.mxu0 %v1221
      %1248 = vmatpush.xpose.msra.mxu0 %v1218
      %1249 = vmatpush.xpose.msra.mxu0 %v1215
      %1250 = vmatpush.xpose.msra.mxu0 %v1212
      %1251 = vmatmul.f32.gmra.mxu0 %v1188
      %v1252 = vpop.f32.mrf.mxu0
      %v1253 = vadd.f32 0.0, %v1252
      %1254 = vmatmul.f32.gmra.mxu0 %v1191
      %v1255 = vpop.f32.mrf.mxu0
      %v1256 = vadd.f32 0.0, %v1255
      %1257 = vmatmul.f32.gmra.mxu0 %v1194
      %v1258 = vpop.f32.mrf.mxu0
      %v1259 = vadd.f32 0.0, %v1258
      %1260 = vmatmul.f32.gmra.mxu0 %v1197
      %v1261 = vpop.f32.mrf.mxu0
      %v1262 = vadd.f32 0.0, %v1261
      %1263 = vmatmul.f32.gmra.mxu0 %v1200
      %v1264 = vpop.f32.mrf.mxu0
      %v1265 = vadd.f32 0.0, %v1264
      %1266 = vmatmul.f32.gmra.mxu0 %v1203
      %v1267 = vpop.f32.mrf.mxu0
      %v1268 = vadd.f32 0.0, %v1267
      %1269 = vmatmul.f32.gmra.mxu0 %v1206
      %v1270 = vpop.f32.mrf.mxu0
      %v1271 = vadd.f32 0.0, %v1270
      %1272 = vmatmul.f32.gmra.mxu0 %v1209
      %v1273 = vpop.f32.mrf.mxu0
      %v1274 = vadd.f32 0.0, %v1273
      %1275 = vdwg.mxu0
      %vm1276 = vcmp.le.s32.totalorder %v721, %v730
      %vm1277 = vcmp.le.s32.totalorder %v722, %v730
      %vm1278 = vcmp.le.s32.totalorder %v723, %v730
      %vm1279 = vcmp.le.s32.totalorder %v724, %v730
      %vm1280 = vcmp.le.s32.totalorder %v725, %v730
      %vm1281 = vcmp.le.s32.totalorder %v726, %v730
      %vm1282 = vcmp.le.s32.totalorder %v727, %v730
      %vm1283 = vcmp.le.s32.totalorder %v728, %v730
      %v1284 = vsel %vm1276, %v1253, 0.0
      %v1285 = vsel %vm1277, %v1256, 0.0
      %v1286 = vsel %vm1278, %v1259, 0.0
      %v1287 = vsel %vm1279, %v1262, 0.0
      %v1288 = vsel %vm1280, %v1265, 0.0
      %v1289 = vsel %vm1281, %v1268, 0.0
      %v1290 = vsel %vm1282, %v1271, 0.0
      %v1291 = vsel %vm1283, %v1274, 0.0
      %v1292 = vld [vmem:[%s658] sm:$0xff]
      %v1293 = vld [vmem:[%s658 + $0x8] sm:$0xff]
      %v1294 = vld [vmem:[%s658 + $0x10] sm:$0xff]
      %v1295 = vld [vmem:[%s658 + $0x18] sm:$0xff]
      %v1296 = vld [vmem:[%s658 + $0x20] sm:$0xff]
      %v1297 = vld [vmem:[%s658 + $0x28] sm:$0xff]
      %v1298 = vld [vmem:[%s658 + $0x30] sm:$0xff]
      %v1299 = vld [vmem:[%s658 + $0x38] sm:$0xff]
      %v1300 = vsel %vm861, %v1292, -inf
      %v1301 = vsel %vm861, %v1293, -inf
      %v1302 = vsel %vm861, %v1294, -inf
      %v1303 = vsel %vm861, %v1295, -inf
      %v1304 = vsel %vm861, %v1296, -inf
      %v1305 = vmax.f32 %v1300, %v1304
      %v1306 = vsel %vm861, %v1297, -inf
      %v1307 = vmax.f32 %v1301, %v1306
      %v1308 = vsel %vm861, %v1298, -inf
      %v1309 = vmax.f32 %v1302, %v1308
      %v1310 = vsel %vm861, %v1299, -inf
      %v1311 = vmax.f32 %v1303, %v1310
      %v1312 = vmax.f32 %v1305, %v1307
      %v1313 = vmax.f32 %v1309, %v1311
      %v1314 = vmax.f32 %v1312, %v1313
      %v1315 = vrot.slane %v1314, 4
      %v1316 = vmax.f32 %v1314, %v1315
      %v1317 = vrot.slane %v1316, 2
      %v1318 = vmax.f32 %v1316, %v1317
      %v1319 = vrot.slane %v1318, 1
      %v1320 = vmax.f32 %v1318, %v1319
      %v1321 = vsub.f32 %v1320, %v1292
      %v1322 = vsub.f32 %v1320, %v1293
      %v1323 = vsub.f32 %v1320, %v1294
      %v1324 = vsub.f32 %v1320, %v1295
      %v1325 = vsub.f32 %v1320, %v1296
      %v1326 = vsub.f32 %v1320, %v1297
      %v1327 = vsub.f32 %v1320, %v1298
      %v1328 = vsub.f32 %v1320, %v1299
      %v1329 = vmin.f32 %v1321, 80.0
      %v1330 = vmin.f32 %v1322, 80.0
      %v1331 = vmin.f32 %v1323, 80.0
      %v1332 = vmin.f32 %v1324, 80.0
      %v1333 = vmin.f32 %v1325, 80.0
      %v1334 = vmin.f32 %v1326, 80.0
      %v1335 = vmin.f32 %v1327, 80.0
      %v1336 = vmin.f32 %v1328, 80.0
      %v1337 = vmul.f32 %v1329, 1.442695
      %v1338 = vpow.pop %v1337
      %v1339 = vmul.f32 %v1330, 1.442695
      %v1340 = vpow.pop %v1339
      %v1341 = vmul.f32 %v1331, 1.442695
      %v1342 = vpow.pop %v1341
      %v1343 = vmul.f32 %v1332, 1.442695
      %v1344 = vpow.pop %v1343
      %v1345 = vmul.f32 %v1333, 1.442695
      %v1346 = vpow.pop %v1345
      %v1347 = vmul.f32 %v1334, 1.442695
      %v1348 = vpow.pop %v1347
      %v1349 = vmul.f32 %v1335, 1.442695
      %v1350 = vpow.pop %v1349
      %v1351 = vmul.f32 %v1336, 1.442695
      %v1352 = vpow.pop %v1351
      %v1353 = vld [vmem:[%s640] sm:$0xff]
      %v1354 = vld [vmem:[%s640 + $0x8] sm:$0xff]
      %v1355 = vld [vmem:[%s640 + $0x10] sm:$0xff]
      %v1356 = vld [vmem:[%s640 + $0x18] sm:$0xff]
      %v1357 = vld [vmem:[%s640 + $0x20] sm:$0xff]
      %v1358 = vld [vmem:[%s640 + $0x28] sm:$0xff]
      %v1359 = vld [vmem:[%s640 + $0x30] sm:$0xff]
      %v1360 = vld [vmem:[%s640 + $0x38] sm:$0xff]
      %v1361 = vmul.f32 %v1338, %v1353
      %v1362 = vmul.f32 %v1340, %v1354
      %v1363 = vmul.f32 %v1342, %v1355
      %v1364 = vmul.f32 %v1344, %v1356
      %v1365 = vmul.f32 %v1346, %v1357
      %v1366 = vmul.f32 %v1348, %v1358
      %v1367 = vmul.f32 %v1350, %v1359
      %v1368 = vmul.f32 %v1352, %v1360
      %v1369 = vsub.f32 %v1292, %v1320
      %v1370 = vsub.f32 %v1293, %v1320
      %v1371 = vsub.f32 %v1294, %v1320
      %v1372 = vsub.f32 %v1295, %v1320
      %v1373 = vsub.f32 %v1296, %v1320
      %v1374 = vsub.f32 %v1297, %v1320
      %v1375 = vsub.f32 %v1298, %v1320
      %v1376 = vsub.f32 %v1299, %v1320
      %v1377 = vmul.f32 %v1369, 1.442695
      %v1378 = vpow.pop %v1377
      %v1379 = vmul.f32 %v1370, 1.442695
      %v1380 = vpow.pop %v1379
      %v1381 = vmul.f32 %v1371, 1.442695
      %v1382 = vpow.pop %v1381
      %v1383 = vmul.f32 %v1372, 1.442695
      %v1384 = vpow.pop %v1383
      %v1385 = vmul.f32 %v1373, 1.442695
      %v1386 = vpow.pop %v1385
      %v1387 = vmul.f32 %v1374, 1.442695
      %v1388 = vpow.pop %v1387
      %v1389 = vmul.f32 %v1375, 1.442695
      %v1390 = vpow.pop %v1389
      %v1391 = vmul.f32 %v1376, 1.442695
      %v1392 = vpow.pop %v1391
      %v1394 = vsel %vm861, %v1361, 0
      %v1397 = vsel %vm861, %v1362, 0
      %v1400 = vsel %vm861, %v1363, 0
      %v1403 = vsel %vm861, %v1364, 0
      %v1406 = vsel %vm861, %v1365, 0
      %v1409 = vsel %vm861, %v1366, 0
      %v1412 = vsel %vm861, %v1367, 0
      %v1415 = vsel %vm861, %v1368, 0
      %1417 = vmatpush.msra.mxu0 0.0
      %1418 = vmatpush.msra.mxu0 0.0
      %1419 = vmatpush.msra.mxu0 0.0
      %1420 = vmatpush.msra.mxu0 0.0
      %1421 = vmatpush.msra.mxu0 0.0
      %1422 = vmatpush.msra.mxu0 0.0
      %1423 = vmatpush.msra.mxu0 0.0
      %1424 = vmatpush.msra.mxu0 0.0
      %1425 = vmatpush.msra.mxu0 0.0
      %1426 = vmatpush.msra.mxu0 0.0
      %1427 = vmatpush.msra.mxu0 0.0
      %1428 = vmatpush.msra.mxu0 0.0
      %1429 = vmatpush.msra.mxu0 0.0
      %1430 = vmatpush.msra.mxu0 0.0
      %1431 = vmatpush.msra.mxu0 0.0
      %1432 = vmatpush.msra.mxu0 %v981
      %1433 = vmatmul.f32.gmra.mxu0 %v1394
      %v1434 = vpop.f32.mrf.mxu0
      %v1435 = vadd.f32 0.0, %v1434
      %1436 = vmatmul.f32.gmra.mxu0 %v1397
      %v1437 = vpop.f32.mrf.mxu0
      %v1438 = vadd.f32 0.0, %v1437
      %1439 = vmatmul.f32.gmra.mxu0 %v1400
      %v1440 = vpop.f32.mrf.mxu0
      %v1441 = vadd.f32 0.0, %v1440
      %1442 = vmatmul.f32.gmra.mxu0 %v1403
      %v1443 = vpop.f32.mrf.mxu0
      %v1444 = vadd.f32 0.0, %v1443
      %1445 = vmatmul.f32.gmra.mxu0 %v1406
      %v1446 = vpop.f32.mrf.mxu0
      %v1447 = vadd.f32 0.0, %v1446
      %1448 = vmatmul.f32.gmra.mxu0 %v1409
      %v1449 = vpop.f32.mrf.mxu0
      %v1450 = vadd.f32 0.0, %v1449
      %1451 = vmatmul.f32.gmra.mxu0 %v1412
      %v1452 = vpop.f32.mrf.mxu0
      %v1453 = vadd.f32 0.0, %v1452
      %1454 = vmatmul.f32.gmra.mxu0 %v1415
      %v1455 = vpop.f32.mrf.mxu0
      %v1456 = vadd.f32 0.0, %v1455
      %1457 = vdwg.mxu0
      %v1459 = vsel %vm861, %v1378, 0
      %v1462 = vsel %vm861, %v1380, 0
      %v1465 = vsel %vm861, %v1382, 0
      %v1468 = vsel %vm861, %v1384, 0
      %v1471 = vsel %vm861, %v1386, 0
      %v1474 = vsel %vm861, %v1388, 0
      %v1477 = vsel %vm861, %v1390, 0
      %v1480 = vsel %vm861, %v1392, 0
      %1482 = vmatpush.msra.mxu0 0.0
      %1483 = vmatpush.msra.mxu0 0.0
      %1484 = vmatpush.msra.mxu0 0.0
      %1485 = vmatpush.msra.mxu0 0.0
      %1486 = vmatpush.msra.mxu0 0.0
      %1487 = vmatpush.msra.mxu0 0.0
      %1488 = vmatpush.msra.mxu0 0.0
      %1489 = vmatpush.msra.mxu0 0.0
      %1490 = vmatpush.msra.mxu0 0.0
      %1491 = vmatpush.msra.mxu0 0.0
      %1492 = vmatpush.msra.mxu0 0.0
      %1493 = vmatpush.msra.mxu0 0.0
      %1494 = vmatpush.msra.mxu0 0.0
      %1495 = vmatpush.msra.mxu0 0.0
      %1496 = vmatpush.msra.mxu0 0.0
      %1497 = vmatpush.msra.mxu0 %v981
      %1498 = vmatmul.f32.gmra.mxu0 %v1459
      %v1499 = vpop.f32.mrf.mxu0
      %v1500 = vadd.f32 0.0, %v1499
      %1501 = vmatmul.f32.gmra.mxu0 %v1462
      %v1502 = vpop.f32.mrf.mxu0
      %v1503 = vadd.f32 0.0, %v1502
      %1504 = vmatmul.f32.gmra.mxu0 %v1465
      %v1505 = vpop.f32.mrf.mxu0
      %v1506 = vadd.f32 0.0, %v1505
      %1507 = vmatmul.f32.gmra.mxu0 %v1468
      %v1508 = vpop.f32.mrf.mxu0
      %v1509 = vadd.f32 0.0, %v1508
      %1510 = vmatmul.f32.gmra.mxu0 %v1471
      %v1511 = vpop.f32.mrf.mxu0
      %v1512 = vadd.f32 0.0, %v1511
      %1513 = vmatmul.f32.gmra.mxu0 %v1474
      %v1514 = vpop.f32.mrf.mxu0
      %v1515 = vadd.f32 0.0, %v1514
      %1516 = vmatmul.f32.gmra.mxu0 %v1477
      %v1517 = vpop.f32.mrf.mxu0
      %v1518 = vadd.f32 0.0, %v1517
      %1519 = vmatmul.f32.gmra.mxu0 %v1480
      %v1520 = vpop.f32.mrf.mxu0
      %v1521 = vadd.f32 0.0, %v1520
      %1522 = vdwg.mxu0
      %v1523 = vmul.f32 %v711, %v1435
      %v1524 = vmul.f32 %v712, %v1438
      %v1525 = vmul.f32 %v713, %v1441
      %v1526 = vmul.f32 %v714, %v1444
      %v1527 = vmul.f32 %v715, %v1447
      %v1528 = vmul.f32 %v716, %v1450
      %v1529 = vmul.f32 %v717, %v1453
      %v1530 = vmul.f32 %v718, %v1456
      %v1532 = vsel %vm1097, %v1284, 0
      %v1535 = vsel %vm1097, %v1285, 0
      %v1538 = vsel %vm1097, %v1286, 0
      %v1541 = vsel %vm1097, %v1287, 0
      %v1544 = vsel %vm1097, %v1288, 0
      %v1547 = vsel %vm1097, %v1289, 0
      %v1550 = vsel %vm1097, %v1290, 0
      %v1553 = vsel %vm1097, %v1291, 0
      %1555 = vmatpush.msra.mxu0 0.0
      %1556 = vmatpush.msra.mxu0 0.0
      %1557 = vmatpush.msra.mxu0 0.0
      %1558 = vmatpush.msra.mxu0 0.0
      %1559 = vmatpush.msra.mxu0 0.0
      %1560 = vmatpush.msra.mxu0 0.0
      %1561 = vmatpush.msra.mxu0 0.0
      %1562 = vmatpush.msra.mxu0 0.0
      %1563 = vmatpush.msra.mxu0 %v1530
      %1564 = vmatpush.msra.mxu0 %v1529
      %1565 = vmatpush.msra.mxu0 %v1528
      %1566 = vmatpush.msra.mxu0 %v1527
      %1567 = vmatpush.msra.mxu0 %v1526
      %1568 = vmatpush.msra.mxu0 %v1525
      %1569 = vmatpush.msra.mxu0 %v1524
      %1570 = vmatpush.msra.mxu0 %v1523
      %1571 = vmatmul.f32.gmra.mxu0 %v1532
      %v1572 = vpop.f32.mrf.mxu0
      %v1573 = vadd.f32 0.0, %v1572
      %1574 = vmatmul.f32.gmra.mxu0 %v1535
      %v1575 = vpop.f32.mrf.mxu0
      %v1576 = vadd.f32 0.0, %v1575
      %1577 = vmatmul.f32.gmra.mxu0 %v1538
      %v1578 = vpop.f32.mrf.mxu0
      %v1579 = vadd.f32 0.0, %v1578
      %1580 = vmatmul.f32.gmra.mxu0 %v1541
      %v1581 = vpop.f32.mrf.mxu0
      %v1582 = vadd.f32 0.0, %v1581
      %1583 = vmatmul.f32.gmra.mxu0 %v1544
      %v1584 = vpop.f32.mrf.mxu0
      %v1585 = vadd.f32 0.0, %v1584
      %1586 = vmatmul.f32.gmra.mxu0 %v1547
      %v1587 = vpop.f32.mrf.mxu0
      %v1588 = vadd.f32 0.0, %v1587
      %1589 = vmatmul.f32.gmra.mxu0 %v1550
      %v1590 = vpop.f32.mrf.mxu0
      %v1591 = vadd.f32 0.0, %v1590
      %1592 = vmatmul.f32.gmra.mxu0 %v1553
      %v1593 = vpop.f32.mrf.mxu0
      %v1594 = vadd.f32 0.0, %v1593
      %1595 = vdwg.mxu0
      %v1596 = vmul.f32 %v1500, %v1573
      %v1597 = vmul.f32 %v1503, %v1576
      %v1598 = vmul.f32 %v1506, %v1579
      %v1599 = vmul.f32 %v1509, %v1582
      %v1600 = vmul.f32 %v1512, %v1585
      %v1601 = vmul.f32 %v1515, %v1588
      %v1602 = vmul.f32 %v1518, %v1591
      %v1603 = vmul.f32 %v1521, %v1594
      %vm1612 = vcmask 1040384
      %v1613 = vrot.slane %v1163, 7
      %v1614 = vrot.slane %v1164, 7
      %v1615 = vsel %vm1612, %v1613, %v1614
      %v1616 = vrot.slane %v1165, 7
      %v1617 = vsel %vm1612, %v1614, %v1616
      %v1618 = vrot.slane %v1166, 7
      %v1619 = vsel %vm1612, %v1616, %v1618
      %v1620 = vrot.slane %v1167, 7
      %v1621 = vsel %vm1612, %v1618, %v1620
      %v1622 = vrot.slane %v1168, 7
      %v1623 = vsel %vm1612, %v1620, %v1622
      %v1624 = vrot.slane %v1169, 7
      %v1625 = vsel %vm1612, %v1622, %v1624
      %v1626 = vrot.slane %v1170, 7
      %v1627 = vsel %vm1612, %v1624, %v1626
      %v1636 = vsel %vm1612, 0.0, %v1613
      %1637 = vst.msk [vmem:[%s702] sm:$0xff] %vm1097, %v1636
      %1638 = vst.msk [vmem:[%s702 + $0x8] sm:$0xff] %vm1097, %v1615
      %1639 = vst.msk [vmem:[%s702 + $0x10] sm:$0xff] %vm1097, %v1617
      %1640 = vst.msk [vmem:[%s702 + $0x18] sm:$0xff] %vm1097, %v1619
      %1641 = vst.msk [vmem:[%s702 + $0x20] sm:$0xff] %vm1097, %v1621
      %1642 = vst.msk [vmem:[%s702 + $0x28] sm:$0xff] %vm1097, %v1623
      %1643 = vst.msk [vmem:[%s702 + $0x30] sm:$0xff] %vm1097, %v1625
      %1644 = vst.msk [vmem:[%s702 + $0x38] sm:$0xff] %vm1097, %v1627
      %vm1653 = vcmask 1046528
      %v1654 = vrot.slane %v1596, 1
      %v1655 = vrot.slane %v1597, 1
      %v1656 = vsel %vm1653, %v1654, %v1655
      %v1657 = vrot.slane %v1598, 1
      %v1658 = vsel %vm1653, %v1655, %v1657
      %v1659 = vrot.slane %v1599, 1
      %v1660 = vsel %vm1653, %v1657, %v1659
      %v1661 = vrot.slane %v1600, 1
      %v1662 = vsel %vm1653, %v1659, %v1661
      %v1663 = vrot.slane %v1601, 1
      %v1664 = vsel %vm1653, %v1661, %v1663
      %v1665 = vrot.slane %v1602, 1
      %v1666 = vsel %vm1653, %v1663, %v1665
      %v1667 = vrot.slane %v1603, 1
      %v1668 = vsel %vm1653, %v1665, %v1667
      %v1677 = vsel %vm1653, %v1667, 0.0
      %1678 = vst.msk [vmem:[%s710] sm:$0xff] %vm1097, %v1656
      %1679 = vst.msk [vmem:[%s710 + $0x8] sm:$0xff] %vm1097, %v1658
      %1680 = vst.msk [vmem:[%s710 + $0x10] sm:$0xff] %vm1097, %v1660
      %1681 = vst.msk [vmem:[%s710 + $0x18] sm:$0xff] %vm1097, %v1662
      %1682 = vst.msk [vmem:[%s710 + $0x20] sm:$0xff] %vm1097, %v1664
      %1683 = vst.msk [vmem:[%s710 + $0x28] sm:$0xff] %vm1097, %v1666
      %1684 = vst.msk [vmem:[%s710 + $0x30] sm:$0xff] %vm1097, %v1668
      %1685 = vst.msk [vmem:[%s710 + $0x38] sm:$0xff] %vm1097, %v1677
      %p1686 = scmp.lt.s32.totalorder %s27, 1
      %s1687 = scalar_select %p1686, %s27, 1
      %p1688 = scmp.lt.s32.totalorder %s28, 0
      %s1689 = scalar_select %p1688, %s28, 0
      %s1690 = smul.addr %s1687, 8
      %s1691 = sadd.s32 %s1689, %s1690
      %s1692 = smul.addr %s1691, 8
      %s1693 = scalar_lea.vmem %s10, %s1692
      %p1694 = scmp.lt.s32.totalorder %s27, 1
      %s1695 = scalar_select %p1694, %s27, 1
      %p1696 = scmp.lt.s32.totalorder %s28, 0
      %s1697 = scalar_select %p1696, %s28, 0
      %s1698 = smul.addr %s1695, 8
      %s1699 = sadd.s32 %s1697, %s1698
      %s1700 = smul.addr %s1699, 8
      %s1701 = scalar_lea.vmem %s11, %s1700
      // Predicated region
      $region61: #{_lambda_.7} parent=59 // pred_check
        %p1702 = pneg %p328
      $region62: #{_lambda_.7} parent=59 // pred_check_branch
        %1704 = sbr.rel (%p1702) target = $region64
      $region63: #{_lambda_.7} parent=59 // pred_region
        _
      $region64: #{_lambda_.7} parent=59 // pred_fallthru
        _
      // Predicated region
      $region65: #{_lambda_.7} parent=59 // pred_check
        %p1705 = pneg %p356
      $region66: #{_lambda_.7} parent=59 // pred_check_branch
        %1707 = sbr.rel (%p1705) target = $region68
      $region67: #{_lambda_.7} parent=59 // pred_region
        _
      $region68: #{_lambda_.7} parent=59 // pred_fallthru
        _
    $region60: #{_lambda_.7} parent=5 // pred_fallthru
      _
    %p1708 = scmp.le.s32.totalorder 2, %s18
    // Predicated region
    $region69: #{_lambda_.7} parent=5 // pred_check
      %p1709 = pneg %p1708
    $region70: #{_lambda_.7} parent=5 // pred_check_branch
      %1711 = sbr.rel (%p1709) target = $region72
    $region71: #{_lambda_.7} parent=5 // pred_region
      %s1712 = ssub.s32 %s18, 2
      // Predicated region
      $region73: #{_lambda_.7} parent=71 // pred_check
        %p1713 = pneg %p334
      $region74: #{_lambda_.7} parent=71 // pred_check_branch
        %1715 = sbr.rel (%p1713) target = $region76
      $region75: #{_lambda_.7} parent=71 // pred_region
        %p1716 = scmp.lt.s32.totalorder %s29, 1
        %s1717 = scalar_select %p1716, %s29, 1
        %p1718 = scmp.lt.s32.totalorder %s30, 0
        %s1719 = scalar_select %p1718, %s30, 0
        %s1720 = smul.addr %s1717, 8
        %s1721 = sadd.s32 %s1719, %s1720
        %s1722 = smul.addr %s1721, 8
        %s1723 = scalar_lea.vmem %s10, %s1722
      $region76: #{_lambda_.7} parent=71 // pred_fallthru
        _
      // Predicated region
      $region77: #{_lambda_.7} parent=71 // pred_check
        %p1724 = pneg %p362
      $region78: #{_lambda_.7} parent=71 // pred_check_branch
        %1726 = sbr.rel (%p1724) target = $region80
      $region79: #{_lambda_.7} parent=71 // pred_region
        %p1727 = scmp.lt.s32.totalorder %s29, 1
        %s1728 = scalar_select %p1727, %s29, 1
        %p1729 = scmp.lt.s32.totalorder %s30, 0
        %s1730 = scalar_select %p1729, %s30, 0
        %s1731 = smul.addr %s1728, 8
        %s1732 = sadd.s32 %s1730, %s1731
        %s1733 = smul.addr %s1732, 8
        %s1734 = scalar_lea.vmem %s11, %s1733
      $region80: #{_lambda_.7} parent=71 // pred_fallthru
        _
    $region72: #{_lambda_.7} parent=5 // pred_fallthru
      _
  $region6: #{_lambda_.7} parent=0 // loop_footer
    %s22 = sadd.s32 1, %s18
  $region7: #{_lambda_.7} parent=0 // loop_footer_branch
    %17 = sbr.rel target = $region3
  $region8: #{_lambda_.7} parent=0 // loop_exit
    _

// kernel: _lambda_.8
$region0: #{_lambda_.8}
  #allocation0 [shape = 'u32[]', space=smem, size = 0x4, offset = 0x4, fixed_abs, tag = 'smem constant byte address 0x4 - core index']
  #allocation1 [shape = 'u32[72,128]{1,0:T(1,128)}', space=vmem, size = 0x9000, scoped, tag = 'internal scratch']
  %s0 = inlined_call_operand.vmem [shape: f32[128,64], index: 0, kind: input, shape index: {}]
  %s1 = inlined_call_operand.vmem [shape: f32[128,64], index: 1, kind: input, shape index: {}]
  %s2 = inlined_call_operand.vmem [shape: f32[128,64], index: 2, kind: input, shape index: {}]
  %s3 = inlined_call_operand.vmem [shape: f32[128,64], index: 3, kind: input, shape index: {}]
  %s4 = inlined_call_operand.vmem [shape: f32[64,4], index: 4, kind: input, shape index: {}]
  %s5 = inlined_call_operand.vmem [shape: f32[4,64], index: 5, kind: input, shape index: {}]
  %s6 = inlined_call_operand.vmem [shape: f32[1,64], index: 6, kind: input, shape index: {}]
  %s7 = inlined_call_operand.vmem [shape: f32[1,64], index: 7, kind: input, shape index: {}]
  %s8 = inlined_call_operand.vmem [shape: f32[128,64], index: 8, kind: output, shape index: {}]
  %s9 = sld [smem:[#allocation0]]
  $region42: #{_lambda_.8} parent=0
    _
  %s11 = ssub.s32 1, %s9
  %s12 = scalar_select 0, %s11, %s9
  // Predicated region
  $region2: #{_lambda_.8} parent=0 // pred_check
    _
  $region3: #{_lambda_.8} parent=0 // pred_check_branch
    %14 = sbr.rel (0) target = $region5
  $region4: #{_lambda_.8} parent=0 // pred_region
    _
  $region5: #{_lambda_.8} parent=0 // pred_fallthru
    _
  // Predicated region
  $region6: #{_lambda_.8} parent=0 // pred_check
    _
  $region7: #{_lambda_.8} parent=0 // pred_check_branch
    %16 = sbr.rel (0) target = $region9
  $region8: #{_lambda_.8} parent=0 // pred_region
    _
  $region9: #{_lambda_.8} parent=0 // pred_fallthru
    _
  // Predicated region
  $region10: #{_lambda_.8} parent=0 // pred_check
    _
  $region11: #{_lambda_.8} parent=0 // pred_check_branch
    %18 = sbr.rel (0) target = $region13
  $region12: #{_lambda_.8} parent=0 // pred_region
    _
  $region13: #{_lambda_.8} parent=0 // pred_fallthru
    _
  // Predicated region
  $region14: #{_lambda_.8} parent=0 // pred_check
    _
  $region15: #{_lambda_.8} parent=0 // pred_check_branch
    %20 = sbr.rel (0) target = $region17
  $region16: #{_lambda_.8} parent=0 // pred_region
    _
  $region17: #{_lambda_.8} parent=0 // pred_fallthru
    _
  // Predicated region
  $region18: #{_lambda_.8} parent=0 // pred_check
    _
  $region19: #{_lambda_.8} parent=0 // pred_check_branch
    %22 = sbr.rel (0) target = $region21
  $region20: #{_lambda_.8} parent=0 // pred_region
    _
  $region21: #{_lambda_.8} parent=0 // pred_fallthru
    _
  // Predicated region
  $region22: #{_lambda_.8} parent=0 // pred_check
    _
  $region23: #{_lambda_.8} parent=0 // pred_check_branch
    %24 = sbr.rel (0) target = $region25
  $region24: #{_lambda_.8} parent=0 // pred_region
    _
  $region25: #{_lambda_.8} parent=0 // pred_fallthru
    _
  // Predicated region
  $region26: #{_lambda_.8} parent=0 // pred_check
    _
  $region27: #{_lambda_.8} parent=0 // pred_check_branch
    %26 = sbr.rel (0) target = $region29
  $region28: #{_lambda_.8} parent=0 // pred_region
    _
  $region29: #{_lambda_.8} parent=0 // pred_fallthru
    _
  // Predicated region
  $region30: #{_lambda_.8} parent=0 // pred_check
    _
  $region31: #{_lambda_.8} parent=0 // pred_check_branch
    %28 = sbr.rel (0) target = $region33
  $region32: #{_lambda_.8} parent=0 // pred_region
    _
  $region33: #{_lambda_.8} parent=0 // pred_fallthru
    _
  %v29 = vld [vmem:[%s2] sm:$0xff]
  %v30 = vld [vmem:[%s2 + $0x8] sm:$0xff]
  %v31 = vld [vmem:[%s2 + $0x10] sm:$0xff]
  %v32 = vld [vmem:[%s2 + $0x18] sm:$0xff]
  %v33 = vld [vmem:[%s2 + $0x20] sm:$0xff]
  %v34 = vld [vmem:[%s2 + $0x28] sm:$0xff]
  %v35 = vld [vmem:[%s2 + $0x30] sm:$0xff]
  %v36 = vld [vmem:[%s2 + $0x38] sm:$0xff]
  %v37 = vld [vmem:[%s2 + $0x40] sm:$0xff]
  %v38 = vld [vmem:[%s2 + $0x48] sm:$0xff]
  %v39 = vld [vmem:[%s2 + $0x50] sm:$0xff]
  %v40 = vld [vmem:[%s2 + $0x58] sm:$0xff]
  %v41 = vld [vmem:[%s2 + $0x60] sm:$0xff]
  %v42 = vld [vmem:[%s2 + $0x68] sm:$0xff]
  %v43 = vld [vmem:[%s2 + $0x70] sm:$0xff]
  %v44 = vld [vmem:[%s2 + $0x78] sm:$0xff]
  %v45 = vld [vmem:[%s4] sm:$0xff]
  %v46 = vld [vmem:[%s4 + $0x8] sm:$0xff]
  %v47 = vld [vmem:[%s4 + $0x10] sm:$0xff]
  %v48 = vld [vmem:[%s4 + $0x18] sm:$0xff]
  %v49 = vld [vmem:[%s4 + $0x20] sm:$0xff]
  %v50 = vld [vmem:[%s4 + $0x28] sm:$0xff]
  %v51 = vld [vmem:[%s4 + $0x30] sm:$0xff]
  %v52 = vld [vmem:[%s4 + $0x38] sm:$0xff]
  %vm53 = vcmask 523264
  %v55 = vsel %vm53, %v29, 0
  %v58 = vsel %vm53, %v30, 0
  %v61 = vsel %vm53, %v31, 0
  %v64 = vsel %vm53, %v32, 0
  %v67 = vsel %vm53, %v33, 0
  %v70 = vsel %vm53, %v34, 0
  %v73 = vsel %vm53, %v35, 0
  %v76 = vsel %vm53, %v36, 0
  %v79 = vsel %vm53, %v37, 0
  %v82 = vsel %vm53, %v38, 0
  %v85 = vsel %vm53, %v39, 0
  %v88 = vsel %vm53, %v40, 0
  %v91 = vsel %vm53, %v41, 0
  %v94 = vsel %vm53, %v42, 0
  %v97 = vsel %vm53, %v43, 0
  %v100 = vsel %vm53, %v44, 0
  %102 = vmatpush.msra.mxu0 0.0
  %103 = vmatpush.msra.mxu0 0.0
  %104 = vmatpush.msra.mxu0 0.0
  %105 = vmatpush.msra.mxu0 0.0
  %106 = vmatpush.msra.mxu0 0.0
  %107 = vmatpush.msra.mxu0 0.0
  %108 = vmatpush.msra.mxu0 0.0
  %109 = vmatpush.msra.mxu0 0.0
  %110 = vmatpush.msra.mxu0 %v52
  %111 = vmatpush.msra.mxu0 %v51
  %112 = vmatpush.msra.mxu0 %v50
  %113 = vmatpush.msra.mxu0 %v49
  %114 = vmatpush.msra.mxu0 %v48
  %115 = vmatpush.msra.mxu0 %v47
  %116 = vmatpush.msra.mxu0 %v46
  %117 = vmatpush.msra.mxu0 %v45
  %118 = vmatmul.f32.gmra.mxu0 %v55
  %v119 = vpop.f32.mrf.mxu0
  %v120 = vadd.f32 0.0, %v119
  %121 = vmatmul.f32.gmra.mxu0 %v58
  %v122 = vpop.f32.mrf.mxu0
  %v123 = vadd.f32 0.0, %v122
  %124 = vmatmul.f32.gmra.mxu0 %v61
  %v125 = vpop.f32.mrf.mxu0
  %v126 = vadd.f32 0.0, %v125
  %127 = vmatmul.f32.gmra.mxu0 %v64
  %v128 = vpop.f32.mrf.mxu0
  %v129 = vadd.f32 0.0, %v128
  %130 = vmatmul.f32.gmra.mxu0 %v67
  %v131 = vpop.f32.mrf.mxu0
  %v132 = vadd.f32 0.0, %v131
  %133 = vmatmul.f32.gmra.mxu0 %v70
  %v134 = vpop.f32.mrf.mxu0
  %v135 = vadd.f32 0.0, %v134
  %136 = vmatmul.f32.gmra.mxu0 %v73
  %v137 = vpop.f32.mrf.mxu0
  %v138 = vadd.f32 0.0, %v137
  %139 = vmatmul.f32.gmra.mxu0 %v76
  %v140 = vpop.f32.mrf.mxu0
  %v141 = vadd.f32 0.0, %v140
  %142 = vmatmul.f32.gmra.mxu0 %v79
  %v143 = vpop.f32.mrf.mxu0
  %v144 = vadd.f32 0.0, %v143
  %145 = vmatmul.f32.gmra.mxu0 %v82
  %v146 = vpop.f32.mrf.mxu0
  %v147 = vadd.f32 0.0, %v146
  %148 = vmatmul.f32.gmra.mxu0 %v85
  %v149 = vpop.f32.mrf.mxu0
  %v150 = vadd.f32 0.0, %v149
  %151 = vmatmul.f32.gmra.mxu0 %v88
  %v152 = vpop.f32.mrf.mxu0
  %v153 = vadd.f32 0.0, %v152
  %154 = vmatmul.f32.gmra.mxu0 %v91
  %v155 = vpop.f32.mrf.mxu0
  %v156 = vadd.f32 0.0, %v155
  %157 = vmatmul.f32.gmra.mxu0 %v94
  %v158 = vpop.f32.mrf.mxu0
  %v159 = vadd.f32 0.0, %v158
  %160 = vmatmul.f32.gmra.mxu0 %v97
  %v161 = vpop.f32.mrf.mxu0
  %v162 = vadd.f32 0.0, %v161
  %163 = vmatmul.f32.gmra.mxu0 %v100
  %v164 = vpop.f32.mrf.mxu0
  %v165 = vadd.f32 0.0, %v164
  %166 = vdwg.mxu0
  %v167 = vld [vmem:[%s5] sm:$0xf]
  %v168 = vld [vmem:[%s6] sm:$0x1]
  %v170 = vperm.slane %v168, 0
  %vm172 = vcmask 31744
  %v174 = vsel %vm172, %v120, 0
  %v177 = vsel %vm172, %v123, 0
  %v180 = vsel %vm172, %v126, 0
  %v183 = vsel %vm172, %v129, 0
  %v186 = vsel %vm172, %v132, 0
  %v189 = vsel %vm172, %v135, 0
  %v192 = vsel %vm172, %v138, 0
  %v195 = vsel %vm172, %v141, 0
  %v198 = vsel %vm172, %v144, 0
  %v201 = vsel %vm172, %v147, 0
  %v204 = vsel %vm172, %v150, 0
  %v207 = vsel %vm172, %v153, 0
  %v210 = vsel %vm172, %v156, 0
  %v213 = vsel %vm172, %v159, 0
  %v216 = vsel %vm172, %v162, 0
  %v219 = vsel %vm172, %v165, 0
  %vm221 = vcmask 1043456
  %v223 = vsel %vm221, %v167, 0
  %225 = vmatpush.msra.mxu0 0.0
  %226 = vmatpush.msra.mxu0 0.0
  %227 = vmatpush.msra.mxu0 0.0
  %228 = vmatpush.msra.mxu0 0.0
  %229 = vmatpush.msra.mxu0 0.0
  %230 = vmatpush.msra.mxu0 0.0
  %231 = vmatpush.msra.mxu0 0.0
  %232 = vmatpush.msra.mxu0 0.0
  %233 = vmatpush.msra.mxu0 0.0
  %234 = vmatpush.msra.mxu0 0.0
  %235 = vmatpush.msra.mxu0 0.0
  %236 = vmatpush.msra.mxu0 0.0
  %237 = vmatpush.msra.mxu0 0.0
  %238 = vmatpush.msra.mxu0 0.0
  %239 = vmatpush.msra.mxu0 0.0
  %240 = vmatpush.msra.mxu0 %v223
  %241 = vmatmul.f32.gmra.mxu0 %v174
  %v242 = vpop.f32.mrf.mxu0
  %v243 = vadd.f32 %v170, %v242
  %244 = vmatmul.f32.gmra.mxu0 %v177
  %v245 = vpop.f32.mrf.mxu0
  %v246 = vadd.f32 %v170, %v245
  %247 = vmatmul.f32.gmra.mxu0 %v180
  %v248 = vpop.f32.mrf.mxu0
  %v249 = vadd.f32 %v170, %v248
  %250 = vmatmul.f32.gmra.mxu0 %v183
  %v251 = vpop.f32.mrf.mxu0
  %v252 = vadd.f32 %v170, %v251
  %253 = vmatmul.f32.gmra.mxu0 %v186
  %v254 = vpop.f32.mrf.mxu0
  %v255 = vadd.f32 %v170, %v254
  %256 = vmatmul.f32.gmra.mxu0 %v189
  %v257 = vpop.f32.mrf.mxu0
  %v258 = vadd.f32 %v170, %v257
  %259 = vmatmul.f32.gmra.mxu0 %v192
  %v260 = vpop.f32.mrf.mxu0
  %v261 = vadd.f32 %v170, %v260
  %262 = vmatmul.f32.gmra.mxu0 %v195
  %v263 = vpop.f32.mrf.mxu0
  %v264 = vadd.f32 %v170, %v263
  %265 = vmatmul.f32.gmra.mxu0 %v198
  %v266 = vpop.f32.mrf.mxu0
  %v267 = vadd.f32 %v170, %v266
  %268 = vmatmul.f32.gmra.mxu0 %v201
  %v269 = vpop.f32.mrf.mxu0
  %v270 = vadd.f32 %v170, %v269
  %271 = vmatmul.f32.gmra.mxu0 %v204
  %v272 = vpop.f32.mrf.mxu0
  %v273 = vadd.f32 %v170, %v272
  %274 = vmatmul.f32.gmra.mxu0 %v207
  %v275 = vpop.f32.mrf.mxu0
  %v276 = vadd.f32 %v170, %v275
  %277 = vmatmul.f32.gmra.mxu0 %v210
  %v278 = vpop.f32.mrf.mxu0
  %v279 = vadd.f32 %v170, %v278
  %280 = vmatmul.f32.gmra.mxu0 %v213
  %v281 = vpop.f32.mrf.mxu0
  %v282 = vadd.f32 %v170, %v281
  %283 = vmatmul.f32.gmra.mxu0 %v216
  %v284 = vpop.f32.mrf.mxu0
  %v285 = vadd.f32 %v170, %v284
  %286 = vmatmul.f32.gmra.mxu0 %v219
  %v287 = vpop.f32.mrf.mxu0
  %v288 = vadd.f32 %v170, %v287
  %289 = vdwg.mxu0
  %v290 = vld [vmem:[%s0] sm:$0xff]
  %v291 = vld [vmem:[%s0 + $0x8] sm:$0xff]
  %v292 = vld [vmem:[%s0 + $0x10] sm:$0xff]
  %v293 = vld [vmem:[%s0 + $0x18] sm:$0xff]
  %v294 = vld [vmem:[%s0 + $0x20] sm:$0xff]
  %v295 = vld [vmem:[%s0 + $0x28] sm:$0xff]
  %v296 = vld [vmem:[%s0 + $0x30] sm:$0xff]
  %v297 = vld [vmem:[%s0 + $0x38] sm:$0xff]
  %v298 = vld [vmem:[%s0 + $0x40] sm:$0xff]
  %v299 = vld [vmem:[%s0 + $0x48] sm:$0xff]
  %v300 = vld [vmem:[%s0 + $0x50] sm:$0xff]
  %v301 = vld [vmem:[%s0 + $0x58] sm:$0xff]
  %v302 = vld [vmem:[%s0 + $0x60] sm:$0xff]
  %v303 = vld [vmem:[%s0 + $0x68] sm:$0xff]
  %v304 = vld [vmem:[%s0 + $0x70] sm:$0xff]
  %v305 = vld [vmem:[%s0 + $0x78] sm:$0xff]
  %v306 = vld [vmem:[%s1] sm:$0xff]
  %v307 = vld [vmem:[%s1 + $0x8] sm:$0xff]
  %v308 = vld [vmem:[%s1 + $0x10] sm:$0xff]
  %v309 = vld [vmem:[%s1 + $0x18] sm:$0xff]
  %v310 = vld [vmem:[%s1 + $0x20] sm:$0xff]
  %v311 = vld [vmem:[%s1 + $0x28] sm:$0xff]
  %v312 = vld [vmem:[%s1 + $0x30] sm:$0xff]
  %v313 = vld [vmem:[%s1 + $0x38] sm:$0xff]
  %v314 = vld [vmem:[%s1 + $0x40] sm:$0xff]
  %v315 = vld [vmem:[%s1 + $0x48] sm:$0xff]
  %v316 = vld [vmem:[%s1 + $0x50] sm:$0xff]
  %v317 = vld [vmem:[%s1 + $0x58] sm:$0xff]
  %v318 = vld [vmem:[%s1 + $0x60] sm:$0xff]
  %v319 = vld [vmem:[%s1 + $0x68] sm:$0xff]
  %v320 = vld [vmem:[%s1 + $0x70] sm:$0xff]
  %v321 = vld [vmem:[%s1 + $0x78] sm:$0xff]
  %v322 = vadd.f32 %v290, %v306
  %v323 = vadd.f32 %v291, %v307
  %v324 = vadd.f32 %v292, %v308
  %v325 = vadd.f32 %v293, %v309
  %v326 = vadd.f32 %v294, %v310
  %v327 = vadd.f32 %v295, %v311
  %v328 = vadd.f32 %v296, %v312
  %v329 = vadd.f32 %v297, %v313
  %v330 = vadd.f32 %v298, %v314
  %v331 = vadd.f32 %v299, %v315
  %v332 = vadd.f32 %v300, %v316
  %v333 = vadd.f32 %v301, %v317
  %v334 = vadd.f32 %v302, %v318
  %v335 = vadd.f32 %v303, %v319
  %v336 = vadd.f32 %v304, %v320
  %v337 = vadd.f32 %v305, %v321
  %v338 = vmul.f32 %v29, %v243
  %v339 = vmul.f32 %v30, %v246
  %v340 = vmul.f32 %v31, %v249
  %v341 = vmul.f32 %v32, %v252
  %v342 = vmul.f32 %v33, %v255
  %v343 = vmul.f32 %v34, %v258
  %v344 = vmul.f32 %v35, %v261
  %v345 = vmul.f32 %v36, %v264
  %v346 = vmul.f32 %v37, %v267
  %v347 = vmul.f32 %v38, %v270
  %v348 = vmul.f32 %v39, %v273
  %v349 = vmul.f32 %v40, %v276
  %v350 = vmul.f32 %v41, %v279
  %v351 = vmul.f32 %v42, %v282
  %v352 = vmul.f32 %v43, %v285
  %v353 = vmul.f32 %v44, %v288
  %v354 = vadd.f32 %v322, %v338
  %v355 = vadd.f32 %v323, %v339
  %v356 = vadd.f32 %v324, %v340
  %v357 = vadd.f32 %v325, %v341
  %v358 = vadd.f32 %v326, %v342
  %v359 = vadd.f32 %v327, %v343
  %v360 = vadd.f32 %v328, %v344
  %v361 = vadd.f32 %v329, %v345
  %v362 = vadd.f32 %v330, %v346
  %v363 = vadd.f32 %v331, %v347
  %v364 = vadd.f32 %v332, %v348
  %v365 = vadd.f32 %v333, %v349
  %v366 = vadd.f32 %v334, %v350
  %v367 = vadd.f32 %v335, %v351
  %v368 = vadd.f32 %v336, %v352
  %v369 = vadd.f32 %v337, %v353
  %v370 = vmul.f32 %v354, %v354
  %v371 = vmul.f32 %v355, %v355
  %v372 = vmul.f32 %v356, %v356
  %v373 = vmul.f32 %v357, %v357
  %v374 = vmul.f32 %v358, %v358
  %v375 = vmul.f32 %v359, %v359
  %v376 = vmul.f32 %v360, %v360
  %v377 = vmul.f32 %v361, %v361
  %v378 = vmul.f32 %v362, %v362
  %v379 = vmul.f32 %v363, %v363
  %v380 = vmul.f32 %v364, %v364
  %v381 = vmul.f32 %v365, %v365
  %v382 = vmul.f32 %v366, %v366
  %v383 = vmul.f32 %v367, %v367
  %v384 = vmul.f32 %v368, %v368
  %v385 = vmul.f32 %v369, %v369
  %v386 = vsel %vm53, %v370, 0.0
  %387 = vadd.xlane.f32.xlu0 %v386
  %v388 = vpop.xlane.xlu0 %387
  %v389 = vsel %vm53, %v371, 0.0
  %390 = vadd.xlane.f32.xlu0 %v389
  %v391 = vpop.xlane.xlu0 %390
  %v392 = vsel %vm53, %v372, 0.0
  %393 = vadd.xlane.f32.xlu0 %v392
  %v394 = vpop.xlane.xlu0 %393
  %v395 = vsel %vm53, %v373, 0.0
  %396 = vadd.xlane.f32.xlu0 %v395
  %v397 = vpop.xlane.xlu0 %396
  %v398 = vsel %vm53, %v374, 0.0
  %399 = vadd.xlane.f32.xlu0 %v398
  %v400 = vpop.xlane.xlu0 %399
  %v401 = vsel %vm53, %v375, 0.0
  %402 = vadd.xlane.f32.xlu0 %v401
  %v403 = vpop.xlane.xlu0 %402
  %v404 = vsel %vm53, %v376, 0.0
  %405 = vadd.xlane.f32.xlu0 %v404
  %v406 = vpop.xlane.xlu0 %405
  %v407 = vsel %vm53, %v377, 0.0
  %408 = vadd.xlane.f32.xlu0 %v407
  %v409 = vpop.xlane.xlu0 %408
  %v410 = vsel %vm53, %v378, 0.0
  %411 = vadd.xlane.f32.xlu0 %v410
  %v412 = vpop.xlane.xlu0 %411
  %v413 = vsel %vm53, %v379, 0.0
  %414 = vadd.xlane.f32.xlu0 %v413
  %v415 = vpop.xlane.xlu0 %414
  %v416 = vsel %vm53, %v380, 0.0
  %417 = vadd.xlane.f32.xlu0 %v416
  %v418 = vpop.xlane.xlu0 %417
  %v419 = vsel %vm53, %v381, 0.0
  %420 = vadd.xlane.f32.xlu0 %v419
  %v421 = vpop.xlane.xlu0 %420
  %v422 = vsel %vm53, %v382, 0.0
  %423 = vadd.xlane.f32.xlu0 %v422
  %v424 = vpop.xlane.xlu0 %423
  %v425 = vsel %vm53, %v383, 0.0
  %426 = vadd.xlane.f32.xlu0 %v425
  %v427 = vpop.xlane.xlu0 %426
  %v428 = vsel %vm53, %v384, 0.0
  %429 = vadd.xlane.f32.xlu0 %v428
  %v430 = vpop.xlane.xlu0 %429
  %v431 = vsel %vm53, %v385, 0.0
  %432 = vadd.xlane.f32.xlu0 %v431
  %v433 = vpop.xlane.xlu0 %432
  %v434 = vrcp.pop 64.0
  %v435 = vmul.f32 64.0, %v434
  %v436 = vsub.f32 1.0, %v435
  %v437 = vmul.f32 %v434, %v436
  %v438 = vadd.f32 %v434, %v437
  %vm439 = vweird.f32 %v434
  %v440 = vsel %vm439, %v434, %v438
  %v441 = vmul.f32 %v388, %v440
  %v442 = vmul.f32 %v391, %v440
  %v443 = vmul.f32 %v394, %v440
  %v444 = vmul.f32 %v397, %v440
  %v445 = vmul.f32 %v400, %v440
  %v446 = vmul.f32 %v403, %v440
  %v447 = vmul.f32 %v406, %v440
  %v448 = vmul.f32 %v409, %v440
  %v449 = vmul.f32 %v412, %v440
  %v450 = vmul.f32 %v415, %v440
  %v451 = vmul.f32 %v418, %v440
  %v452 = vmul.f32 %v421, %v440
  %v453 = vmul.f32 %v424, %v440
  %v454 = vmul.f32 %v427, %v440
  %v455 = vmul.f32 %v430, %v440
  %v456 = vmul.f32 %v433, %v440
  %v457 = vadd.f32 %v441, 1e-05
  %v458 = vadd.f32 %v442, 1e-05
  %v459 = vadd.f32 %v443, 1e-05
  %v460 = vadd.f32 %v444, 1e-05
  %v461 = vadd.f32 %v445, 1e-05
  %v462 = vadd.f32 %v446, 1e-05
  %v463 = vadd.f32 %v447, 1e-05
  %v464 = vadd.f32 %v448, 1e-05
  %v465 = vadd.f32 %v449, 1e-05
  %v466 = vadd.f32 %v450, 1e-05
  %v467 = vadd.f32 %v451, 1e-05
  %v468 = vadd.f32 %v452, 1e-05
  %v469 = vadd.f32 %v453, 1e-05
  %v470 = vadd.f32 %v454, 1e-05
  %v471 = vadd.f32 %v455, 1e-05
  %v472 = vadd.f32 %v456, 1e-05
  %v473 = vrsqrt.pop %v457
  %v474 = vmul.f32 %v473, %v457
  %v475 = vmul.f32 %v474, %v473
  %v476 = vmul.f32 0.5, %v475
  %v477 = vsub.f32 1.5, %v476
  %v478 = vmul.f32 %v473, %v477
  %vm479 = vweird.f32 %v457
  %vm480 = vweird.f32 %v473
  %vm481 = vmor %vm479, %vm480
  %v482 = vsel %vm481, %v473, %v478
  %v483 = vrsqrt.pop %v458
  %v484 = vmul.f32 %v483, %v458
  %v485 = vmul.f32 %v484, %v483
  %v486 = vmul.f32 0.5, %v485
  %v487 = vsub.f32 1.5, %v486
  %v488 = vmul.f32 %v483, %v487
  %vm489 = vweird.f32 %v458
  %vm490 = vweird.f32 %v483
  %vm491 = vmor %vm489, %vm490
  %v492 = vsel %vm491, %v483, %v488
  %v493 = vrsqrt.pop %v459
  %v494 = vmul.f32 %v493, %v459
  %v495 = vmul.f32 %v494, %v493
  %v496 = vmul.f32 0.5, %v495
  %v497 = vsub.f32 1.5, %v496
  %v498 = vmul.f32 %v493, %v497
  %vm499 = vweird.f32 %v459
  %vm500 = vweird.f32 %v493
  %vm501 = vmor %vm499, %vm500
  %v502 = vsel %vm501, %v493, %v498
  %v503 = vrsqrt.pop %v460
  %v504 = vmul.f32 %v503, %v460
  %v505 = vmul.f32 %v504, %v503
  %v506 = vmul.f32 0.5, %v505
  %v507 = vsub.f32 1.5, %v506
  %v508 = vmul.f32 %v503, %v507
  %vm509 = vweird.f32 %v460
  %vm510 = vweird.f32 %v503
  %vm511 = vmor %vm509, %vm510
  %v512 = vsel %vm511, %v503, %v508
  %v513 = vrsqrt.pop %v461
  %v514 = vmul.f32 %v513, %v461
  %v515 = vmul.f32 %v514, %v513
  %v516 = vmul.f32 0.5, %v515
  %v517 = vsub.f32 1.5, %v516
  %v518 = vmul.f32 %v513, %v517
  %vm519 = vweird.f32 %v461
  %vm520 = vweird.f32 %v513
  %vm521 = vmor %vm519, %vm520
  %v522 = vsel %vm521, %v513, %v518
  %v523 = vrsqrt.pop %v462
  %v524 = vmul.f32 %v523, %v462
  %v525 = vmul.f32 %v524, %v523
  %v526 = vmul.f32 0.5, %v525
  %v527 = vsub.f32 1.5, %v526
  %v528 = vmul.f32 %v523, %v527
  %vm529 = vweird.f32 %v462
  %vm530 = vweird.f32 %v523
  %vm531 = vmor %vm529, %vm530
  %v532 = vsel %vm531, %v523, %v528
  %v533 = vrsqrt.pop %v463
  %v534 = vmul.f32 %v533, %v463
  %v535 = vmul.f32 %v534, %v533
  %v536 = vmul.f32 0.5, %v535
  %v537 = vsub.f32 1.5, %v536
  %v538 = vmul.f32 %v533, %v537
  %vm539 = vweird.f32 %v463
  %vm540 = vweird.f32 %v533
  %vm541 = vmor %vm539, %vm540
  %v542 = vsel %vm541, %v533, %v538
  %v543 = vrsqrt.pop %v464
  %v544 = vmul.f32 %v543, %v464
  %v545 = vmul.f32 %v544, %v543
  %v546 = vmul.f32 0.5, %v545
  %v547 = vsub.f32 1.5, %v546
  %v548 = vmul.f32 %v543, %v547
  %vm549 = vweird.f32 %v464
  %vm550 = vweird.f32 %v543
  %vm551 = vmor %vm549, %vm550
  %v552 = vsel %vm551, %v543, %v548
  %v553 = vrsqrt.pop %v465
  %v554 = vmul.f32 %v553, %v465
  %v555 = vmul.f32 %v554, %v553
  %v556 = vmul.f32 0.5, %v555
  %v557 = vsub.f32 1.5, %v556
  %v558 = vmul.f32 %v553, %v557
  %vm559 = vweird.f32 %v465
  %vm560 = vweird.f32 %v553
  %vm561 = vmor %vm559, %vm560
  %v562 = vsel %vm561, %v553, %v558
  %v563 = vrsqrt.pop %v466
  %v564 = vmul.f32 %v563, %v466
  %v565 = vmul.f32 %v564, %v563
  %v566 = vmul.f32 0.5, %v565
  %v567 = vsub.f32 1.5, %v566
  %v568 = vmul.f32 %v563, %v567
  %vm569 = vweird.f32 %v466
  %vm570 = vweird.f32 %v563
  %vm571 = vmor %vm569, %vm570
  %v572 = vsel %vm571, %v563, %v568
  %v573 = vrsqrt.pop %v467
  %v574 = vmul.f32 %v573, %v467
  %v575 = vmul.f32 %v574, %v573
  %v576 = vmul.f32 0.5, %v575
  %v577 = vsub.f32 1.5, %v576
  %v578 = vmul.f32 %v573, %v577
  %vm579 = vweird.f32 %v467
  %vm580 = vweird.f32 %v573
  %vm581 = vmor %vm579, %vm580
  %v582 = vsel %vm581, %v573, %v578
  %v583 = vrsqrt.pop %v468
  %v584 = vmul.f32 %v583, %v468
  %v585 = vmul.f32 %v584, %v583
  %v586 = vmul.f32 0.5, %v585
  %v587 = vsub.f32 1.5, %v586
  %v588 = vmul.f32 %v583, %v587
  %vm589 = vweird.f32 %v468
  %vm590 = vweird.f32 %v583
  %vm591 = vmor %vm589, %vm590
  %v592 = vsel %vm591, %v583, %v588
  %v593 = vrsqrt.pop %v469
  %v594 = vmul.f32 %v593, %v469
  %v595 = vmul.f32 %v594, %v593
  %v596 = vmul.f32 0.5, %v595
  %v597 = vsub.f32 1.5, %v596
  %v598 = vmul.f32 %v593, %v597
  %vm599 = vweird.f32 %v469
  %vm600 = vweird.f32 %v593
  %vm601 = vmor %vm599, %vm600
  %v602 = vsel %vm601, %v593, %v598
  %v603 = vrsqrt.pop %v470
  %v604 = vmul.f32 %v603, %v470
  %v605 = vmul.f32 %v604, %v603
  %v606 = vmul.f32 0.5, %v605
  %v607 = vsub.f32 1.5, %v606
  %v608 = vmul.f32 %v603, %v607
  %vm609 = vweird.f32 %v470
  %vm610 = vweird.f32 %v603
  %vm611 = vmor %vm609, %vm610
  %v612 = vsel %vm611, %v603, %v608
  %v613 = vrsqrt.pop %v471
  %v614 = vmul.f32 %v613, %v471
  %v615 = vmul.f32 %v614, %v613
  %v616 = vmul.f32 0.5, %v615
  %v617 = vsub.f32 1.5, %v616
  %v618 = vmul.f32 %v613, %v617
  %vm619 = vweird.f32 %v471
  %vm620 = vweird.f32 %v613
  %vm621 = vmor %vm619, %vm620
  %v622 = vsel %vm621, %v613, %v618
  %v623 = vrsqrt.pop %v472
  %v624 = vmul.f32 %v623, %v472
  %v625 = vmul.f32 %v624, %v623
  %v626 = vmul.f32 0.5, %v625
  %v627 = vsub.f32 1.5, %v626
  %v628 = vmul.f32 %v623, %v627
  %vm629 = vweird.f32 %v472
  %vm630 = vweird.f32 %v623
  %vm631 = vmor %vm629, %vm630
  %v632 = vsel %vm631, %v623, %v628
  %v633 = vmul.f32 %v354, %v482
  %v634 = vmul.f32 %v355, %v492
  %v635 = vmul.f32 %v356, %v502
  %v636 = vmul.f32 %v357, %v512
  %v637 = vmul.f32 %v358, %v522
  %v638 = vmul.f32 %v359, %v532
  %v639 = vmul.f32 %v360, %v542
  %v640 = vmul.f32 %v361, %v552
  %v641 = vmul.f32 %v362, %v562
  %v642 = vmul.f32 %v363, %v572
  %v643 = vmul.f32 %v364, %v582
  %v644 = vmul.f32 %v365, %v592
  %v645 = vmul.f32 %v366, %v602
  %v646 = vmul.f32 %v367, %v612
  %v647 = vmul.f32 %v368, %v622
  %v648 = vmul.f32 %v369, %v632
  %v649 = vld [vmem:[%s7] sm:$0x1]
  %v651 = vperm.slane %v649, 0
  %v653 = vmul.f32 %v633, %v651
  %v654 = vmul.f32 %v634, %v651
  %v655 = vmul.f32 %v635, %v651
  %v656 = vmul.f32 %v636, %v651
  %v657 = vmul.f32 %v637, %v651
  %v658 = vmul.f32 %v638, %v651
  %v659 = vmul.f32 %v639, %v651
  %v660 = vmul.f32 %v640, %v651
  %v661 = vmul.f32 %v641, %v651
  %v662 = vmul.f32 %v642, %v651
  %v663 = vmul.f32 %v643, %v651
  %v664 = vmul.f32 %v644, %v651
  %v665 = vmul.f32 %v645, %v651
  %v666 = vmul.f32 %v646, %v651
  %v667 = vmul.f32 %v647, %v651
  %v668 = vmul.f32 %v648, %v651
  %v669 = vld [vmem:[%s3] sm:$0xff]
  %v670 = vld [vmem:[%s3 + $0x8] sm:$0xff]
  %v671 = vld [vmem:[%s3 + $0x10] sm:$0xff]
  %v672 = vld [vmem:[%s3 + $0x18] sm:$0xff]
  %v673 = vld [vmem:[%s3 + $0x20] sm:$0xff]
  %v674 = vld [vmem:[%s3 + $0x28] sm:$0xff]
  %v675 = vld [vmem:[%s3 + $0x30] sm:$0xff]
  %v676 = vld [vmem:[%s3 + $0x38] sm:$0xff]
  %v677 = vld [vmem:[%s3 + $0x40] sm:$0xff]
  %v678 = vld [vmem:[%s3 + $0x48] sm:$0xff]
  %v679 = vld [vmem:[%s3 + $0x50] sm:$0xff]
  %v680 = vld [vmem:[%s3 + $0x58] sm:$0xff]
  %v681 = vld [vmem:[%s3 + $0x60] sm:$0xff]
  %v682 = vld [vmem:[%s3 + $0x68] sm:$0xff]
  %v683 = vld [vmem:[%s3 + $0x70] sm:$0xff]
  %v684 = vld [vmem:[%s3 + $0x78] sm:$0xff]
  %v685 = vxor.u32 %v669, 2147483648
  %v686 = vxor.u32 %v670, 2147483648
  %v687 = vxor.u32 %v671, 2147483648
  %v688 = vxor.u32 %v672, 2147483648
  %v689 = vxor.u32 %v673, 2147483648
  %v690 = vxor.u32 %v674, 2147483648
  %v691 = vxor.u32 %v675, 2147483648
  %v692 = vxor.u32 %v676, 2147483648
  %v693 = vxor.u32 %v677, 2147483648
  %v694 = vxor.u32 %v678, 2147483648
  %v695 = vxor.u32 %v679, 2147483648
  %v696 = vxor.u32 %v680, 2147483648
  %v697 = vxor.u32 %v681, 2147483648
  %v698 = vxor.u32 %v682, 2147483648
  %v699 = vxor.u32 %v683, 2147483648
  %v700 = vxor.u32 %v684, 2147483648
  %v701 = vmul.f32 %v685, 1.442695
  %v702 = vpow.pop %v701
  %v703 = vmul.f32 %v686, 1.442695
  %v704 = vpow.pop %v703
  %v705 = vmul.f32 %v687, 1.442695
  %v706 = vpow.pop %v705
  %v707 = vmul.f32 %v688, 1.442695
  %v708 = vpow.pop %v707
  %v709 = vmul.f32 %v689, 1.442695
  %v710 = vpow.pop %v709
  %v711 = vmul.f32 %v690, 1.442695
  %v712 = vpow.pop %v711
  %v713 = vmul.f32 %v691, 1.442695
  %v714 = vpow.pop %v713
  %v715 = vmul.f32 %v692, 1.442695
  %v716 = vpow.pop %v715
  %v717 = vmul.f32 %v693, 1.442695
  %v718 = vpow.pop %v717
  %v719 = vmul.f32 %v694, 1.442695
  %v720 = vpow.pop %v719
  %v721 = vmul.f32 %v695, 1.442695
  %v722 = vpow.pop %v721
  %v723 = vmul.f32 %v696, 1.442695
  %v724 = vpow.pop %v723
  %v725 = vmul.f32 %v697, 1.442695
  %v726 = vpow.pop %v725
  %v727 = vmul.f32 %v698, 1.442695
  %v728 = vpow.pop %v727
  %v729 = vmul.f32 %v699, 1.442695
  %v730 = vpow.pop %v729
  %v731 = vmul.f32 %v700, 1.442695
  %v732 = vpow.pop %v731
  %v733 = vadd.f32 %v702, 1.0
  %v734 = vadd.f32 %v704, 1.0
  %v735 = vadd.f32 %v706, 1.0
  %v736 = vadd.f32 %v708, 1.0
  %v737 = vadd.f32 %v710, 1.0
  %v738 = vadd.f32 %v712, 1.0
  %v739 = vadd.f32 %v714, 1.0
  %v740 = vadd.f32 %v716, 1.0
  %v741 = vadd.f32 %v718, 1.0
  %v742 = vadd.f32 %v720, 1.0
  %v743 = vadd.f32 %v722, 1.0
  %v744 = vadd.f32 %v724, 1.0
  %v745 = vadd.f32 %v726, 1.0
  %v746 = vadd.f32 %v728, 1.0
  %v747 = vadd.f32 %v730, 1.0
  %v748 = vadd.f32 %v732, 1.0
  %v749 = vrcp.pop %v733
  %v750 = vmul.f32 %v733, %v749
  %v751 = vsub.f32 1.0, %v750
  %v752 = vmul.f32 %v749, %v751
  %v753 = vadd.f32 %v749, %v752
  %vm754 = vweird.f32 %v733
  %vm755 = vweird.f32 %v749
  %vm756 = vmor %vm754, %vm755
  %v757 = vsel %vm756, %v749, %v753
  %v758 = vand.u32 2147483647, %v733
  %vm759 = vcmp.eq.f32.partialorder %v758, 8.507059e+37
  %v760 = vand.u32 %v733, 2147483648
  %v761 = vor.u32 1.1754944e-38, %v760
  %v762 = vsel %vm759, %v761, %v757
  %v763 = vmul.f32 1.0, %v762
  %v764 = vrcp.pop %v734
  %v765 = vmul.f32 %v734, %v764
  %v766 = vsub.f32 1.0, %v765
  %v767 = vmul.f32 %v764, %v766
  %v768 = vadd.f32 %v764, %v767
  %vm769 = vweird.f32 %v734
  %vm770 = vweird.f32 %v764
  %vm771 = vmor %vm769, %vm770
  %v772 = vsel %vm771, %v764, %v768
  %v773 = vand.u32 2147483647, %v734
  %vm774 = vcmp.eq.f32.partialorder %v773, 8.507059e+37
  %v775 = vand.u32 %v734, 2147483648
  %v776 = vor.u32 1.1754944e-38, %v775
  %v777 = vsel %vm774, %v776, %v772
  %v778 = vmul.f32 1.0, %v777
  %v779 = vrcp.pop %v735
  %v780 = vmul.f32 %v735, %v779
  %v781 = vsub.f32 1.0, %v780
  %v782 = vmul.f32 %v779, %v781
  %v783 = vadd.f32 %v779, %v782
  %vm784 = vweird.f32 %v735
  %vm785 = vweird.f32 %v779
  %vm786 = vmor %vm784, %vm785
  %v787 = vsel %vm786, %v779, %v783
  %v788 = vand.u32 2147483647, %v735
  %vm789 = vcmp.eq.f32.partialorder %v788, 8.507059e+37
  %v790 = vand.u32 %v735, 2147483648
  %v791 = vor.u32 1.1754944e-38, %v790
  %v792 = vsel %vm789, %v791, %v787
  %v793 = vmul.f32 1.0, %v792
  %v794 = vrcp.pop %v736
  %v795 = vmul.f32 %v736, %v794
  %v796 = vsub.f32 1.0, %v795
  %v797 = vmul.f32 %v794, %v796
  %v798 = vadd.f32 %v794, %v797
  %vm799 = vweird.f32 %v736
  %vm800 = vweird.f32 %v794
  %vm801 = vmor %vm799, %vm800
  %v802 = vsel %vm801, %v794, %v798
  %v803 = vand.u32 2147483647, %v736
  %vm804 = vcmp.eq.f32.partialorder %v803, 8.507059e+37
  %v805 = vand.u32 %v736, 2147483648
  %v806 = vor.u32 1.1754944e-38, %v805
  %v807 = vsel %vm804, %v806, %v802
  %v808 = vmul.f32 1.0, %v807
  %v809 = vrcp.pop %v737
  %v810 = vmul.f32 %v737, %v809
  %v811 = vsub.f32 1.0, %v810
  %v812 = vmul.f32 %v809, %v811
  %v813 = vadd.f32 %v809, %v812
  %vm814 = vweird.f32 %v737
  %vm815 = vweird.f32 %v809
  %vm816 = vmor %vm814, %vm815
  %v817 = vsel %vm816, %v809, %v813
  %v818 = vand.u32 2147483647, %v737
  %vm819 = vcmp.eq.f32.partialorder %v818, 8.507059e+37
  %v820 = vand.u32 %v737, 2147483648
  %v821 = vor.u32 1.1754944e-38, %v820
  %v822 = vsel %vm819, %v821, %v817
  %v823 = vmul.f32 1.0, %v822
  %v824 = vrcp.pop %v738
  %v825 = vmul.f32 %v738, %v824
  %v826 = vsub.f32 1.0, %v825
  %v827 = vmul.f32 %v824, %v826
  %v828 = vadd.f32 %v824, %v827
  %vm829 = vweird.f32 %v738
  %vm830 = vweird.f32 %v824
  %vm831 = vmor %vm829, %vm830
  %v832 = vsel %vm831, %v824, %v828
  %v833 = vand.u32 2147483647, %v738
  %vm834 = vcmp.eq.f32.partialorder %v833, 8.507059e+37
  %v835 = vand.u32 %v738, 2147483648
  %v836 = vor.u32 1.1754944e-38, %v835
  %v837 = vsel %vm834, %v836, %v832
  %v838 = vmul.f32 1.0, %v837
  %v839 = vrcp.pop %v739
  %v840 = vmul.f32 %v739, %v839
  %v841 = vsub.f32 1.0, %v840
  %v842 = vmul.f32 %v839, %v841
  %v843 = vadd.f32 %v839, %v842
  %vm844 = vweird.f32 %v739
  %vm845 = vweird.f32 %v839
  %vm846 = vmor %vm844, %vm845
  %v847 = vsel %vm846, %v839, %v843
  %v848 = vand.u32 2147483647, %v739
  %vm849 = vcmp.eq.f32.partialorder %v848, 8.507059e+37
  %v850 = vand.u32 %v739, 2147483648
  %v851 = vor.u32 1.1754944e-38, %v850
  %v852 = vsel %vm849, %v851, %v847
  %v853 = vmul.f32 1.0, %v852
  %v854 = vrcp.pop %v740
  %v855 = vmul.f32 %v740, %v854
  %v856 = vsub.f32 1.0, %v855
  %v857 = vmul.f32 %v854, %v856
  %v858 = vadd.f32 %v854, %v857
  %vm859 = vweird.f32 %v740
  %vm860 = vweird.f32 %v854
  %vm861 = vmor %vm859, %vm860
  %v862 = vsel %vm861, %v854, %v858
  %v863 = vand.u32 2147483647, %v740
  %vm864 = vcmp.eq.f32.partialorder %v863, 8.507059e+37
  %v865 = vand.u32 %v740, 2147483648
  %v866 = vor.u32 1.1754944e-38, %v865
  %v867 = vsel %vm864, %v866, %v862
  %v868 = vmul.f32 1.0, %v867
  %v869 = vrcp.pop %v741
  %v870 = vmul.f32 %v741, %v869
  %v871 = vsub.f32 1.0, %v870
  %v872 = vmul.f32 %v869, %v871
  %v873 = vadd.f32 %v869, %v872
  %vm874 = vweird.f32 %v741
  %vm875 = vweird.f32 %v869
  %vm876 = vmor %vm874, %vm875
  %v877 = vsel %vm876, %v869, %v873
  %v878 = vand.u32 2147483647, %v741
  %vm879 = vcmp.eq.f32.partialorder %v878, 8.507059e+37
  %v880 = vand.u32 %v741, 2147483648
  %v881 = vor.u32 1.1754944e-38, %v880
  %v882 = vsel %vm879, %v881, %v877
  %v883 = vmul.f32 1.0, %v882
  %v884 = vrcp.pop %v742
  %v885 = vmul.f32 %v742, %v884
  %v886 = vsub.f32 1.0, %v885
  %v887 = vmul.f32 %v884, %v886
  %v888 = vadd.f32 %v884, %v887
  %vm889 = vweird.f32 %v742
  %vm890 = vweird.f32 %v884
  %vm891 = vmor %vm889, %vm890
  %v892 = vsel %vm891, %v884, %v888
  %v893 = vand.u32 2147483647, %v742
  %vm894 = vcmp.eq.f32.partialorder %v893, 8.507059e+37
  %v895 = vand.u32 %v742, 2147483648
  %v896 = vor.u32 1.1754944e-38, %v895
  %v897 = vsel %vm894, %v896, %v892
  %v898 = vmul.f32 1.0, %v897
  %v899 = vrcp.pop %v743
  %v900 = vmul.f32 %v743, %v899
  %v901 = vsub.f32 1.0, %v900
  %v902 = vmul.f32 %v899, %v901
  %v903 = vadd.f32 %v899, %v902
  %vm904 = vweird.f32 %v743
  %vm905 = vweird.f32 %v899
  %vm906 = vmor %vm904, %vm905
  %v907 = vsel %vm906, %v899, %v903
  %v908 = vand.u32 2147483647, %v743
  %vm909 = vcmp.eq.f32.partialorder %v908, 8.507059e+37
  %v910 = vand.u32 %v743, 2147483648
  %v911 = vor.u32 1.1754944e-38, %v910
  %v912 = vsel %vm909, %v911, %v907
  %v913 = vmul.f32 1.0, %v912
  %v914 = vrcp.pop %v744
  %v915 = vmul.f32 %v744, %v914
  %v916 = vsub.f32 1.0, %v915
  %v917 = vmul.f32 %v914, %v916
  %v918 = vadd.f32 %v914, %v917
  %vm919 = vweird.f32 %v744
  %vm920 = vweird.f32 %v914
  %vm921 = vmor %vm919, %vm920
  %v922 = vsel %vm921, %v914, %v918
  %v923 = vand.u32 2147483647, %v744
  %vm924 = vcmp.eq.f32.partialorder %v923, 8.507059e+37
  %v925 = vand.u32 %v744, 2147483648
  %v926 = vor.u32 1.1754944e-38, %v925
  %v927 = vsel %vm924, %v926, %v922
  %v928 = vmul.f32 1.0, %v927
  %v929 = vrcp.pop %v745
  %v930 = vmul.f32 %v745, %v929
  %v931 = vsub.f32 1.0, %v930
  %v932 = vmul.f32 %v929, %v931
  %v933 = vadd.f32 %v929, %v932
  %vm934 = vweird.f32 %v745
  %vm935 = vweird.f32 %v929
  %vm936 = vmor %vm934, %vm935
  %v937 = vsel %vm936, %v929, %v933
  %v938 = vand.u32 2147483647, %v745
  %vm939 = vcmp.eq.f32.partialorder %v938, 8.507059e+37
  %v940 = vand.u32 %v745, 2147483648
  %v941 = vor.u32 1.1754944e-38, %v940
  %v942 = vsel %vm939, %v941, %v937
  %v943 = vmul.f32 1.0, %v942
  %v944 = vrcp.pop %v746
  %v945 = vmul.f32 %v746, %v944
  %v946 = vsub.f32 1.0, %v945
  %v947 = vmul.f32 %v944, %v946
  %v948 = vadd.f32 %v944, %v947
  %vm949 = vweird.f32 %v746
  %vm950 = vweird.f32 %v944
  %vm951 = vmor %vm949, %vm950
  %v952 = vsel %vm951, %v944, %v948
  %v953 = vand.u32 2147483647, %v746
  %vm954 = vcmp.eq.f32.partialorder %v953, 8.507059e+37
  %v955 = vand.u32 %v746, 2147483648
  %v956 = vor.u32 1.1754944e-38, %v955
  %v957 = vsel %vm954, %v956, %v952
  %v958 = vmul.f32 1.0, %v957
  %v959 = vrcp.pop %v747
  %v960 = vmul.f32 %v747, %v959
  %v961 = vsub.f32 1.0, %v960
  %v962 = vmul.f32 %v959, %v961
  %v963 = vadd.f32 %v959, %v962
  %vm964 = vweird.f32 %v747
  %vm965 = vweird.f32 %v959
  %vm966 = vmor %vm964, %vm965
  %v967 = vsel %vm966, %v959, %v963
  %v968 = vand.u32 2147483647, %v747
  %vm969 = vcmp.eq.f32.partialorder %v968, 8.507059e+37
  %v970 = vand.u32 %v747, 2147483648
  %v971 = vor.u32 1.1754944e-38, %v970
  %v972 = vsel %vm969, %v971, %v967
  %v973 = vmul.f32 1.0, %v972
  %v974 = vrcp.pop %v748
  %v975 = vmul.f32 %v748, %v974
  %v976 = vsub.f32 1.0, %v975
  %v977 = vmul.f32 %v974, %v976
  %v978 = vadd.f32 %v974, %v977
  %vm979 = vweird.f32 %v748
  %vm980 = vweird.f32 %v974
  %vm981 = vmor %vm979, %vm980
  %v982 = vsel %vm981, %v974, %v978
  %v983 = vand.u32 2147483647, %v748
  %vm984 = vcmp.eq.f32.partialorder %v983, 8.507059e+37
  %v985 = vand.u32 %v748, 2147483648
  %v986 = vor.u32 1.1754944e-38, %v985
  %v987 = vsel %vm984, %v986, %v982
  %v988 = vmul.f32 1.0, %v987
  %v989 = vmul.f32 %v669, %v763
  %v990 = vmul.f32 %v670, %v778
  %v991 = vmul.f32 %v671, %v793
  %v992 = vmul.f32 %v672, %v808
  %v993 = vmul.f32 %v673, %v823
  %v994 = vmul.f32 %v674, %v838
  %v995 = vmul.f32 %v675, %v853
  %v996 = vmul.f32 %v676, %v868
  %v997 = vmul.f32 %v677, %v883
  %v998 = vmul.f32 %v678, %v898
  %v999 = vmul.f32 %v679, %v913
  %v1000 = vmul.f32 %v680, %v928
  %v1001 = vmul.f32 %v681, %v943
  %v1002 = vmul.f32 %v682, %v958
  %v1003 = vmul.f32 %v683, %v973
  %v1004 = vmul.f32 %v684, %v988
  %v1005 = vmul.f32 %v653, %v989
  %v1006 = vmul.f32 %v654, %v990
  %v1007 = vmul.f32 %v655, %v991
  %v1008 = vmul.f32 %v656, %v992
  %v1009 = vmul.f32 %v657, %v993
  %v1010 = vmul.f32 %v658, %v994
  %v1011 = vmul.f32 %v659, %v995
  %v1012 = vmul.f32 %v660, %v996
  %v1013 = vmul.f32 %v661, %v997
  %v1014 = vmul.f32 %v662, %v998
  %v1015 = vmul.f32 %v663, %v999
  %v1016 = vmul.f32 %v664, %v1000
  %v1017 = vmul.f32 %v665, %v1001
  %v1018 = vmul.f32 %v666, %v1002
  %v1019 = vmul.f32 %v667, %v1003
  %v1020 = vmul.f32 %v668, %v1004
  %1021 = vst.msk [vmem:[%s8] sm:$0xff] %vm53, %v1005
  %1022 = vst.msk [vmem:[%s8 + $0x8] sm:$0xff] %vm53, %v1006
  %1023 = vst.msk [vmem:[%s8 + $0x10] sm:$0xff] %vm53, %v1007
  %1024 = vst.msk [vmem:[%s8 + $0x18] sm:$0xff] %vm53, %v1008
  %1025 = vst.msk [vmem:[%s8 + $0x20] sm:$0xff] %vm53, %v1009
  %1026 = vst.msk [vmem:[%s8 + $0x28] sm:$0xff] %vm53, %v1010
  %1027 = vst.msk [vmem:[%s8 + $0x30] sm:$0xff] %vm53, %v1011
  %1028 = vst.msk [vmem:[%s8 + $0x38] sm:$0xff] %vm53, %v1012
  %1029 = vst.msk [vmem:[%s8 + $0x40] sm:$0xff] %vm53, %v1013
  %1030 = vst.msk [vmem:[%s8 + $0x48] sm:$0xff] %vm53, %v1014
  %1031 = vst.msk [vmem:[%s8 + $0x50] sm:$0xff] %vm53, %v1015
  %1032 = vst.msk [vmem:[%s8 + $0x58] sm:$0xff] %vm53, %v1016
  %1033 = vst.msk [vmem:[%s8 + $0x60] sm:$0xff] %vm53, %v1017
  %1034 = vst.msk [vmem:[%s8 + $0x68] sm:$0xff] %vm53, %v1018
  %1035 = vst.msk [vmem:[%s8 + $0x70] sm:$0xff] %vm53, %v1019
  %1036 = vst.msk [vmem:[%s8 + $0x78] sm:$0xff] %vm53, %v1020
  // Predicated region
  $region34: #{_lambda_.8} parent=0 // pred_check
    _
  $region35: #{_lambda_.8} parent=0 // pred_check_branch
    %1038 = sbr.rel (0) target = $region37
  $region36: #{_lambda_.8} parent=0 // pred_region
    _
  $region37: #{_lambda_.8} parent=0 // pred_fallthru
    _
  // Predicated region
  $region38: #{_lambda_.8} parent=0 // pred_check
    _
  $region39: #{_lambda_.8} parent=0 // pred_check_branch
    %1040 = sbr.rel (0) target = $region41
  $region40: #{_lambda_.8} parent=0 // pred_region
    _
  $region41: #{_lambda_.8} parent=0 // pred_fallthru
    _

// kernel: _lambda_.9
$region0: #{_lambda_.9}
  #allocation0 [shape = 'u32[]', space=smem, size = 0x4, offset = 0x4, fixed_abs, tag = 'smem constant byte address 0x4 - core index']
  #allocation1 [shape = 'u32[72,128]{1,0:T(1,128)}', space=vmem, size = 0x9000, scoped, tag = 'internal scratch']
  #allocation2 [shape = 'f32[128,32]{1,0:T(8,128)}', space=vmem, size = 0x10000, scoped, tag = 'scratch operand']
  %s0 = inlined_call_operand.vmem [shape: f32[128,64], index: 0, kind: input, shape index: {}]
  %s1 = inlined_call_operand.vmem [shape: f32[64,32], index: 1, kind: input, shape index: {}]
  %s2 = inlined_call_operand.hbm [shape: f32[128,32], index: 2, kind: output, shape index: {}]
  %s3 = sld [smem:[#allocation0]]
  $region26: #{_lambda_.9} parent=0
    _
  %s5 = ssub.s32 1, %s3
  %s6 = scalar_select 0, %s5, %s3
  $region1: #{_lambda_.9} parent=0
    #allocation3 [shape = 'u8[65536]{0}', space=vmem, size = 0x10000, scoped, tag = 'output window, operand 0, single buffered']
    #allocation4 [shape = 's32[1]{0}', space=sflag, size = 0x4, scoped, tag = 'scoped memory for _lambda_.9']
    %7 = vsyncpa [#allocation4], 0
    // Predicated region
    $region2: #{_lambda_.9} parent=1 // pred_check
      _
    $region3: #{_lambda_.9} parent=1 // pred_check_branch
      %9 = sbr.rel (0) target = $region5
    $region4: #{_lambda_.9} parent=1 // pred_region
      _
    $region5: #{_lambda_.9} parent=1 // pred_fallthru
      _
    // Predicated region
    $region6: #{_lambda_.9} parent=1 // pred_check
      _
    $region7: #{_lambda_.9} parent=1 // pred_check_branch
      %11 = sbr.rel (0) target = $region9
    $region8: #{_lambda_.9} parent=1 // pred_region
      _
    $region9: #{_lambda_.9} parent=1 // pred_fallthru
      _
    %p12 = scmp.eq.s32.totalorder 0, 0
    // Predicated region
    $region10: #{_lambda_.9} parent=1 // pred_check
      %p13 = pneg %p12
    $region11: #{_lambda_.9} parent=1 // pred_check_branch
      %15 = sbr.rel (%p13) target = $region13
    $region12: #{_lambda_.9} parent=1 // pred_region
      %vm16 = vcmask 261120
      %17 = vst.msk [vmem:[#allocation2] sm:$0xff] %vm16, 0.0
      %18 = vst.msk [vmem:[#allocation2 + $0x8] sm:$0xff] %vm16, 0.0
      %19 = vst.msk [vmem:[#allocation2 + $0x10] sm:$0xff] %vm16, 0.0
      %20 = vst.msk [vmem:[#allocation2 + $0x18] sm:$0xff] %vm16, 0.0
      %21 = vst.msk [vmem:[#allocation2 + $0x20] sm:$0xff] %vm16, 0.0
      %22 = vst.msk [vmem:[#allocation2 + $0x28] sm:$0xff] %vm16, 0.0
      %23 = vst.msk [vmem:[#allocation2 + $0x30] sm:$0xff] %vm16, 0.0
      %24 = vst.msk [vmem:[#allocation2 + $0x38] sm:$0xff] %vm16, 0.0
      %25 = vst.msk [vmem:[#allocation2 + $0x40] sm:$0xff] %vm16, 0.0
      %26 = vst.msk [vmem:[#allocation2 + $0x48] sm:$0xff] %vm16, 0.0
      %27 = vst.msk [vmem:[#allocation2 + $0x50] sm:$0xff] %vm16, 0.0
      %28 = vst.msk [vmem:[#allocation2 + $0x58] sm:$0xff] %vm16, 0.0
      %29 = vst.msk [vmem:[#allocation2 + $0x60] sm:$0xff] %vm16, 0.0
      %30 = vst.msk [vmem:[#allocation2 + $0x68] sm:$0xff] %vm16, 0.0
      %31 = vst.msk [vmem:[#allocation2 + $0x70] sm:$0xff] %vm16, 0.0
      %32 = vst.msk [vmem:[#allocation2 + $0x78] sm:$0xff] %vm16, 0.0
    $region13: #{_lambda_.9} parent=1 // pred_fallthru
      _
    %v33 = vld [vmem:[#allocation2] sm:$0xff]
    %v34 = vld [vmem:[#allocation2 + $0x8] sm:$0xff]
    %v35 = vld [vmem:[#allocation2 + $0x10] sm:$0xff]
    %v36 = vld [vmem:[#allocation2 + $0x18] sm:$0xff]
    %v37 = vld [vmem:[#allocation2 + $0x20] sm:$0xff]
    %v38 = vld [vmem:[#allocation2 + $0x28] sm:$0xff]
    %v39 = vld [vmem:[#allocation2 + $0x30] sm:$0xff]
    %v40 = vld [vmem:[#allocation2 + $0x38] sm:$0xff]
    %v41 = vld [vmem:[#allocation2 + $0x40] sm:$0xff]
    %v42 = vld [vmem:[#allocation2 + $0x48] sm:$0xff]
    %v43 = vld [vmem:[#allocation2 + $0x50] sm:$0xff]
    %v44 = vld [vmem:[#allocation2 + $0x58] sm:$0xff]
    %v45 = vld [vmem:[#allocation2 + $0x60] sm:$0xff]
    %v46 = vld [vmem:[#allocation2 + $0x68] sm:$0xff]
    %v47 = vld [vmem:[#allocation2 + $0x70] sm:$0xff]
    %v48 = vld [vmem:[#allocation2 + $0x78] sm:$0xff]
    %v49 = vld [vmem:[%s0] sm:$0xff]
    %v50 = vld [vmem:[%s0 + $0x8] sm:$0xff]
    %v51 = vld [vmem:[%s0 + $0x10] sm:$0xff]
    %v52 = vld [vmem:[%s0 + $0x18] sm:$0xff]
    %v53 = vld [vmem:[%s0 + $0x20] sm:$0xff]
    %v54 = vld [vmem:[%s0 + $0x28] sm:$0xff]
    %v55 = vld [vmem:[%s0 + $0x30] sm:$0xff]
    %v56 = vld [vmem:[%s0 + $0x38] sm:$0xff]
    %v57 = vld [vmem:[%s0 + $0x40] sm:$0xff]
    %v58 = vld [vmem:[%s0 + $0x48] sm:$0xff]
    %v59 = vld [vmem:[%s0 + $0x50] sm:$0xff]
    %v60 = vld [vmem:[%s0 + $0x58] sm:$0xff]
    %v61 = vld [vmem:[%s0 + $0x60] sm:$0xff]
    %v62 = vld [vmem:[%s0 + $0x68] sm:$0xff]
    %v63 = vld [vmem:[%s0 + $0x70] sm:$0xff]
    %v64 = vld [vmem:[%s0 + $0x78] sm:$0xff]
    %v65 = vld [vmem:[%s1] sm:$0xff]
    %v66 = vld [vmem:[%s1 + $0x8] sm:$0xff]
    %v67 = vld [vmem:[%s1 + $0x10] sm:$0xff]
    %v68 = vld [vmem:[%s1 + $0x18] sm:$0xff]
    %v69 = vld [vmem:[%s1 + $0x20] sm:$0xff]
    %v70 = vld [vmem:[%s1 + $0x28] sm:$0xff]
    %v71 = vld [vmem:[%s1 + $0x30] sm:$0xff]
    %v72 = vld [vmem:[%s1 + $0x38] sm:$0xff]
    %vm73 = vcmask 523264
    %v75 = vsel %vm73, %v49, 0
    %v78 = vsel %vm73, %v50, 0
    %v81 = vsel %vm73, %v51, 0
    %v84 = vsel %vm73, %v52, 0
    %v87 = vsel %vm73, %v53, 0
    %v90 = vsel %vm73, %v54, 0
    %v93 = vsel %vm73, %v55, 0
    %v96 = vsel %vm73, %v56, 0
    %v99 = vsel %vm73, %v57, 0
    %v102 = vsel %vm73, %v58, 0
    %v105 = vsel %vm73, %v59, 0
    %v108 = vsel %vm73, %v60, 0
    %v111 = vsel %vm73, %v61, 0
    %v114 = vsel %vm73, %v62, 0
    %v117 = vsel %vm73, %v63, 0
    %v120 = vsel %vm73, %v64, 0
    %122 = vmatpush.msra.mxu0 0.0
    %123 = vmatpush.msra.mxu0 0.0
    %124 = vmatpush.msra.mxu0 0.0
    %125 = vmatpush.msra.mxu0 0.0
    %126 = vmatpush.msra.mxu0 0.0
    %127 = vmatpush.msra.mxu0 0.0
    %128 = vmatpush.msra.mxu0 0.0
    %129 = vmatpush.msra.mxu0 0.0
    %130 = vmatpush.msra.mxu0 %v72
    %131 = vmatpush.msra.mxu0 %v71
    %132 = vmatpush.msra.mxu0 %v70
    %133 = vmatpush.msra.mxu0 %v69
    %134 = vmatpush.msra.mxu0 %v68
    %135 = vmatpush.msra.mxu0 %v67
    %136 = vmatpush.msra.mxu0 %v66
    %137 = vmatpush.msra.mxu0 %v65
    %138 = vmatmul.f32.gmra.mxu0 %v75
    %v139 = vpop.f32.mrf.mxu0
    %v140 = vadd.f32 0.0, %v139
    %141 = vmatmul.f32.gmra.mxu0 %v78
    %v142 = vpop.f32.mrf.mxu0
    %v143 = vadd.f32 0.0, %v142
    %144 = vmatmul.f32.gmra.mxu0 %v81
    %v145 = vpop.f32.mrf.mxu0
    %v146 = vadd.f32 0.0, %v145
    %147 = vmatmul.f32.gmra.mxu0 %v84
    %v148 = vpop.f32.mrf.mxu0
    %v149 = vadd.f32 0.0, %v148
    %150 = vmatmul.f32.gmra.mxu0 %v87
    %v151 = vpop.f32.mrf.mxu0
    %v152 = vadd.f32 0.0, %v151
    %153 = vmatmul.f32.gmra.mxu0 %v90
    %v154 = vpop.f32.mrf.mxu0
    %v155 = vadd.f32 0.0, %v154
    %156 = vmatmul.f32.gmra.mxu0 %v93
    %v157 = vpop.f32.mrf.mxu0
    %v158 = vadd.f32 0.0, %v157
    %159 = vmatmul.f32.gmra.mxu0 %v96
    %v160 = vpop.f32.mrf.mxu0
    %v161 = vadd.f32 0.0, %v160
    %162 = vmatmul.f32.gmra.mxu0 %v99
    %v163 = vpop.f32.mrf.mxu0
    %v164 = vadd.f32 0.0, %v163
    %165 = vmatmul.f32.gmra.mxu0 %v102
    %v166 = vpop.f32.mrf.mxu0
    %v167 = vadd.f32 0.0, %v166
    %168 = vmatmul.f32.gmra.mxu0 %v105
    %v169 = vpop.f32.mrf.mxu0
    %v170 = vadd.f32 0.0, %v169
    %171 = vmatmul.f32.gmra.mxu0 %v108
    %v172 = vpop.f32.mrf.mxu0
    %v173 = vadd.f32 0.0, %v172
    %174 = vmatmul.f32.gmra.mxu0 %v111
    %v175 = vpop.f32.mrf.mxu0
    %v176 = vadd.f32 0.0, %v175
    %177 = vmatmul.f32.gmra.mxu0 %v114
    %v178 = vpop.f32.mrf.mxu0
    %v179 = vadd.f32 0.0, %v178
    %180 = vmatmul.f32.gmra.mxu0 %v117
    %v181 = vpop.f32.mrf.mxu0
    %v182 = vadd.f32 0.0, %v181
    %183 = vmatmul.f32.gmra.mxu0 %v120
    %v184 = vpop.f32.mrf.mxu0
    %v185 = vadd.f32 0.0, %v184
    %186 = vdwg.mxu0
    %v187 = vadd.f32 %v33, %v140
    %v188 = vadd.f32 %v34, %v143
    %v189 = vadd.f32 %v35, %v146
    %v190 = vadd.f32 %v36, %v149
    %v191 = vadd.f32 %v37, %v152
    %v192 = vadd.f32 %v38, %v155
    %v193 = vadd.f32 %v39, %v158
    %v194 = vadd.f32 %v40, %v161
    %v195 = vadd.f32 %v41, %v164
    %v196 = vadd.f32 %v42, %v167
    %v197 = vadd.f32 %v43, %v170
    %v198 = vadd.f32 %v44, %v173
    %v199 = vadd.f32 %v45, %v176
    %v200 = vadd.f32 %v46, %v179
    %v201 = vadd.f32 %v47, %v182
    %v202 = vadd.f32 %v48, %v185
    %vm203 = vcmask 261120
    %204 = vst.msk [vmem:[#allocation2] sm:$0xff] %vm203, %v187
    %205 = vst.msk [vmem:[#allocation2 + $0x8] sm:$0xff] %vm203, %v188
    %206 = vst.msk [vmem:[#allocation2 + $0x10] sm:$0xff] %vm203, %v189
    %207 = vst.msk [vmem:[#allocation2 + $0x18] sm:$0xff] %vm203, %v190
    %208 = vst.msk [vmem:[#allocation2 + $0x20] sm:$0xff] %vm203, %v191
    %209 = vst.msk [vmem:[#allocation2 + $0x28] sm:$0xff] %vm203, %v192
    %210 = vst.msk [vmem:[#allocation2 + $0x30] sm:$0xff] %vm203, %v193
    %211 = vst.msk [vmem:[#allocation2 + $0x38] sm:$0xff] %vm203, %v194
    %212 = vst.msk [vmem:[#allocation2 + $0x40] sm:$0xff] %vm203, %v195
    %213 = vst.msk [vmem:[#allocation2 + $0x48] sm:$0xff] %vm203, %v196
    %214 = vst.msk [vmem:[#allocation2 + $0x50] sm:$0xff] %vm203, %v197
    %215 = vst.msk [vmem:[#allocation2 + $0x58] sm:$0xff] %vm203, %v198
    %216 = vst.msk [vmem:[#allocation2 + $0x60] sm:$0xff] %vm203, %v199
    %217 = vst.msk [vmem:[#allocation2 + $0x68] sm:$0xff] %vm203, %v200
    %218 = vst.msk [vmem:[#allocation2 + $0x70] sm:$0xff] %vm203, %v201
    %219 = vst.msk [vmem:[#allocation2 + $0x78] sm:$0xff] %vm203, %v202
    // Predicated region
    $region14: #{_lambda_.9} parent=1 // pred_check
      %p220 = pneg %p12
    $region15: #{_lambda_.9} parent=1 // pred_check_branch
      %222 = sbr.rel (%p220) target = $region17
    $region16: #{_lambda_.9} parent=1 // pred_region
      %v223 = vld [vmem:[#allocation2] sm:$0xff]
      %v224 = vld [vmem:[#allocation2 + $0x8] sm:$0xff]
      %v225 = vld [vmem:[#allocation2 + $0x10] sm:$0xff]
      %v226 = vld [vmem:[#allocation2 + $0x18] sm:$0xff]
      %v227 = vld [vmem:[#allocation2 + $0x20] sm:$0xff]
      %v228 = vld [vmem:[#allocation2 + $0x28] sm:$0xff]
      %v229 = vld [vmem:[#allocation2 + $0x30] sm:$0xff]
      %v230 = vld [vmem:[#allocation2 + $0x38] sm:$0xff]
      %v231 = vld [vmem:[#allocation2 + $0x40] sm:$0xff]
      %v232 = vld [vmem:[#allocation2 + $0x48] sm:$0xff]
      %v233 = vld [vmem:[#allocation2 + $0x50] sm:$0xff]
      %v234 = vld [vmem:[#allocation2 + $0x58] sm:$0xff]
      %v235 = vld [vmem:[#allocation2 + $0x60] sm:$0xff]
      %v236 = vld [vmem:[#allocation2 + $0x68] sm:$0xff]
      %v237 = vld [vmem:[#allocation2 + $0x70] sm:$0xff]
      %v238 = vld [vmem:[#allocation2 + $0x78] sm:$0xff]
      %239 = vst.msk [vmem:[#allocation3] sm:$0xff] %vm203, %v223
      %240 = vst.msk [vmem:[#allocation3 + $0x8] sm:$0xff] %vm203, %v224
      %241 = vst.msk [vmem:[#allocation3 + $0x10] sm:$0xff] %vm203, %v225
      %242 = vst.msk [vmem:[#allocation3 + $0x18] sm:$0xff] %vm203, %v226
      %243 = vst.msk [vmem:[#allocation3 + $0x20] sm:$0xff] %vm203, %v227
      %244 = vst.msk [vmem:[#allocation3 + $0x28] sm:$0xff] %vm203, %v228
      %245 = vst.msk [vmem:[#allocation3 + $0x30] sm:$0xff] %vm203, %v229
      %246 = vst.msk [vmem:[#allocation3 + $0x38] sm:$0xff] %vm203, %v230
      %247 = vst.msk [vmem:[#allocation3 + $0x40] sm:$0xff] %vm203, %v231
      %248 = vst.msk [vmem:[#allocation3 + $0x48] sm:$0xff] %vm203, %v232
      %249 = vst.msk [vmem:[#allocation3 + $0x50] sm:$0xff] %vm203, %v233
      %250 = vst.msk [vmem:[#allocation3 + $0x58] sm:$0xff] %vm203, %v234
      %251 = vst.msk [vmem:[#allocation3 + $0x60] sm:$0xff] %vm203, %v235
      %252 = vst.msk [vmem:[#allocation3 + $0x68] sm:$0xff] %vm203, %v236
      %253 = vst.msk [vmem:[#allocation3 + $0x70] sm:$0xff] %vm203, %v237
      %254 = vst.msk [vmem:[#allocation3 + $0x78] sm:$0xff] %vm203, %v238
    $region17: #{_lambda_.9} parent=1 // pred_fallthru
      _
    // Predicated region
    $region18: #{_lambda_.9} parent=1 // pred_check
      _
    $region19: #{_lambda_.9} parent=1 // pred_check_branch
      %256 = sbr.rel (0) target = $region21
    $region20: #{_lambda_.9} parent=1 // pred_region
      %258 = vsyncadd [#allocation4], 0
      %s259 = sshll.u32 [#allocation3], 4
      %s260 = int_to_ptr.vmem [resolvable:$true] %s259
      %s261 = sshll.u32 %s2, 4
      %s262 = int_to_ptr.hbm [resolvable:$true] %s261
      %267 = dma.vmem_to_hbm [thread:$0]  %s260, 2048, %s262, [#allocation4], 128, 128, 8
    $region21: #{_lambda_.9} parent=1 // pred_fallthru
      _
    // Predicated region
    $region22: #{_lambda_.9} parent=1 // pred_check
      _
    $region23: #{_lambda_.9} parent=1 // pred_check_branch
      %269 = sbr.rel (0) target = $region25
    $region24: #{_lambda_.9} parent=1 // pred_region
      %271 = dma.done [#allocation4], 2048
    $region25: #{_lambda_.9} parent=1 // pred_fallthru
      _
    %272 = vsyncpa [#allocation4], 1

</llo_original>
